<compile_context>
chip_gen: v5e
topology: v5e:2x2
jax: 0.10.0
libtpu: 0.0.40
codegen_flags: <defaults>
</compile_context>

<pallas_src>
import functools
import math

import jax
import jax.numpy as jnp
from jax.experimental import pallas as pl
from jax.experimental.pallas import tpu as pltpu

# ----------------------------- configuration --------------------------------
BB_N, BB_CA, BB_C, BB_O, BB_CB = 0, 1, 2, 3, 4
AA_UNK = 20

RES_FEAT_DIM = 32          # cfg.res_feat_dim
PAIR_FEAT_DIM = 32         # cfg.pair_feat_dim
NUM_ATOMS = 5              # resolution_to_num_atoms['backbone+CB']
MAX_AA_TYPES = 22
MAX_RELPOS = 32
SEQ_CLASSES = 20
NUM_STEPS = 100            # cfg.diffusion.num_steps
NUM_GA_LAYERS = 2          # cfg.diffusion.eps_net_opt.num_layers
GA_HEADS, GA_QK, GA_V, GA_QP, GA_VP = 4, 16, 16, 4, 4


# ========================= Pallas fused row-MLP ==============================
def _round_up(x, m):
    return (x + m - 1) // m * m


def _plan_rows(R, max_tile=1024, min_steps=2):
    """Pick (tile, Rpad, grid). tile is a multiple of 16 (bf16 sublane packing),
    capped at max_tile; try to give >=2 grid steps so v7x megacore can shard
    the 'parallel' axis (skipped for tiny row counts)."""
    Rpad0 = _round_up(max(R, 16), 16)
    nsteps = max(min_steps, -(-Rpad0 // max_tile))
    if Rpad0 < 16 * nsteps:
        nsteps = max(1, Rpad0 // 16)
    tile = _round_up(-(-Rpad0 // nsteps), 16)
    return tile, tile * nsteps, nsteps


def _multi_mlp_kernel(*refs, branch_flags):
    """Shared bf16 input block, several independent Linear(+ReLU) chains,
    one output ref per branch (no lane concat / post-slice). f32 accumulation,
    bias+ReLU in f32."""
    nb = len(branch_flags)
    x_ref = refs[0]
    out_refs = refs[-nb:]
    wb_refs = refs[1:-nb]
    x = x_ref[...]
    idx = 0
    for bi, flags in enumerate(branch_flags):
        h = x
        n = len(flags)
        for li, relu in enumerate(flags):
            w = wb_refs[idx][...]
            b = wb_refs[idx + 1][...]
            idx += 2
            acc = jnp.dot(h, w, preferred_element_type=jnp.float32) + b
            if relu:
                acc = jnp.maximum(acc, 0.0)
            h = acc.astype(jnp.bfloat16) if li + 1 < n else acc
        out_refs[bi][...] = h.astype(out_refs[bi].dtype)


def pallas_mlp_heads(x2d, branches, out_dtypes=None, max_tile=1024):
    """branches: list of (layers, relu_flags) sharing the same input rows.
    layers: list of (W (din,dout), b (dout,)). Returns list of per-branch outs."""
    x2d = x2d.astype(jnp.bfloat16)
    R, Din = x2d.shape
    widths = [layers[-1][0].shape[1] for layers, _ in branches]
    if out_dtypes is None:
        out_dtypes = [jnp.float32] * len(branches)
    tile, Rpad, grid = _plan_rows(R, max_tile)
    xp = x2d if Rpad == R else jnp.pad(x2d, ((0, Rpad - R), (0, 0)))

    ins = [xp]
    in_specs = [pl.BlockSpec((tile, Din), lambda i: (i, 0))]
    branch_flags = []
    for layers, flags in branches:
        branch_flags.append(tuple(bool(f) for f in flags))
        for (W, b) in layers:
            Wb = W.astype(jnp.bfloat16)
            b2 = b.reshape(1, -1).astype(jnp.float32)
            ins += [Wb, b2]
            in_specs += [pl.BlockSpec(Wb.shape, lambda i: (0, 0)),
                         pl.BlockSpec(b2.shape, lambda i: (0, 0))]

    out_shapes = [jax.ShapeDtypeStruct((Rpad, w), dt) for w, dt in zip(widths, out_dtypes)]
    out_specs = [pl.BlockSpec((tile, w), lambda i: (i, 0)) for w in widths]

    kernel = functools.partial(_multi_mlp_kernel, branch_flags=tuple(branch_flags))
    outs = pl.pallas_call(
        kernel,
        out_shape=out_shapes,
        grid=(grid,),
        in_specs=in_specs,
        out_specs=out_specs,
        compiler_params=pltpu.CompilerParams(dimension_semantics=("parallel",)),
    )(*ins)
    # NOTE: padded rows carry bias/ReLU garbage -> must slice.
    return [o[:R] for o in outs]


def pallas_mlp(x2d, layers, relu_flags, out_dtype=jnp.float32, max_tile=1024):
    return pallas_mlp_heads(x2d, [(layers, relu_flags)], [out_dtype], max_tile)[0]


# ------------------- fused PairEmbedding feature kernel ----------------------
def _pair_kernel(aap_ref, rel_ref, dgm_ref, dih_ref, mask_ref,
                 wd1, bd1, wd2, bd2,
                 w1a, w1b, w1c, w1d, b1,
                 w2, b2, w3, b3, wpb,
                 feat_ref, bias_ref):
    """distance_embed MLP + structure-mask + out_mlp (layer 1 as split-weight
    accumulation over [aapair|relpos|dist|dihed]) + pair-mask + fused
    proj_pair_bias for both GA layers, all in VMEM (the 122-wide row never
    hits HBM)."""
    m = mask_ref[...]
    smask = m[:, 0:1].astype(jnp.float32)
    pmask = m[:, 1:2].astype(jnp.float32)

    # distance_embed: Linear -> ReLU -> Linear -> ReLU
    h = jnp.maximum(jnp.dot(dgm_ref[...], wd1[...],
                            preferred_element_type=jnp.float32) + bd1[...], 0.0)
    h = jnp.maximum(jnp.dot(h.astype(jnp.bfloat16), wd2[...],
                            preferred_element_type=jnp.float32) + bd2[...], 0.0)
    feat_dist = (h * smask).astype(jnp.bfloat16)
    feat_dihed = (dih_ref[...].astype(jnp.float32) * smask).astype(jnp.bfloat16)

    # out_mlp layer 1: split-weight accumulation (no lane concat of 32/32/32/26)
    acc = (jnp.dot(aap_ref[...], w1a[...], preferred_element_type=jnp.float32)
           + jnp.dot(rel_ref[...], w1b[...], preferred_element_type=jnp.float32)
           + jnp.dot(feat_dist, w1c[...], preferred_element_type=jnp.float32)
           + jnp.dot(feat_dihed, w1d[...], preferred_element_type=jnp.float32)
           + b1[...])
    h = jnp.maximum(acc, 0.0).astype(jnp.bfloat16)
    h = jnp.maximum(jnp.dot(h, w2[...], preferred_element_type=jnp.float32)
                    + b2[...], 0.0).astype(jnp.bfloat16)
    h = jnp.dot(h, w3[...], preferred_element_type=jnp.float32) + b3[...]

    z = h * pmask                                    # (tile, 32) f32, masked pair feat
    feat_ref[...] = z.astype(feat_ref.dtype)
    bias_ref[...] = jnp.dot(z.astype(jnp.bfloat16), wpb[...],
                            preferred_element_type=jnp.float32).astype(bias_ref.dtype)


def pallas_pair_block(aap, rel, dgm, dih, masks, dist_layers, out_layers,
                      w_pair_bias, max_tile=1024):
    """Returns (pair_feat bf16 (R,32), pair_bias f32 (R, 2*GA_HEADS))."""
    R = aap.shape[0]
    tile, Rpad, grid = _plan_rows(R, max_tile=max_tile)

    def prep(x, dt):
        x = x.astype(dt)
        return x if Rpad == R else jnp.pad(x, ((0, Rpad - R), (0, 0)))

    row_ins = [prep(aap, jnp.bfloat16), prep(rel, jnp.bfloat16),
               prep(dgm, jnp.bfloat16), prep(dih, jnp.bfloat16),
               prep(masks, jnp.bfloat16)]
    ins = list(row_ins)
    in_specs = [pl.BlockSpec((tile, a.shape[1]), lambda i: (i, 0)) for a in row_ins]

    def add_w(W, b=None):
        Wb = W.astype(jnp.bfloat16)
        ins.append(Wb)
        in_specs.append(pl.BlockSpec(Wb.shape, lambda i: (0, 0)))
        if b is not None:
            b2 = b.reshape(1, -1).astype(jnp.float32)
            ins.append(b2)
            in_specs.append(pl.BlockSpec(b2.shape, lambda i: (0, 0)))

    (Wd1, bd1), (Wd2, bd2) = dist_layers
    (W1, b1), (W2, b2), (W3, b3) = out_layers
    add_w(Wd1, bd1)
    add_w(Wd2, bd2)
    s0, s1, s2 = PAIR_FEAT_DIM, 2 * PAIR_FEAT_DIM, 3 * PAIR_FEAT_DIM
    add_w(W1[:s0])                 # aapair rows
    add_w(W1[s0:s1])               # relpos rows
    add_w(W1[s1:s2])               # dist rows
    add_w(W1[s2:], b1)             # dihed rows + bias (added once)
    add_w(W2, b2)
    add_w(W3, b3)
    add_w(w_pair_bias)             # fused proj_pair_bias for all GA layers

    nb = w_pair_bias.shape[1]
    out_shapes = [jax.ShapeDtypeStruct((Rpad, PAIR_FEAT_DIM), jnp.bfloat16),
                  jax.ShapeDtypeStruct((Rpad, nb), jnp.float32)]
    out_specs = [pl.BlockSpec((tile, PAIR_FEAT_DIM), lambda i: (i, 0)),
                 pl.BlockSpec((tile, nb), lambda i: (i, 0))]

    feat, bias = pl.pallas_call(
        _pair_kernel,
        out_shape=out_shapes,
        grid=(grid,),
        in_specs=in_specs,
        out_specs=out_specs,
        compiler_params=pltpu.CompilerParams(dimension_semantics=("parallel",)),
    )(*ins)
    return feat[:R], bias[:R]


def layer_norm(x, gb, eps=1e-5):
    g, b = gb
    mu = x.mean(-1, keepdims=True)
    var = ((x - mu) ** 2).mean(-1, keepdims=True)
    return (x - mu) / jnp.sqrt(var + eps) * g + b


# ============================== geometry =====================================
def normalize_vector(v, eps=1e-12):
    return v / (jnp.linalg.norm(v, axis=-1, keepdims=True) + eps)


def project_v2v(v, e):
    return (e * v).sum(-1, keepdims=True) * e


def construct_3d_basis(center, p1, p2):
    e1 = normalize_vector(p1 - center)
    v2 = p2 - center
    e2 = normalize_vector(v2 - project_v2v(v2, e1))
    e3 = jnp.cross(e1, e2)
    return jnp.stack([e1, e2, e3], axis=-1)          # (..., 3, 3), basis in columns


def local_to_global(R, t, p):
    shape = p.shape
    N, L = shape[0], shape[1]
    pf = p.reshape(N, L, -1, 3)
    q = jnp.einsum('nlij,nlmj->nlmi', R, pf) + t[:, :, None, :]
    return q.reshape(shape)


def global_to_local(R, t, q):
    shape = q.shape
    N, L = shape[0], shape[1]
    qf = q.reshape(N, L, -1, 3) - t[:, :, None, :]
    p = jnp.einsum('nlji,nlmj->nlmi', R, qf)
    return p.reshape(shape)


def quaternion_to_rotation_matrix(q):
    q = q / (jnp.linalg.norm(q, axis=-1, keepdims=True) + 1e-12)
    w, x, y, z = q[..., 0], q[..., 1], q[..., 2], q[..., 3]
    R = jnp.stack([
        1 - 2 * (y * y + z * z), 2 * (x * y - w * z), 2 * (x * z + w * y),
        2 * (x * y + w * z), 1 - 2 * (x * x + z * z), 2 * (y * z - w * x),
        2 * (x * z - w * y), 2 * (y * z + w * x), 1 - 2 * (x * x + y * y),
    ], axis=-1)
    return R.reshape(q.shape[:-1] + (3, 3))


def so3vec_to_rotation(v):
    theta = jnp.linalg.norm(v, axis=-1, keepdims=True)
    axis = v / (theta + 1e-8)
    q = jnp.concatenate([jnp.cos(theta / 2), jnp.sin(theta / 2) * axis], axis=-1)
    return quaternion_to_rotation_matrix(q)


def rotation_to_quaternion(M):
    m00, m01, m02 = M[..., 0, 0], M[..., 0, 1], M[..., 0, 2]
    m10, m11, m12 = M[..., 1, 0], M[..., 1, 1], M[..., 1, 2]
    m20, m21, m22 = M[..., 2, 0], M[..., 2, 1], M[..., 2, 2]
    q_abs = jnp.sqrt(jnp.maximum(jnp.stack([
        1.0 + m00 + m11 + m22,
        1.0 + m00 - m11 - m22,
        1.0 - m00 + m11 - m22,
        1.0 - m00 - m11 + m22], axis=-1), 0.0))
    quat_by_rijk = jnp.stack([
        jnp.stack([q_abs[..., 0] ** 2, m21 - m12, m02 - m20, m10 - m01], -1),
        jnp.stack([m21 - m12, q_abs[..., 1] ** 2, m10 + m01, m02 + m20], -1),
        jnp.stack([m02 - m20, m10 + m01, q_abs[..., 2] ** 2, m12 + m21], -1),
        jnp.stack([m10 - m01, m02 + m20, m12 + m21, q_abs[..., 3] ** 2], -1),
    ], axis=-2)
    quat_candidates = quat_by_rijk / (2.0 * jnp.maximum(q_abs[..., None], 0.1))
    onehot = jax.nn.one_hot(jnp.argmax(q_abs, axis=-1), 4)
    return (quat_candidates * onehot[..., None]).sum(axis=-2)


def rotation_to_so3vec(R):
    q = rotation_to_quaternion(R)
    theta = 2.0 * jnp.arctan2(jnp.linalg.norm(q[..., 1:], axis=-1), q[..., 0])
    axis = q[..., 1:] / (jnp.linalg.norm(q[..., 1:], axis=-1, keepdims=True) + 1e-8)
    return theta[..., None] * axis


def quaternion_1ijk_to_rotation_matrix(q):
    b, c, d = q[..., 0], q[..., 1], q[..., 2]
    s = jnp.sqrt(1 + b ** 2 + c ** 2 + d ** 2)
    a, b, c, d = 1 / s, b / s, c / s, d / s
    o = jnp.stack([
        a ** 2 + b ** 2 - c ** 2 - d ** 2, 2 * b * c - 2 * a * d, 2 * b * d + 2 * a * c,
        2 * b * c + 2 * a * d, a ** 2 - b ** 2 + c ** 2 - d ** 2, 2 * c * d - 2 * a * b,
        2 * b * d - 2 * a * c, 2 * c * d + 2 * a * b, a ** 2 - b ** 2 - c ** 2 + d ** 2,
    ], axis=-1)
    return o.reshape(q.shape[:-1] + (3, 3))


def rotation_matrix_cosine_loss(R_pred, R_true):
    a = jnp.swapaxes(R_pred, -1, -2)
    b = jnp.swapaxes(R_true, -1, -2)
    dot = (a * b).sum(-1)
    cos = dot / jnp.maximum(jnp.linalg.norm(a, axis=-1) * jnp.linalg.norm(b, axis=-1), 1e-8)
    return (1.0 - cos).sum(-1)


# dihedral angles ------------------------------------------------------------
def dihedral_from_four_points(p0, p1, p2, p3):
    v0 = p2 - p1
    v1 = p0 - p1
    v2 = p3 - p2
    u1 = jnp.cross(v0, v1)
    n1 = u1 / jnp.linalg.norm(u1, axis=-1, keepdims=True)
    u2 = jnp.cross(v0, v2)
    n2 = u2 / jnp.linalg.norm(u2, axis=-1, keepdims=True)
    sgn = jnp.sign((jnp.cross(v1, v2) * v0).sum(-1))
    dihed = sgn * jnp.arccos(jnp.clip((n1 * n2).sum(-1), -0.999999, 0.999999))
    return jnp.nan_to_num(dihed)


def get_consecutive_flag(chain_nb, res_nb, mask):
    d_res = jnp.abs(res_nb[:, 1:] - res_nb[:, :-1])
    same_chain = chain_nb[:, 1:] == chain_nb[:, :-1]
    return (d_res == 1) & same_chain & mask[:, :-1] & mask[:, 1:]


def get_terminus_flag(chain_nb, res_nb, mask):
    consec = get_consecutive_flag(chain_nb, res_nb, mask)
    n_term = jnp.pad(~consec, ((0, 0), (1, 0)), constant_values=True)
    c_term = jnp.pad(~consec, ((0, 0), (0, 1)), constant_values=True)
    return n_term, c_term


def get_backbone_dihedral_angles(pos_atoms, chain_nb, res_nb, mask):
    pos_N, pos_CA, pos_C = pos_atoms[:, :, BB_N], pos_atoms[:, :, BB_CA], pos_atoms[:, :, BB_C]
    n_term, c_term = get_terminus_flag(chain_nb, res_nb, mask)
    omega = jnp.pad(dihedral_from_four_points(pos_CA[:, :-1], pos_C[:, :-1], pos_N[:, 1:], pos_CA[:, 1:]),
                    ((0, 0), (1, 0)))
    phi = jnp.pad(dihedral_from_four_points(pos_C[:, :-1], pos_N[:, 1:], pos_CA[:, 1:], pos_C[:, 1:]),
                  ((0, 0), (1, 0)))
    psi = jnp.pad(dihedral_from_four_points(pos_N[:, :-1], pos_CA[:, :-1], pos_C[:, :-1], pos_N[:, 1:]),
                  ((0, 0), (0, 1)))
    mask_bb_dihed = jnp.stack([~n_term, ~n_term, ~c_term], axis=-1)
    bb_dihedral = jnp.stack([omega, phi, psi], axis=-1) * mask_bb_dihed
    return bb_dihedral, mask_bb_dihed


def pairwise_dihedrals(pos_atoms):
    N, L = pos_atoms.shape[:2]
    pos_N, pos_CA, pos_C = pos_atoms[:, :, BB_N], pos_atoms[:, :, BB_CA], pos_atoms[:, :, BB_C]
    b = lambda x: jnp.broadcast_to(x, (N, L, L, 3))
    ir_phi = dihedral_from_four_points(b(pos_C[:, :, None]), b(pos_N[:, None, :]),
                                       b(pos_CA[:, None, :]), b(pos_C[:, None, :]))
    ir_psi = dihedral_from_four_points(b(pos_N[:, :, None]), b(pos_CA[:, None, :]),
                                       b(pos_C[:, None, :]), b(pos_N[:, None, :]))
    return jnp.stack([ir_phi, ir_psi], axis=-1)


FREQ_BANDS = jnp.array([1.0, 2.0, 3.0, 1.0, 1.0 / 2.0, 1.0 / 3.0], jnp.float32)


def angular_encoding(x):
    shape = x.shape[:-1] + (-1,)
    xe = x[..., None]
    code = jnp.concatenate([xe, jnp.sin(xe * FREQ_BANDS), jnp.cos(xe * FREQ_BANDS)], axis=-1)
    return code.reshape(shape)


# ============================ embeddings =====================================
def residue_embedding(p, aa, res_nb, chain_nb, pos_atoms, mask_atoms, fragment_type,
                      structure_mask, sequence_mask):
    N, L = aa.shape
    mask_residue = mask_atoms[:, :, BB_CA]
    pos_atoms = pos_atoms[:, :, :NUM_ATOMS]
    mask_atoms = mask_atoms[:, :, :NUM_ATOMS]

    if sequence_mask is not None:
        aa = jnp.where(sequence_mask, aa, AA_UNK)
    aa_feat = p['aatype_embed'][aa]

    R = construct_3d_basis(pos_atoms[:, :, BB_CA], pos_atoms[:, :, BB_C], pos_atoms[:, :, BB_N])
    t = pos_atoms[:, :, BB_CA]
    crd = global_to_local(R, t, pos_atoms)
    crd = jnp.where(mask_atoms[..., None], crd, 0.0)

    place = (aa[:, :, None] == jnp.arange(MAX_AA_TYPES)[None, None, :])
    crd_expand = jnp.where(place[:, :, :, None, None], crd[:, :, None, :, :], 0.0)
    crd_feat = crd_expand.reshape(N, L, MAX_AA_TYPES * NUM_ATOMS * 3)
    if structure_mask is not None:
        crd_feat = crd_feat * structure_mask[:, :, None]

    bb_dihedral, mask_bb_dihed = get_backbone_dihedral_angles(pos_atoms, chain_nb, res_nb, mask_residue)
    dihed_feat = (angular_encoding(bb_dihedral[..., None]) * mask_bb_dihed[..., None]).reshape(N, L, -1)
    if structure_mask is not None:
        dihed_mask = structure_mask & jnp.roll(structure_mask, 1, axis=1) & jnp.roll(structure_mask, -1, axis=1)
        dihed_feat = dihed_feat * dihed_mask[:, :, None]

    type_feat = p['type_embed'][fragment_type]

    in_feat = jnp.concatenate([aa_feat, crd_feat, dihed_feat, type_feat], axis=-1)
    out = pallas_mlp(in_feat.reshape(N * L, -1), p['mlp'], [True, True, True, False]).reshape(N, L, RES_FEAT_DIM)
    return out * mask_residue[..., None]


def pair_embedding(p, aa, res_nb, chain_nb, pos_atoms, mask_atoms, structure_mask,
                   sequence_mask, w_pair_bias):
    N, L = aa.shape
    pos_atoms = pos_atoms[:, :, :NUM_ATOMS]
    mask_atoms = mask_atoms[:, :, :NUM_ATOMS]
    mask_residue = mask_atoms[:, :, BB_CA]
    mask_pair = mask_residue[:, :, None] & mask_residue[:, None, :]
    if structure_mask is not None:
        pair_structure_mask = (structure_mask[:, :, None] & structure_mask[:, None, :]).astype(jnp.float32)
    else:
        pair_structure_mask = jnp.ones((N, L, L), jnp.float32)

    if sequence_mask is not None:
        aa = jnp.where(sequence_mask, aa, AA_UNK)
    aa_pair = aa[:, :, None] * MAX_AA_TYPES + aa[:, None, :]
    feat_aapair = p['aa_pair_embed'][aa_pair]

    same_chain = chain_nb[:, :, None] == chain_nb[:, None, :]
    relpos = jnp.clip(res_nb[:, :, None] - res_nb[:, None, :], -MAX_RELPOS, MAX_RELPOS)
    feat_relpos = p['relpos_embed'][relpos + MAX_RELPOS] * same_chain[..., None]

    # Squared atom-pair distances via |x|^2+|y|^2-2x.y (no (N,L,L,5,5,3) broadcast, no sqrt).
    sq = (pos_atoms ** 2).sum(-1)                                        # (N,L,A)
    cross = jnp.einsum('niac,njbc->nijab', pos_atoms, pos_atoms)         # (N,L,L,A,A)
    d2 = sq[:, :, None, :, None] + sq[:, None, :, None, :] - 2.0 * cross
    d2 = jnp.maximum(d2, 0.0).reshape(N, L, L, -1) / 100.0               # = (d/10)^2
    c = jax.nn.softplus(p['aapair_to_distcoef'][aa_pair])
    d_gauss = jnp.exp(-c * d2)
    mask_atom_pair = (mask_atoms[:, :, None, :, None] & mask_atoms[:, None, :, None, :]).reshape(N, L, L, -1)
    dgm = d_gauss * mask_atom_pair

    dihed = pairwise_dihedrals(pos_atoms)
    feat_dihed = angular_encoding(dihed)

    # Fused kernel: distance_embed MLP, structure mask, out_mlp (split-weight
    # layer 1), pair mask AND the proj_pair_bias of all GA layers -> the
    # (N,L,L,122) row never hits HBM and no extra pass over pair_feat is needed.
    Rrows = N * L * L
    masks = jnp.stack([pair_structure_mask.reshape(Rrows),
                       mask_pair.astype(jnp.float32).reshape(Rrows)], axis=-1)
    feat, bias = pallas_pair_block(
        feat_aapair.reshape(Rrows, -1),
        feat_relpos.reshape(Rrows, -1),
        dgm.reshape(Rrows, -1),
        feat_dihed.reshape(Rrows, -1),
        masks,
        p['distance_embed'], p['out_mlp'], w_pair_bias)
    return (feat.reshape(N, L, L, PAIR_FEAT_DIM),
            bias.reshape(N, L, L, NUM_GA_LAYERS * GA_HEADS))


# ============================ GA encoder =====================================
def alpha_from_logits(logits, mask, inf=1e5):
    mask_row = mask[:, :, None, None]
    mask_pair = mask_row & mask[:, None, :, None]
    logits = jnp.where(mask_pair, logits, logits - inf)
    alpha = jax.nn.softmax(logits, axis=2)
    return mask_row * alpha


def ga_block(bp, R, t, x, z, logits_pair, mask):
    N, L, _ = x.shape

    # Six bias-free node projections fused into one pallas_call (shared input,
    # one matmul per branch, one bf16 output per branch -> no concat/slice).
    zeros = lambda d: jnp.zeros((d,), jnp.float32)
    branches = [
        ([(bp['proj_query'][0], zeros(GA_HEADS * GA_QK))], [False]),
        ([(bp['proj_key'][0], zeros(GA_HEADS * GA_QK))], [False]),
        ([(bp['proj_value'][0], zeros(GA_HEADS * GA_V))], [False]),
        ([(bp['proj_query_point'][0], zeros(GA_HEADS * GA_QP * 3))], [False]),
        ([(bp['proj_key_point'][0], zeros(GA_HEADS * GA_QP * 3))], [False]),
        ([(bp['proj_value_point'][0], zeros(GA_HEADS * GA_VP * 3))], [False]),
    ]
    q2, k2, v2, qp_l, kp_l, vp_l = pallas_mlp_heads(
        x.reshape(N * L, -1), branches, out_dtypes=[jnp.bfloat16] * 6)
    q = q2.reshape(N, L, GA_HEADS, GA_QK)
    k = k2.reshape(N, L, GA_HEADS, GA_QK)
    v = v2.reshape(N, L, GA_HEADS, GA_V)

    # diffab scales the node logits by 1/sqrt(query_key_dim).
    logits_node = jnp.einsum('nihc,njhc->nijh', q, k,
                             preferred_element_type=jnp.float32) / math.sqrt(GA_QK)

    qp = local_to_global(R, t, qp_l.reshape(N, L, GA_HEADS * GA_QP, 3)).reshape(N, L, GA_HEADS, GA_QP * 3)
    kp = local_to_global(R, t, kp_l.reshape(N, L, GA_HEADS * GA_QP, 3)).reshape(N, L, GA_HEADS, GA_QP * 3)
    # |qp_i - kp_j|^2 expanded -> avoids materializing (N,L,L,H,12).
    qp_sq = (qp * qp).sum(-1)
    kp_sq = (kp * kp).sum(-1)
    sum_sq = qp_sq[:, :, None, :] + kp_sq[:, None, :, :] - 2.0 * jnp.einsum('nihc,njhc->nijh', qp, kp)
    gamma = jax.nn.softplus(bp['spatial_coef'])
    logits_spatial = sum_sq * ((-gamma * math.sqrt(2.0 / (9.0 * GA_QP))) / 2.0)

    alpha = alpha_from_logits((logits_node + logits_pair + logits_spatial) * math.sqrt(1.0 / 3.0), mask)

    # Aggregations as contractions (no (N,L,L,H,C) broadcast intermediates).
    feat_p2n = jnp.einsum('nijh,nijc->nihc', alpha, z,
                          preferred_element_type=jnp.float32).reshape(N, L, -1)
    feat_node = jnp.einsum('nijh,njhc->nihc', alpha, v,
                           preferred_element_type=jnp.float32).reshape(N, L, -1)

    vp = local_to_global(R, t, vp_l.reshape(N, L, GA_HEADS, GA_VP, 3))
    aggr = jnp.einsum('nijh,njhpc->nihpc', alpha, vp)
    feat_points = global_to_local(R, t, aggr)
    feat_dist = jnp.linalg.norm(feat_points, axis=-1)
    feat_dir = feat_points / (jnp.linalg.norm(feat_points, axis=-1, keepdims=True) + 1e-4)
    feat_spatial = jnp.concatenate([feat_points.reshape(N, L, -1),
                                    feat_dist.reshape(N, L, -1),
                                    feat_dir.reshape(N, L, -1)], axis=-1)

    feat_all_in = jnp.concatenate([feat_p2n, feat_node, feat_spatial], axis=-1)
    feat_all = pallas_mlp(feat_all_in.reshape(N * L, -1), [bp['out_transform']], [False]).reshape(N, L, -1)
    feat_all = jnp.where(mask[..., None], feat_all, 0.0)
    x1 = layer_norm(x + feat_all, bp['ln1'])
    mlp_out = pallas_mlp(x1.reshape(N * L, -1), bp['mlp_transition'], [True, True, False]).reshape(N, L, -1)
    return layer_norm(x1 + mlp_out, bp['ln2'])


def epsilon_net(p, v_t, p_t, s_t, res_feat, pair_feat, pair_bias, beta, mask_generate, mask_res):
    N, L = mask_res.shape
    R = so3vec_to_rotation(v_t)
    seq_emb = p['current_sequence_embedding'][s_t]
    mix_in = jnp.concatenate([res_feat, seq_emb], axis=-1)
    res_feat = pallas_mlp(mix_in.reshape(N * L, -1), p['res_feat_mixer'], [True, False]).reshape(N, L, -1)

    # pair_bias for BOTH GA layers was computed by the fused pair kernel.
    for li, bp in enumerate(p['encoder']):
        lp = pair_bias[..., li * GA_HEADS:(li + 1) * GA_HEADS]
        res_feat = ga_block(bp, R, p_t, res_feat, pair_feat, lp, mask_res)

    t_embed = jnp.broadcast_to(jnp.stack([beta, jnp.sin(beta), jnp.cos(beta)], axis=-1)[:, None, :], (N, L, 3))
    in_feat = jnp.concatenate([res_feat, t_embed], axis=-1)
    flat = in_feat.reshape(N * L, -1)

    # Three eps heads fused into a single pallas_call (shared input, one
    # output per head -> no concat/slice round trip).
    eps_crd, eps_rot, c_logits = pallas_mlp_heads(flat, [
        (p['eps_crd_net'], [True, True, False]),
        (p['eps_rot_net'], [True, True, False]),
        (p['eps_seq_net'], [True, True, False]),
    ])
    eps_crd = eps_crd.reshape(N, L, 3)
    eps_rot = eps_rot.reshape(N, L, 3)
    c_logits = c_logits.reshape(N, L, SEQ_CLASSES)

    eps_pos = jnp.einsum('nlij,nlj->nli', R, eps_crd)
    eps_pos = jnp.where(mask_generate[..., None], eps_pos, 0.0)

    U = quaternion_1ijk_to_rotation_matrix(eps_rot)
    R_next = jnp.matmul(R, U)
    v_next = rotation_to_so3vec(R_next)
    v_next = jnp.where(mask_generate[..., None], v_next, v_t)

    c_denoised = jax.nn.softmax(c_logits, axis=-1)
    return v_next, R_next, eps_pos, c_denoised


# ============================ diffusion ======================================
def variance_schedule(num_steps=100, s=0.01):
    T = num_steps
    tt = jnp.arange(0, num_steps + 1, dtype=jnp.float32)
    f_t = jnp.cos((jnp.pi / 2.0) * ((tt / T) + s) / (1 + s)) ** 2
    alpha_bars = f_t / f_t[0]
    betas = jnp.minimum(jnp.concatenate([jnp.zeros((1,)), 1.0 - alpha_bars[1:] / alpha_bars[:-1]]), 0.999)
    alphas = 1.0 - betas
    sigmas = jnp.sqrt(jnp.concatenate([jnp.zeros((1,)),
                                       ((1.0 - alpha_bars[:-1]) / (1.0 - alpha_bars[1:])) * betas[1:]]))
    return betas, alphas, alpha_bars, sigmas


def clamped_one_hot(x, num_classes):
    valid = (x >= 0) & (x < num_classes)
    x = jnp.clip(x, 0, num_classes - 1)
    return jax.nn.one_hot(x, num_classes) * valid[..., None]


def seq_add_noise(alpha_bars, s_0, mask_generate, t, key, K=SEQ_CLASSES):
    c_0 = clamped_one_hot(s_0, K)
    ab = alpha_bars[t][:, None, None]
    c_noisy = ab * c_0 + (1.0 - ab) / K
    c_t = jnp.where(mask_generate[..., None], c_noisy, c_0)
    x_t = jax.random.categorical(key, jnp.log(c_t + 1e-8), axis=-1)
    return c_t, x_t


def seq_posterior(alphas, alpha_bars, x_t, x_0, t, K=SEQ_CLASSES):
    c_t = x_t if x_t.ndim == 3 else clamped_one_hot(x_t, K)
    c_0 = x_0 if x_0.ndim == 3 else clamped_one_hot(x_0, K)
    a = alphas[t][:, None, None]
    ab = alpha_bars[t][:, None, None]
    theta = (a * c_t + (1.0 - a) / K) * (ab * c_0 + (1.0 - ab) / K)
    return theta / (theta.sum(-1, keepdims=True) + 1e-8)


def full_dpm_forward(params, v_0, p_0, s_0, res_feat, pair_feat, pair_bias,
                     mask_generate, mask_res, rng):
    N, L = res_feat.shape[:2]
    sched = params['sched']
    k_t, k_pos, k_seq = jax.random.split(rng, 3)
    t = jax.random.randint(k_t, (N,), 0, NUM_STEPS)
    p_0 = (p_0 - params['position_mean']) / params['position_scale']

    R_0 = so3vec_to_rotation(v_0)
    # TODO(synk): RotationTransition.add_noise needs the IGSO(3) ApproxAngularDistribution
    # sampler (histogram-based); it has no clean equivalent here, so rotations pass through un-noised.
    v_noisy = v_0

    alpha_bar = sched['alpha_bars'][t]
    c0 = jnp.sqrt(alpha_bar)[:, None, None]
    c1 = jnp.sqrt(1.0 - alpha_bar)[:, None, None]
    e_rand = jax.random.normal(k_pos, p_0.shape, jnp.float32)
    p_noisy = jnp.where(mask_generate[..., None], c0 * p_0 + c1 * e_rand, p_0)
    eps_p = e_rand

    _, s_noisy = seq_add_noise(sched['alpha_bars'], s_0, mask_generate, t, k_seq)

    beta = sched['betas'][t]
    v_pred, R_pred, eps_p_pred, c_denoised = epsilon_net(
        params['eps_net'], v_noisy, p_noisy, s_noisy, res_feat, pair_feat, pair_bias,
        beta, mask_generate, mask_res)

    denom = mask_generate.astype(jnp.float32).sum() + 1e-8
    loss_rot = (rotation_matrix_cosine_loss(R_pred, R_0) * mask_generate).sum() / denom
    loss_pos = (((eps_p_pred - eps_p) ** 2).sum(-1) * mask_generate).sum() / denom

    post_true = seq_posterior(sched['alphas'], sched['alpha_bars'], s_noisy, s_0, t)
    post_pred = seq_posterior(sched['alphas'], sched['alpha_bars'],
                              clamped_one_hot(s_noisy, SEQ_CLASSES), c_denoised, t)
    log_post_pred = jnp.log(post_pred + 1e-8)
    kldiv = (jax.scipy.special.xlogy(post_true, post_true) - post_true * log_post_pred).sum(-1)
    loss_seq = (kldiv * mask_generate).sum() / denom
    return {'rot': loss_rot, 'pos': loss_pos, 'seq': loss_seq}


# ============================ model ==========================================
def encode(params, batch, remove_structure=True, remove_sequence=True):
    context_mask = batch['mask_heavyatom'][:, :, BB_CA] & (~batch['generate_flag'])
    structure_mask = context_mask if remove_structure else None
    sequence_mask = context_mask if remove_sequence else None
    res_feat = residue_embedding(params['res_embed'], batch['aa'], batch['res_nb'], batch['chain_nb'],
                                 batch['pos_heavyatom'], batch['mask_heavyatom'], batch['fragment_type'],
                                 structure_mask, sequence_mask)
    # Fuse the (layer-invariant) proj_pair_bias of every GA layer into the pair kernel.
    w_pair_bias = jnp.concatenate(
        [bp['proj_pair_bias'][0] for bp in params['eps_net']['encoder']], axis=1)
    pair_feat, pair_bias = pair_embedding(params['pair_embed'], batch['aa'], batch['res_nb'],
                                          batch['chain_nb'], batch['pos_heavyatom'],
                                          batch['mask_heavyatom'],
                                          structure_mask, sequence_mask, w_pair_bias)
    # NOTE: atom order (CA, N, C) follows this module's spec (AlphaPanda variant of
    # DiffusionAntibodyDesign.encode); upstream diffab uses (CA, C, N).
    R = construct_3d_basis(batch['pos_heavyatom'][:, :, BB_CA],
                           batch['pos_heavyatom'][:, :, BB_N],
                           batch['pos_heavyatom'][:, :, BB_C])
    p = batch['pos_heavyatom'][:, :, BB_CA]
    return res_feat, pair_feat, pair_bias, R, p


def diffab_forward(params, batch, rng):
    mask_generate = batch['generate_flag']
    mask_res = batch['mask']
    res_feat, pair_feat, pair_bias, R_0, p_0 = encode(params, batch, True, True)
    v_0 = rotation_to_so3vec(R_0)
    s_0 = batch['aa']
    return full_dpm_forward(params, v_0, p_0, s_0, res_feat, pair_feat, pair_bias,
                            mask_generate, mask_res, rng)


# ============================ parameter init =================================
def linear_init(key, din, dout, bias=True):
    k1, k2 = jax.random.split(key)
    lim = 1.0 / math.sqrt(din)
    W = jax.random.uniform(k1, (din, dout), jnp.float32, -lim, lim)
    b = (jax.random.uniform(k2, (dout,), jnp.float32, -lim, lim)
         if bias else jnp.zeros((dout,), jnp.float32))
    return (W, b)


def init_params(key):
    keys = iter(jax.random.split(key, 128))
    nk = lambda: next(keys)

    dihed_dim = 3 * (1 + 2 * 2 * 3)
    res_in = RES_FEAT_DIM + MAX_AA_TYPES * NUM_ATOMS * 3 + dihed_dim + RES_FEAT_DIM
    res_embed = {
        'aatype_embed': jax.random.normal(nk(), (MAX_AA_TYPES, RES_FEAT_DIM)),
        'type_embed': jax.random.normal(nk(), (10, RES_FEAT_DIM)).at[0].set(0.0),  # padding_idx=0
        'mlp': [linear_init(nk(), res_in, RES_FEAT_DIM * 2),
                linear_init(nk(), RES_FEAT_DIM * 2, RES_FEAT_DIM),
                linear_init(nk(), RES_FEAT_DIM, RES_FEAT_DIM),
                linear_init(nk(), RES_FEAT_DIM, RES_FEAT_DIM)],
    }
    pair_dihed_dim = 2 * (1 + 2 * 2 * 3)
    pair_in = PAIR_FEAT_DIM * 3 + pair_dihed_dim
    pair_embed_p = {
        'aa_pair_embed': jax.random.normal(nk(), (MAX_AA_TYPES ** 2, PAIR_FEAT_DIM)),
        'relpos_embed': jax.random.normal(nk(), (2 * MAX_RELPOS + 1, PAIR_FEAT_DIM)),
        'aapair_to_distcoef': jnp.zeros((MAX_AA_TYPES ** 2, NUM_ATOMS ** 2)),      # zero-init
        'distance_embed': [linear_init(nk(), NUM_ATOMS ** 2, PAIR_FEAT_DIM),
                           linear_init(nk(), PAIR_FEAT_DIM, PAIR_FEAT_DIM)],
        'out_mlp': [linear_init(nk(), pair_in, PAIR_FEAT_DIM),
                    linear_init(nk(), PAIR_FEAT_DIM, PAIR_FEAT_DIM),
                    linear_init(nk(), PAIR_FEAT_DIM, PAIR_FEAT_DIM)],
    }
    out_in = GA_HEADS * PAIR_FEAT_DIM + GA_HEADS * GA_V + GA_HEADS * GA_VP * (3 + 3 + 1)
    ga_blocks = []
    for _ in range(NUM_GA_LAYERS):
        ga_blocks.append({
            'proj_query': linear_init(nk(), RES_FEAT_DIM, GA_QK * GA_HEADS, bias=False),
            'proj_key': linear_init(nk(), RES_FEAT_DIM, GA_QK * GA_HEADS, bias=False),
            'proj_value': linear_init(nk(), RES_FEAT_DIM, GA_V * GA_HEADS, bias=False),
            'proj_pair_bias': linear_init(nk(), PAIR_FEAT_DIM, GA_HEADS, bias=False),
            'spatial_coef': jnp.full((1, 1, 1, GA_HEADS), math.log(math.e - 1.0), jnp.float32),
            'proj_query_point': linear_init(nk(), RES_FEAT_DIM, GA_QP * GA_HEADS * 3, bias=False),
            'proj_key_point': linear_init(nk(), RES_FEAT_DIM, GA_QP * GA_HEADS * 3, bias=False),
            'proj_value_point': linear_init(nk(), RES_FEAT_DIM, GA_VP * GA_HEADS * 3, bias=False),
            'out_transform': linear_init(nk(), out_in, RES_FEAT_DIM),
            'ln1': (jnp.ones((RES_FEAT_DIM,)), jnp.zeros((RES_FEAT_DIM,))),
            'ln2': (jnp.ones((RES_FEAT_DIM,)), jnp.zeros((RES_FEAT_DIM,))),
            'mlp_transition': [linear_init(nk(), RES_FEAT_DIM, RES_FEAT_DIM),
                               linear_init(nk(), RES_FEAT_DIM, RES_FEAT_DIM),
                               linear_init(nk(), RES_FEAT_DIM, RES_FEAT_DIM)],
        })
    eps_net = {
        'current_sequence_embedding': jax.random.normal(nk(), (25, RES_FEAT_DIM)),
        'res_feat_mixer': [linear_init(nk(), RES_FEAT_DIM * 2, RES_FEAT_DIM),
                           linear_init(nk(), RES_FEAT_DIM, RES_FEAT_DIM)],
        'encoder': ga_blocks,
        'eps_crd_net': [linear_init(nk(), RES_FEAT_DIM + 3, RES_FEAT_DIM),
                        linear_init(nk(), RES_FEAT_DIM, RES_FEAT_DIM),
                        linear_init(nk(), RES_FEAT_DIM, 3)],
        'eps_rot_net': [linear_init(nk(), RES_FEAT_DIM + 3, RES_FEAT_DIM),
                        linear_init(nk(), RES_FEAT_DIM, RES_FEAT_DIM),
                        linear_init(nk(), RES_FEAT_DIM, 3)],
        'eps_seq_net': [linear_init(nk(), RES_FEAT_DIM + 3, RES_FEAT_DIM),
                        linear_init(nk(), RES_FEAT_DIM, RES_FEAT_DIM),
                        linear_init(nk(), RES_FEAT_DIM, SEQ_CLASSES)],
    }
    betas, alphas, alpha_bars, sigmas = variance_schedule(NUM_STEPS)
    return {
        'res_embed': res_embed,
        'pair_embed': pair_embed_p,
        'eps_net': eps_net,
        'sched': {'betas': betas, 'alphas': alphas, 'alpha_bars': alpha_bars, 'sigmas': sigmas},
        'position_mean': jnp.zeros((1, 1, 1)),
        'position_scale': jnp.full((1, 1, 1), 10.0),
    }


# ================================ main =======================================
if __name__ == "__main__":
    params = init_params(jax.random.PRNGKey(42))

    N, L = 2, 8
    ks = jax.random.split(jax.random.PRNGKey(0), 8)
    batch = {
        'aa': jax.random.randint(ks[0], (N, L), 0, 20),
        'res_nb': jnp.tile(jnp.arange(1, L + 1, dtype=jnp.int32)[None, :], (N, 1)),
        'chain_nb': jnp.zeros((N, L), jnp.int32).at[:, L // 2:].set(1),
        'pos_heavyatom': 3.0 * jax.random.normal(ks[1], (N, L, NUM_ATOMS, 3), jnp.float32),
        'mask_heavyatom': jnp.ones((N, L, NUM_ATOMS), bool),
        'fragment_type': jax.random.randint(ks[2], (N, L), 1, 4),
        'generate_flag': jnp.zeros((N, L), bool).at[:, 2:5].set(True),
        'mask': jnp.ones((N, L), bool),
    }

    fwd = jax.jit(diffab_forward)
    losses = fwd(params, batch, jax.random.PRNGKey(7))
    losses = jax.tree_util.tree_map(jax.block_until_ready, losses)
    assert all(bool(jnp.isfinite(v)) for v in losses.values())
    print("KERNEL_OK")
</pallas_src>

<mosaic_0001>
module attributes {stable_mosaic.version = 11 : i64} {
  func.func @_pair_kernel(%arg0: i32, %arg1: memref<64x32xbf16, #tpu.memory_space<vmem>>, %arg2: memref<64x32xbf16, #tpu.memory_space<vmem>>, %arg3: memref<64x25xbf16, #tpu.memory_space<vmem>>, %arg4: memref<64x26xbf16, #tpu.memory_space<vmem>>, %arg5: memref<64x2xbf16, #tpu.memory_space<vmem>>, %arg6: memref<25x32xbf16, #tpu.memory_space<vmem>>, %arg7: memref<1x32xf32, #tpu.memory_space<vmem>>, %arg8: memref<32x32xbf16, #tpu.memory_space<vmem>>, %arg9: memref<1x32xf32, #tpu.memory_space<vmem>>, %arg10: memref<32x32xbf16, #tpu.memory_space<vmem>>, %arg11: memref<32x32xbf16, #tpu.memory_space<vmem>>, %arg12: memref<32x32xbf16, #tpu.memory_space<vmem>>, %arg13: memref<26x32xbf16, #tpu.memory_space<vmem>>, %arg14: memref<1x32xf32, #tpu.memory_space<vmem>>, %arg15: memref<32x32xbf16, #tpu.memory_space<vmem>>, %arg16: memref<1x32xf32, #tpu.memory_space<vmem>>, %arg17: memref<32x32xbf16, #tpu.memory_space<vmem>>, %arg18: memref<1x32xf32, #tpu.memory_space<vmem>>, %arg19: memref<32x8xbf16, #tpu.memory_space<vmem>>, %arg20: memref<64x32xbf16, #tpu.memory_space<vmem>>, %arg21: memref<64x8xf32, #tpu.memory_space<vmem>>) attributes {dimension_semantics = [#tpu.dimension_semantics<parallel>], iteration_bounds = array<i64: 2>, scalar_prefetch = 0 : i64, scratch_operands = 0 : i64, tpu.core_type = #tpu.core_type<tc>, window_params = [{transform_indices = @transform_0, window_bounds = array<i64: 64, 32>}, {transform_indices = @transform_1, window_bounds = array<i64: 64, 32>}, {transform_indices = @transform_2, window_bounds = array<i64: 64, 25>}, {transform_indices = @transform_3, window_bounds = array<i64: 64, 26>}, {transform_indices = @transform_4, window_bounds = array<i64: 64, 2>}, {pipeline_mode = #tpu.pipeline_mode<synchronous>, transform_indices = @transform_5, window_bounds = array<i64: 25, 32>}, {pipeline_mode = #tpu.pipeline_mode<synchronous>, transform_indices = @transform_6, window_bounds = array<i64: 1, 32>}, {pipeline_mode = #tpu.pipeline_mode<synchronous>, transform_indices = @transform_7, window_bounds = array<i64: 32, 32>}, {pipeline_mode = #tpu.pipeline_mode<synchronous>, transform_indices = @transform_8, window_bounds = array<i64: 1, 32>}, {pipeline_mode = #tpu.pipeline_mode<synchronous>, transform_indices = @transform_9, window_bounds = array<i64: 32, 32>}, {pipeline_mode = #tpu.pipeline_mode<synchronous>, transform_indices = @transform_10, window_bounds = array<i64: 32, 32>}, {pipeline_mode = #tpu.pipeline_mode<synchronous>, transform_indices = @transform_11, window_bounds = array<i64: 32, 32>}, {pipeline_mode = #tpu.pipeline_mode<synchronous>, transform_indices = @transform_12, window_bounds = array<i64: 26, 32>}, {pipeline_mode = #tpu.pipeline_mode<synchronous>, transform_indices = @transform_13, window_bounds = array<i64: 1, 32>}, {pipeline_mode = #tpu.pipeline_mode<synchronous>, transform_indices = @transform_14, window_bounds = array<i64: 32, 32>}, {pipeline_mode = #tpu.pipeline_mode<synchronous>, transform_indices = @transform_15, window_bounds = array<i64: 1, 32>}, {pipeline_mode = #tpu.pipeline_mode<synchronous>, transform_indices = @transform_16, window_bounds = array<i64: 32, 32>}, {pipeline_mode = #tpu.pipeline_mode<synchronous>, transform_indices = @transform_17, window_bounds = array<i64: 1, 32>}, {pipeline_mode = #tpu.pipeline_mode<synchronous>, transform_indices = @transform_18, window_bounds = array<i64: 32, 8>}, {transform_indices = @transform_19, window_bounds = array<i64: 64, 32>}, {transform_indices = @transform_20, window_bounds = array<i64: 64, 8>}]} {
    %c0 = arith.constant 0 : index
    %c0_0 = arith.constant 0 : index
    %0 = vector.load %arg5[%c0, %c0_0] : memref<64x2xbf16, #tpu.memory_space<vmem>>, vector<64x2xbf16>
    %1 = vector.extract_strided_slice %0 {offsets = [0, 0], sizes = [64, 1], strides = [1, 1]} : vector<64x2xbf16> to vector<64x1xbf16>
    %2 = arith.extf %1 : vector<64x1xbf16> to vector<64x1xf32>
    %3 = vector.extract_strided_slice %0 {offsets = [0, 1], sizes = [64, 1], strides = [1, 1]} : vector<64x2xbf16> to vector<64x1xbf16>
    %4 = arith.extf %3 : vector<64x1xbf16> to vector<64x1xf32>
    %c0_1 = arith.constant 0 : index
    %c0_2 = arith.constant 0 : index
    %5 = vector.load %arg3[%c0_1, %c0_2] : memref<64x25xbf16, #tpu.memory_space<vmem>>, vector<64x25xbf16>
    %c0_3 = arith.constant 0 : index
    %c0_4 = arith.constant 0 : index
    %6 = vector.load %arg6[%c0_3, %c0_4] : memref<25x32xbf16, #tpu.memory_space<vmem>>, vector<25x32xbf16>
    %cst = arith.constant dense<0.000000e+00> : vector<64x32xf32>
    %7 = tpu.matmul %5, %6, %cst {dimension_numbers = #tpu.dot_dimension_numbers<[1], [0], [0], [1], [0, 0, 1, 1], [], []>} : vector<64x25xbf16>, vector<25x32xbf16>, vector<64x32xf32> -> vector<64x32xf32>
    %c0_5 = arith.constant 0 : index
    %c0_6 = arith.constant 0 : index
    %8 = vector.load %arg7[%c0_5, %c0_6] : memref<1x32xf32, #tpu.memory_space<vmem>>, vector<1x32xf32>
    %9 = vector.broadcast %8 : vector<1x32xf32> to vector<64x32xf32>
    %10 = arith.addf %7, %9 : vector<64x32xf32>
    %cst_7 = arith.constant 0.000000e+00 : f32
    %11 = vector.broadcast %cst_7 : f32 to vector<64x32xf32>
    %12 = arith.maximumf %10, %11 : vector<64x32xf32>
    %13 = arith.truncf %12 : vector<64x32xf32> to vector<64x32xbf16>
    %c0_8 = arith.constant 0 : index
    %c0_9 = arith.constant 0 : index
    %14 = vector.load %arg8[%c0_8, %c0_9] : memref<32x32xbf16, #tpu.memory_space<vmem>>, vector<32x32xbf16>
    %cst_10 = arith.constant dense<0.000000e+00> : vector<64x32xf32>
    %15 = tpu.matmul %13, %14, %cst_10 {dimension_numbers = #tpu.dot_dimension_numbers<[1], [0], [0], [1], [0, 0, 1, 1], [], []>} : vector<64x32xbf16>, vector<32x32xbf16>, vector<64x32xf32> -> vector<64x32xf32>
    %c0_11 = arith.constant 0 : index
    %c0_12 = arith.constant 0 : index
    %16 = vector.load %arg9[%c0_11, %c0_12] : memref<1x32xf32, #tpu.memory_space<vmem>>, vector<1x32xf32>
    %17 = vector.broadcast %16 : vector<1x32xf32> to vector<64x32xf32>
    %18 = arith.addf %15, %17 : vector<64x32xf32>
    %cst_13 = arith.constant 0.000000e+00 : f32
    %19 = vector.broadcast %cst_13 : f32 to vector<64x32xf32>
    %20 = arith.maximumf %18, %19 : vector<64x32xf32>
    %21 = vector.broadcast %2 : vector<64x1xf32> to vector<64x32xf32>
    %22 = arith.mulf %20, %21 : vector<64x32xf32>
    %23 = arith.truncf %22 : vector<64x32xf32> to vector<64x32xbf16>
    %c0_14 = arith.constant 0 : index
    %c0_15 = arith.constant 0 : index
    %24 = vector.load %arg4[%c0_14, %c0_15] : memref<64x26xbf16, #tpu.memory_space<vmem>>, vector<64x26xbf16>
    %25 = arith.extf %24 : vector<64x26xbf16> to vector<64x26xf32>
    %26 = vector.broadcast %2 : vector<64x1xf32> to vector<64x26xf32>
    %27 = arith.mulf %25, %26 : vector<64x26xf32>
    %28 = arith.truncf %27 : vector<64x26xf32> to vector<64x26xbf16>
    %c0_16 = arith.constant 0 : index
    %c0_17 = arith.constant 0 : index
    %29 = vector.load %arg1[%c0_16, %c0_17] : memref<64x32xbf16, #tpu.memory_space<vmem>>, vector<64x32xbf16>
    %c0_18 = arith.constant 0 : index
    %c0_19 = arith.constant 0 : index
    %30 = vector.load %arg10[%c0_18, %c0_19] : memref<32x32xbf16, #tpu.memory_space<vmem>>, vector<32x32xbf16>
    %cst_20 = arith.constant dense<0.000000e+00> : vector<64x32xf32>
    %31 = tpu.matmul %29, %30, %cst_20 {dimension_numbers = #tpu.dot_dimension_numbers<[1], [0], [0], [1], [0, 0, 1, 1], [], []>} : vector<64x32xbf16>, vector<32x32xbf16>, vector<64x32xf32> -> vector<64x32xf32>
    %c0_21 = arith.constant 0 : index
    %c0_22 = arith.constant 0 : index
    %32 = vector.load %arg2[%c0_21, %c0_22] : memref<64x32xbf16, #tpu.memory_space<vmem>>, vector<64x32xbf16>
    %c0_23 = arith.constant 0 : index
    %c0_24 = arith.constant 0 : index
    %33 = vector.load %arg11[%c0_23, %c0_24] : memref<32x32xbf16, #tpu.memory_space<vmem>>, vector<32x32xbf16>
    %cst_25 = arith.constant dense<0.000000e+00> : vector<64x32xf32>
    %34 = tpu.matmul %32, %33, %cst_25 {dimension_numbers = #tpu.dot_dimension_numbers<[1], [0], [0], [1], [0, 0, 1, 1], [], []>} : vector<64x32xbf16>, vector<32x32xbf16>, vector<64x32xf32> -> vector<64x32xf32>
    %35 = arith.addf %31, %34 : vector<64x32xf32>
    %c0_26 = arith.constant 0 : index
    %c0_27 = arith.constant 0 : index
    %36 = vector.load %arg12[%c0_26, %c0_27] : memref<32x32xbf16, #tpu.memory_space<vmem>>, vector<32x32xbf16>
    %cst_28 = arith.constant dense<0.000000e+00> : vector<64x32xf32>
    %37 = tpu.matmul %23, %36, %cst_28 {dimension_numbers = #tpu.dot_dimension_numbers<[1], [0], [0], [1], [0, 0, 1, 1], [], []>} : vector<64x32xbf16>, vector<32x32xbf16>, vector<64x32xf32> -> vector<64x32xf32>
    %38 = arith.addf %35, %37 : vector<64x32xf32>
    %c0_29 = arith.constant 0 : index
    %c0_30 = arith.constant 0 : index
    %39 = vector.load %arg13[%c0_29, %c0_30] : memref<26x32xbf16, #tpu.memory_space<vmem>>, vector<26x32xbf16>
    %cst_31 = arith.constant dense<0.000000e+00> : vector<64x32xf32>
    %40 = tpu.matmul %28, %39, %cst_31 {dimension_numbers = #tpu.dot_dimension_numbers<[1], [0], [0], [1], [0, 0, 1, 1], [], []>} : vector<64x26xbf16>, vector<26x32xbf16>, vector<64x32xf32> -> vector<64x32xf32>
    %41 = arith.addf %38, %40 : vector<64x32xf32>
    %c0_32 = arith.constant 0 : index
    %c0_33 = arith.constant 0 : index
    %42 = vector.load %arg14[%c0_32, %c0_33] : memref<1x32xf32, #tpu.memory_space<vmem>>, vector<1x32xf32>
    %43 = vector.broadcast %42 : vector<1x32xf32> to vector<64x32xf32>
    %44 = arith.addf %41, %43 : vector<64x32xf32>
    %cst_34 = arith.constant 0.000000e+00 : f32
    %45 = vector.broadcast %cst_34 : f32 to vector<64x32xf32>
    %46 = arith.maximumf %44, %45 : vector<64x32xf32>
    %47 = arith.truncf %46 : vector<64x32xf32> to vector<64x32xbf16>
    %c0_35 = arith.constant 0 : index
    %c0_36 = arith.constant 0 : index
    %48 = vector.load %arg15[%c0_35, %c0_36] : memref<32x32xbf16, #tpu.memory_space<vmem>>, vector<32x32xbf16>
    %cst_37 = arith.constant dense<0.000000e+00> : vector<64x32xf32>
    %49 = tpu.matmul %47, %48, %cst_37 {dimension_numbers = #tpu.dot_dimension_numbers<[1], [0], [0], [1], [0, 0, 1, 1], [], []>} : vector<64x32xbf16>, vector<32x32xbf16>, vector<64x32xf32> -> vector<64x32xf32>
    %c0_38 = arith.constant 0 : index
    %c0_39 = arith.constant 0 : index
    %50 = vector.load %arg16[%c0_38, %c0_39] : memref<1x32xf32, #tpu.memory_space<vmem>>, vector<1x32xf32>
    %51 = vector.broadcast %50 : vector<1x32xf32> to vector<64x32xf32>
    %52 = arith.addf %49, %51 : vector<64x32xf32>
    %cst_40 = arith.constant 0.000000e+00 : f32
    %53 = vector.broadcast %cst_40 : f32 to vector<64x32xf32>
    %54 = arith.maximumf %52, %53 : vector<64x32xf32>
    %55 = arith.truncf %54 : vector<64x32xf32> to vector<64x32xbf16>
    %c0_41 = arith.constant 0 : index
    %c0_42 = arith.constant 0 : index
    %56 = vector.load %arg17[%c0_41, %c0_42] : memref<32x32xbf16, #tpu.memory_space<vmem>>, vector<32x32xbf16>
    %cst_43 = arith.constant dense<0.000000e+00> : vector<64x32xf32>
    %57 = tpu.matmul %55, %56, %cst_43 {dimension_numbers = #tpu.dot_dimension_numbers<[1], [0], [0], [1], [0, 0, 1, 1], [], []>} : vector<64x32xbf16>, vector<32x32xbf16>, vector<64x32xf32> -> vector<64x32xf32>
    %c0_44 = arith.constant 0 : index
    %c0_45 = arith.constant 0 : index
    %58 = vector.load %arg18[%c0_44, %c0_45] : memref<1x32xf32, #tpu.memory_space<vmem>>, vector<1x32xf32>
    %59 = vector.broadcast %58 : vector<1x32xf32> to vector<64x32xf32>
    %60 = arith.addf %57, %59 : vector<64x32xf32>
    %61 = vector.broadcast %4 : vector<64x1xf32> to vector<64x32xf32>
    %62 = arith.mulf %60, %61 : vector<64x32xf32>
    %63 = arith.truncf %62 : vector<64x32xf32> to vector<64x32xbf16>
    %c0_46 = arith.constant 0 : index
    %c0_47 = arith.constant 0 : index
    %64 = vector.load %arg20[%c0_46, %c0_47] : memref<64x32xbf16, #tpu.memory_space<vmem>>, vector<64x32xbf16>
    tpu.vector_store %arg20[%c0_46, %c0_47], %63 {strides = array<i32>} : memref<64x32xbf16, #tpu.memory_space<vmem>>, vector<64x32xbf16>,
    %65 = arith.truncf %62 : vector<64x32xf32> to vector<64x32xbf16>
    %c0_48 = arith.constant 0 : index
    %c0_49 = arith.constant 0 : index
    %66 = vector.load %arg19[%c0_48, %c0_49] : memref<32x8xbf16, #tpu.memory_space<vmem>>, vector<32x8xbf16>
    %cst_50 = arith.constant dense<0.000000e+00> : vector<64x8xf32>
    %67 = tpu.matmul %65, %66, %cst_50 {dimension_numbers = #tpu.dot_dimension_numbers<[1], [0], [0], [1], [0, 0, 1, 1], [], []>} : vector<64x32xbf16>, vector<32x8xbf16>, vector<64x8xf32> -> vector<64x8xf32>
    %c0_51 = arith.constant 0 : index
    %c0_52 = arith.constant 0 : index
    %68 = vector.load %arg21[%c0_51, %c0_52] : memref<64x8xf32, #tpu.memory_space<vmem>>, vector<64x8xf32>
    tpu.vector_store %arg21[%c0_51, %c0_52], %67 {strides = array<i32>} : memref<64x8xf32, #tpu.memory_space<vmem>>, vector<64x8xf32>,
    return
  }
  func.func @transform_0(%arg0: i32) -> (i32, i32) {
    %c0_i32 = arith.constant 0 : i32
    %c0_i32_0 = arith.constant 0 : i32
    return %arg0, %c0_i32 : i32, i32
  }
  func.func @transform_1(%arg0: i32) -> (i32, i32) {
    %c0_i32 = arith.constant 0 : i32
    %c0_i32_0 = arith.constant 0 : i32
    return %arg0, %c0_i32 : i32, i32
  }
  func.func @transform_2(%arg0: i32) -> (i32, i32) {
    %c0_i32 = arith.constant 0 : i32
    %c0_i32_0 = arith.constant 0 : i32
    return %arg0, %c0_i32 : i32, i32
  }
  func.func @transform_3(%arg0: i32) -> (i32, i32) {
    %c0_i32 = arith.constant 0 : i32
    %c0_i32_0 = arith.constant 0 : i32
    return %arg0, %c0_i32 : i32, i32
  }
  func.func @transform_4(%arg0: i32) -> (i32, i32) {
    %c0_i32 = arith.constant 0 : i32
    %c0_i32_0 = arith.constant 0 : i32
    return %arg0, %c0_i32 : i32, i32
  }
  func.func @transform_5(%arg0: i32) -> (i32, i32) {
    %c0_i32 = arith.constant 0 : i32
    %c0_i32_0 = arith.constant 0 : i32
    %c0_i32_1 = arith.constant 0 : i32
    return %c0_i32, %c0_i32_0 : i32, i32
  }
  func.func @transform_6(%arg0: i32) -> (i32, i32) {
    %c0_i32 = arith.constant 0 : i32
    %c0_i32_0 = arith.constant 0 : i32
    %c0_i32_1 = arith.constant 0 : i32
    return %c0_i32, %c0_i32_0 : i32, i32
  }
  func.func @transform_7(%arg0: i32) -> (i32, i32) {
    %c0_i32 = arith.constant 0 : i32
    %c0_i32_0 = arith.constant 0 : i32
    %c0_i32_1 = arith.constant 0 : i32
    return %c0_i32, %c0_i32_0 : i32, i32
  }
  func.func @transform_8(%arg0: i32) -> (i32, i32) {
    %c0_i32 = arith.constant 0 : i32
    %c0_i32_0 = arith.constant 0 : i32
    %c0_i32_1 = arith.constant 0 : i32
    return %c0_i32, %c0_i32_0 : i32, i32
  }
  func.func @transform_9(%arg0: i32) -> (i32, i32) {
    %c0_i32 = arith.constant 0 : i32
    %c0_i32_0 = arith.constant 0 : i32
    %c0_i32_1 = arith.constant 0 : i32
    return %c0_i32, %c0_i32_0 : i32, i32
  }
  func.func @transform_10(%arg0: i32) -> (i32, i32) {
    %c0_i32 = arith.constant 0 : i32
    %c0_i32_0 = arith.constant 0 : i32
    %c0_i32_1 = arith.constant 0 : i32
    return %c0_i32, %c0_i32_0 : i32, i32
  }
  func.func @transform_11(%arg0: i32) -> (i32, i32) {
    %c0_i32 = arith.constant 0 : i32
    %c0_i32_0 = arith.constant 0 : i32
    %c0_i32_1 = arith.constant 0 : i32
    return %c0_i32, %c0_i32_0 : i32, i32
  }
  func.func @transform_12(%arg0: i32) -> (i32, i32) {
    %c0_i32 = arith.constant 0 : i32
    %c0_i32_0 = arith.constant 0 : i32
    %c0_i32_1 = arith.constant 0 : i32
    return %c0_i32, %c0_i32_0 : i32, i32
  }
  func.func @transform_13(%arg0: i32) -> (i32, i32) {
    %c0_i32 = arith.constant 0 : i32
    %c0_i32_0 = arith.constant 0 : i32
    %c0_i32_1 = arith.constant 0 : i32
    return %c0_i32, %c0_i32_0 : i32, i32
  }
  func.func @transform_14(%arg0: i32) -> (i32, i32) {
    %c0_i32 = arith.constant 0 : i32
    %c0_i32_0 = arith.constant 0 : i32
    %c0_i32_1 = arith.constant 0 : i32
    return %c0_i32, %c0_i32_0 : i32, i32
  }
  func.func @transform_15(%arg0: i32) -> (i32, i32) {
    %c0_i32 = arith.constant 0 : i32
    %c0_i32_0 = arith.constant 0 : i32
    %c0_i32_1 = arith.constant 0 : i32
    return %c0_i32, %c0_i32_0 : i32, i32
  }
  func.func @transform_16(%arg0: i32) -> (i32, i32) {
    %c0_i32 = arith.constant 0 : i32
    %c0_i32_0 = arith.constant 0 : i32
    %c0_i32_1 = arith.constant 0 : i32
    return %c0_i32, %c0_i32_0 : i32, i32
  }
  func.func @transform_17(%arg0: i32) -> (i32, i32) {
    %c0_i32 = arith.constant 0 : i32
    %c0_i32_0 = arith.constant 0 : i32
    %c0_i32_1 = arith.constant 0 : i32
    return %c0_i32, %c0_i32_0 : i32, i32
  }
  func.func @transform_18(%arg0: i32) -> (i32, i32) {
    %c0_i32 = arith.constant 0 : i32
    %c0_i32_0 = arith.constant 0 : i32
    %c0_i32_1 = arith.constant 0 : i32
    return %c0_i32, %c0_i32_0 : i32, i32
  }
  func.func @transform_19(%arg0: i32) -> (i32, i32) {
    %c0_i32 = arith.constant 0 : i32
    %c0_i32_0 = arith.constant 0 : i32
    return %arg0, %c0_i32 : i32, i32
  }
  func.func @transform_20(%arg0: i32) -> (i32, i32) {
    %c0_i32 = arith.constant 0 : i32
    %c0_i32_0 = arith.constant 0 : i32
    return %arg0, %c0_i32 : i32, i32
  }
}

module attributes {stable_mosaic.version = 11 : i64} {
  func.func @_multi_mlp_kernel(%arg0: i32, %arg1: memref<16x433xbf16, #tpu.memory_space<vmem>>, %arg2: memref<433x64xbf16, #tpu.memory_space<vmem>>, %arg3: memref<1x64xf32, #tpu.memory_space<vmem>>, %arg4: memref<64x32xbf16, #tpu.memory_space<vmem>>, %arg5: memref<1x32xf32, #tpu.memory_space<vmem>>, %arg6: memref<32x32xbf16, #tpu.memory_space<vmem>>, %arg7: memref<1x32xf32, #tpu.memory_space<vmem>>, %arg8: memref<32x32xbf16, #tpu.memory_space<vmem>>, %arg9: memref<1x32xf32, #tpu.memory_space<vmem>>, %arg10: memref<16x32xf32, #tpu.memory_space<vmem>>) attributes {dimension_semantics = [#tpu.dimension_semantics<parallel>], iteration_bounds = array<i64: 1>, scalar_prefetch = 0 : i64, scratch_operands = 0 : i64, tpu.core_type = #tpu.core_type<tc>, window_params = [{transform_indices = @transform_0, window_bounds = array<i64: 16, 433>}, {pipeline_mode = #tpu.pipeline_mode<synchronous>, transform_indices = @transform_1, window_bounds = array<i64: 433, 64>}, {pipeline_mode = #tpu.pipeline_mode<synchronous>, transform_indices = @transform_2, window_bounds = array<i64: 1, 64>}, {pipeline_mode = #tpu.pipeline_mode<synchronous>, transform_indices = @transform_3, window_bounds = array<i64: 64, 32>}, {pipeline_mode = #tpu.pipeline_mode<synchronous>, transform_indices = @transform_4, window_bounds = array<i64: 1, 32>}, {pipeline_mode = #tpu.pipeline_mode<synchronous>, transform_indices = @transform_5, window_bounds = array<i64: 32, 32>}, {pipeline_mode = #tpu.pipeline_mode<synchronous>, transform_indices = @transform_6, window_bounds = array<i64: 1, 32>}, {pipeline_mode = #tpu.pipeline_mode<synchronous>, transform_indices = @transform_7, window_bounds = array<i64: 32, 32>}, {pipeline_mode = #tpu.pipeline_mode<synchronous>, transform_indices = @transform_8, window_bounds = array<i64: 1, 32>}, {transform_indices = @transform_9, window_bounds = array<i64: 16, 32>}]} {
    %c0 = arith.constant 0 : index
    %c0_0 = arith.constant 0 : index
    %0 = vector.load %arg1[%c0, %c0_0] : memref<16x433xbf16, #tpu.memory_space<vmem>>, vector<16x433xbf16>
    %c0_1 = arith.constant 0 : index
    %c0_2 = arith.constant 0 : index
    %1 = vector.load %arg2[%c0_1, %c0_2] : memref<433x64xbf16, #tpu.memory_space<vmem>>, vector<433x64xbf16>
    %c0_3 = arith.constant 0 : index
    %c0_4 = arith.constant 0 : index
    %2 = vector.load %arg3[%c0_3, %c0_4] : memref<1x64xf32, #tpu.memory_space<vmem>>, vector<1x64xf32>
    %cst = arith.constant dense<0.000000e+00> : vector<16x64xf32>
    %3 = tpu.matmul %0, %1, %cst {dimension_numbers = #tpu.dot_dimension_numbers<[1], [0], [0], [1], [0, 0, 1, 1], [], []>} : vector<16x433xbf16>, vector<433x64xbf16>, vector<16x64xf32> -> vector<16x64xf32>
    %4 = vector.broadcast %2 : vector<1x64xf32> to vector<16x64xf32>
    %5 = arith.addf %3, %4 : vector<16x64xf32>
    %cst_5 = arith.constant 0.000000e+00 : f32
    %6 = vector.broadcast %cst_5 : f32 to vector<16x64xf32>
    %7 = arith.maximumf %5, %6 : vector<16x64xf32>
    %8 = arith.truncf %7 : vector<16x64xf32> to vector<16x64xbf16>
    %c0_6 = arith.constant 0 : index
    %c0_7 = arith.constant 0 : index
    %9 = vector.load %arg4[%c0_6, %c0_7] : memref<64x32xbf16, #tpu.memory_space<vmem>>, vector<64x32xbf16>
    %c0_8 = arith.constant 0 : index
    %c0_9 = arith.constant 0 : index
    %10 = vector.load %arg5[%c0_8, %c0_9] : memref<1x32xf32, #tpu.memory_space<vmem>>, vector<1x32xf32>
    %cst_10 = arith.constant dense<0.000000e+00> : vector<16x32xf32>
    %11 = tpu.matmul %8, %9, %cst_10 {dimension_numbers = #tpu.dot_dimension_numbers<[1], [0], [0], [1], [0, 0, 1, 1], [], []>} : vector<16x64xbf16>, vector<64x32xbf16>, vector<16x32xf32> -> vector<16x32xf32>
    %12 = vector.broadcast %10 : vector<1x32xf32> to vector<16x32xf32>
    %13 = arith.addf %11, %12 : vector<16x32xf32>
    %cst_11 = arith.constant 0.000000e+00 : f32
    %14 = vector.broadcast %cst_11 : f32 to vector<16x32xf32>
    %15 = arith.maximumf %13, %14 : vector<16x32xf32>
    %16 = arith.truncf %15 : vector<16x32xf32> to vector<16x32xbf16>
    %c0_12 = arith.constant 0 : index
    %c0_13 = arith.constant 0 : index
    %17 = vector.load %arg6[%c0_12, %c0_13] : memref<32x32xbf16, #tpu.memory_space<vmem>>, vector<32x32xbf16>
    %c0_14 = arith.constant 0 : index
    %c0_15 = arith.constant 0 : index
    %18 = vector.load %arg7[%c0_14, %c0_15] : memref<1x32xf32, #tpu.memory_space<vmem>>, vector<1x32xf32>
    %cst_16 = arith.constant dense<0.000000e+00> : vector<16x32xf32>
    %19 = tpu.matmul %16, %17, %cst_16 {dimension_numbers = #tpu.dot_dimension_numbers<[1], [0], [0], [1], [0, 0, 1, 1], [], []>} : vector<16x32xbf16>, vector<32x32xbf16>, vector<16x32xf32> -> vector<16x32xf32>
    %20 = vector.broadcast %18 : vector<1x32xf32> to vector<16x32xf32>
    %21 = arith.addf %19, %20 : vector<16x32xf32>
    %cst_17 = arith.constant 0.000000e+00 : f32
    %22 = vector.broadcast %cst_17 : f32 to vector<16x32xf32>
    %23 = arith.maximumf %21, %22 : vector<16x32xf32>
    %24 = arith.truncf %23 : vector<16x32xf32> to vector<16x32xbf16>
    %c0_18 = arith.constant 0 : index
    %c0_19 = arith.constant 0 : index
    %25 = vector.load %arg8[%c0_18, %c0_19] : memref<32x32xbf16, #tpu.memory_space<vmem>>, vector<32x32xbf16>
    %c0_20 = arith.constant 0 : index
    %c0_21 = arith.constant 0 : index
    %26 = vector.load %arg9[%c0_20, %c0_21] : memref<1x32xf32, #tpu.memory_space<vmem>>, vector<1x32xf32>
    %cst_22 = arith.constant dense<0.000000e+00> : vector<16x32xf32>
    %27 = tpu.matmul %24, %25, %cst_22 {dimension_numbers = #tpu.dot_dimension_numbers<[1], [0], [0], [1], [0, 0, 1, 1], [], []>} : vector<16x32xbf16>, vector<32x32xbf16>, vector<16x32xf32> -> vector<16x32xf32>
    %28 = vector.broadcast %26 : vector<1x32xf32> to vector<16x32xf32>
    %29 = arith.addf %27, %28 : vector<16x32xf32>
    %c0_23 = arith.constant 0 : index
    %c0_24 = arith.constant 0 : index
    %30 = vector.load %arg10[%c0_23, %c0_24] : memref<16x32xf32, #tpu.memory_space<vmem>>, vector<16x32xf32>
    tpu.vector_store %arg10[%c0_23, %c0_24], %29 {strides = array<i32>} : memref<16x32xf32, #tpu.memory_space<vmem>>, vector<16x32xf32>,
    return
  }
  func.func @transform_0(%arg0: i32) -> (i32, i32) {
    %c0_i32 = arith.constant 0 : i32
    %c0_i32_0 = arith.constant 0 : i32
    return %arg0, %c0_i32 : i32, i32
  }
  func.func @transform_1(%arg0: i32) -> (i32, i32) {
    %c0_i32 = arith.constant 0 : i32
    %c0_i32_0 = arith.constant 0 : i32
    %c0_i32_1 = arith.constant 0 : i32
    return %c0_i32, %c0_i32_0 : i32, i32
  }
  func.func @transform_2(%arg0: i32) -> (i32, i32) {
    %c0_i32 = arith.constant 0 : i32
    %c0_i32_0 = arith.constant 0 : i32
    %c0_i32_1 = arith.constant 0 : i32
    return %c0_i32, %c0_i32_0 : i32, i32
  }
  func.func @transform_3(%arg0: i32) -> (i32, i32) {
    %c0_i32 = arith.constant 0 : i32
    %c0_i32_0 = arith.constant 0 : i32
    %c0_i32_1 = arith.constant 0 : i32
    return %c0_i32, %c0_i32_0 : i32, i32
  }
  func.func @transform_4(%arg0: i32) -> (i32, i32) {
    %c0_i32 = arith.constant 0 : i32
    %c0_i32_0 = arith.constant 0 : i32
    %c0_i32_1 = arith.constant 0 : i32
    return %c0_i32, %c0_i32_0 : i32, i32
  }
  func.func @transform_5(%arg0: i32) -> (i32, i32) {
    %c0_i32 = arith.constant 0 : i32
    %c0_i32_0 = arith.constant 0 : i32
    %c0_i32_1 = arith.constant 0 : i32
    return %c0_i32, %c0_i32_0 : i32, i32
  }
  func.func @transform_6(%arg0: i32) -> (i32, i32) {
    %c0_i32 = arith.constant 0 : i32
    %c0_i32_0 = arith.constant 0 : i32
    %c0_i32_1 = arith.constant 0 : i32
    return %c0_i32, %c0_i32_0 : i32, i32
  }
  func.func @transform_7(%arg0: i32) -> (i32, i32) {
    %c0_i32 = arith.constant 0 : i32
    %c0_i32_0 = arith.constant 0 : i32
    %c0_i32_1 = arith.constant 0 : i32
    return %c0_i32, %c0_i32_0 : i32, i32
  }
  func.func @transform_8(%arg0: i32) -> (i32, i32) {
    %c0_i32 = arith.constant 0 : i32
    %c0_i32_0 = arith.constant 0 : i32
    %c0_i32_1 = arith.constant 0 : i32
    return %c0_i32, %c0_i32_0 : i32, i32
  }
  func.func @transform_9(%arg0: i32) -> (i32, i32) {
    %c0_i32 = arith.constant 0 : i32
    %c0_i32_0 = arith.constant 0 : i32
    return %arg0, %c0_i32 : i32, i32
  }
}

module attributes {stable_mosaic.version = 11 : i64} {
  func.func @_multi_mlp_kernel(%arg0: i32, %arg1: memref<16x32xbf16, #tpu.memory_space<vmem>>, %arg2: memref<32x64xbf16, #tpu.memory_space<vmem>>, %arg3: memref<1x64xf32, #tpu.memory_space<vmem>>, %arg4: memref<32x64xbf16, #tpu.memory_space<vmem>>, %arg5: memref<1x64xf32, #tpu.memory_space<vmem>>, %arg6: memref<32x64xbf16, #tpu.memory_space<vmem>>, %arg7: memref<1x64xf32, #tpu.memory_space<vmem>>, %arg8: memref<32x48xbf16, #tpu.memory_space<vmem>>, %arg9: memref<1x48xf32, #tpu.memory_space<vmem>>, %arg10: memref<32x48xbf16, #tpu.memory_space<vmem>>, %arg11: memref<1x48xf32, #tpu.memory_space<vmem>>, %arg12: memref<32x48xbf16, #tpu.memory_space<vmem>>, %arg13: memref<1x48xf32, #tpu.memory_space<vmem>>, %arg14: memref<16x64xbf16, #tpu.memory_space<vmem>>, %arg15: memref<16x64xbf16, #tpu.memory_space<vmem>>, %arg16: memref<16x64xbf16, #tpu.memory_space<vmem>>, %arg17: memref<16x48xbf16, #tpu.memory_space<vmem>>, %arg18: memref<16x48xbf16, #tpu.memory_space<vmem>>, %arg19: memref<16x48xbf16, #tpu.memory_space<vmem>>) attributes {dimension_semantics = [#tpu.dimension_semantics<parallel>], iteration_bounds = array<i64: 1>, scalar_prefetch = 0 : i64, scratch_operands = 0 : i64, tpu.core_type = #tpu.core_type<tc>, window_params = [{transform_indices = @transform_0, window_bounds = array<i64: 16, 32>}, {pipeline_mode = #tpu.pipeline_mode<synchronous>, transform_indices = @transform_1, window_bounds = array<i64: 32, 64>}, {pipeline_mode = #tpu.pipeline_mode<synchronous>, transform_indices = @transform_2, window_bounds = array<i64: 1, 64>}, {pipeline_mode = #tpu.pipeline_mode<synchronous>, transform_indices = @transform_3, window_bounds = array<i64: 32, 64>}, {pipeline_mode = #tpu.pipeline_mode<synchronous>, transform_indices = @transform_4, window_bounds = array<i64: 1, 64>}, {pipeline_mode = #tpu.pipeline_mode<synchronous>, transform_indices = @transform_5, window_bounds = array<i64: 32, 64>}, {pipeline_mode = #tpu.pipeline_mode<synchronous>, transform_indices = @transform_6, window_bounds = array<i64: 1, 64>}, {pipeline_mode = #tpu.pipeline_mode<synchronous>, transform_indices = @transform_7, window_bounds = array<i64: 32, 48>}, {pipeline_mode = #tpu.pipeline_mode<synchronous>, transform_indices = @transform_8, window_bounds = array<i64: 1, 48>}, {pipeline_mode = #tpu.pipeline_mode<synchronous>, transform_indices = @transform_9, window_bounds = array<i64: 32, 48>}, {pipeline_mode = #tpu.pipeline_mode<synchronous>, transform_indices = @transform_10, window_bounds = array<i64: 1, 48>}, {pipeline_mode = #tpu.pipeline_mode<synchronous>, transform_indices = @transform_11, window_bounds = array<i64: 32, 48>}, {pipeline_mode = #tpu.pipeline_mode<synchronous>, transform_indices = @transform_12, window_bounds = array<i64: 1, 48>}, {transform_indices = @transform_13, window_bounds = array<i64: 16, 64>}, {transform_indices = @transform_14, window_bounds = array<i64: 16, 64>}, {transform_indices = @transform_15, window_bounds = array<i64: 16, 64>}, {transform_indices = @transform_16, window_bounds = array<i64: 16, 48>}, {transform_indices = @transform_17, window_bounds = array<i64: 16, 48>}, {transform_indices = @transform_18, window_bounds = array<i64: 16, 48>}]} {
    %c0 = arith.constant 0 : index
    %c0_0 = arith.constant 0 : index
    %0 = vector.load %arg1[%c0, %c0_0] : memref<16x32xbf16, #tpu.memory_space<vmem>>, vector<16x32xbf16>
    %c0_1 = arith.constant 0 : index
    %c0_2 = arith.constant 0 : index
    %1 = vector.load %arg2[%c0_1, %c0_2] : memref<32x64xbf16, #tpu.memory_space<vmem>>, vector<32x64xbf16>
    %c0_3 = arith.constant 0 : index
    %c0_4 = arith.constant 0 : index
    %2 = vector.load %arg3[%c0_3, %c0_4] : memref<1x64xf32, #tpu.memory_space<vmem>>, vector<1x64xf32>
    %cst = arith.constant dense<0.000000e+00> : vector<16x64xf32>
    %3 = tpu.matmul %0, %1, %cst {dimension_numbers = #tpu.dot_dimension_numbers<[1], [0], [0], [1], [0, 0, 1, 1], [], []>} : vector<16x32xbf16>, vector<32x64xbf16>, vector<16x64xf32> -> vector<16x64xf32>
    %4 = vector.broadcast %2 : vector<1x64xf32> to vector<16x64xf32>
    %5 = arith.addf %3, %4 : vector<16x64xf32>
    %6 = arith.truncf %5 : vector<16x64xf32> to vector<16x64xbf16>
    %c0_5 = arith.constant 0 : index
    %c0_6 = arith.constant 0 : index
    %7 = vector.load %arg14[%c0_5, %c0_6] : memref<16x64xbf16, #tpu.memory_space<vmem>>, vector<16x64xbf16>
    tpu.vector_store %arg14[%c0_5, %c0_6], %6 {strides = array<i32>} : memref<16x64xbf16, #tpu.memory_space<vmem>>, vector<16x64xbf16>,
    %c0_7 = arith.constant 0 : index
    %c0_8 = arith.constant 0 : index
    %8 = vector.load %arg4[%c0_7, %c0_8] : memref<32x64xbf16, #tpu.memory_space<vmem>>, vector<32x64xbf16>
    %c0_9 = arith.constant 0 : index
    %c0_10 = arith.constant 0 : index
    %9 = vector.load %arg5[%c0_9, %c0_10] : memref<1x64xf32, #tpu.memory_space<vmem>>, vector<1x64xf32>
    %cst_11 = arith.constant dense<0.000000e+00> : vector<16x64xf32>
    %10 = tpu.matmul %0, %8, %cst_11 {dimension_numbers = #tpu.dot_dimension_numbers<[1], [0], [0], [1], [0, 0, 1, 1], [], []>} : vector<16x32xbf16>, vector<32x64xbf16>, vector<16x64xf32> -> vector<16x64xf32>
    %11 = vector.broadcast %9 : vector<1x64xf32> to vector<16x64xf32>
    %12 = arith.addf %10, %11 : vector<16x64xf32>
    %13 = arith.truncf %12 : vector<16x64xf32> to vector<16x64xbf16>
    %c0_12 = arith.constant 0 : index
    %c0_13 = arith.constant 0 : index
    %14 = vector.load %arg15[%c0_12, %c0_13] : memref<16x64xbf16, #tpu.memory_space<vmem>>, vector<16x64xbf16>
    tpu.vector_store %arg15[%c0_12, %c0_13], %13 {strides = array<i32>} : memref<16x64xbf16, #tpu.memory_space<vmem>>, vector<16x64xbf16>,
    %c0_14 = arith.constant 0 : index
    %c0_15 = arith.constant 0 : index
    %15 = vector.load %arg6[%c0_14, %c0_15] : memref<32x64xbf16, #tpu.memory_space<vmem>>, vector<32x64xbf16>
    %c0_16 = arith.constant 0 : index
    %c0_17 = arith.constant 0 : index
    %16 = vector.load %arg7[%c0_16, %c0_17] : memref<1x64xf32, #tpu.memory_space<vmem>>, vector<1x64xf32>
    %cst_18 = arith.constant dense<0.000000e+00> : vector<16x64xf32>
    %17 = tpu.matmul %0, %15, %cst_18 {dimension_numbers = #tpu.dot_dimension_numbers<[1], [0], [0], [1], [0, 0, 1, 1], [], []>} : vector<16x32xbf16>, vector<32x64xbf16>, vector<16x64xf32> -> vector<16x64xf32>
    %18 = vector.broadcast %16 : vector<1x64xf32> to vector<16x64xf32>
    %19 = arith.addf %17, %18 : vector<16x64xf32>
    %20 = arith.truncf %19 : vector<16x64xf32> to vector<16x64xbf16>
    %c0_19 = arith.constant 0 : index
    %c0_20 = arith.constant 0 : index
    %21 = vector.load %arg16[%c0_19, %c0_20] : memref<16x64xbf16, #tpu.memory_space<vmem>>, vector<16x64xbf16>
    tpu.vector_store %arg16[%c0_19, %c0_20], %20 {strides = array<i32>} : memref<16x64xbf16, #tpu.memory_space<vmem>>, vector<16x64xbf16>,
    %c0_21 = arith.constant 0 : index
    %c0_22 = arith.constant 0 : index
    %22 = vector.load %arg8[%c0_21, %c0_22] : memref<32x48xbf16, #tpu.memory_space<vmem>>, vector<32x48xbf16>
    %c0_23 = arith.constant 0 : index
    %c0_24 = arith.constant 0 : index
    %23 = vector.load %arg9[%c0_23, %c0_24] : memref<1x48xf32, #tpu.memory_space<vmem>>, vector<1x48xf32>
    %cst_25 = arith.constant dense<0.000000e+00> : vector<16x48xf32>
    %24 = tpu.matmul %0, %22, %cst_25 {dimension_numbers = #tpu.dot_dimension_numbers<[1], [0], [0], [1], [0, 0, 1, 1], [], []>} : vector<16x32xbf16>, vector<32x48xbf16>, vector<16x48xf32> -> vector<16x48xf32>
    %25 = vector.broadcast %23 : vector<1x48xf32> to vector<16x48xf32>
    %26 = arith.addf %24, %25 : vector<16x48xf32>
    %27 = arith.truncf %26 : vector<16x48xf32> to vector<16x48xbf16>
    %c0_26 = arith.constant 0 : index
    %c0_27 = arith.constant 0 : index
    %28 = vector.load %arg17[%c0_26, %c0_27] : memref<16x48xbf16, #tpu.memory_space<vmem>>, vector<16x48xbf16>
    tpu.vector_store %arg17[%c0_26, %c0_27], %27 {strides = array<i32>} : memref<16x48xbf16, #tpu.memory_space<vmem>>, vector<16x48xbf16>,
    %c0_28 = arith.constant 0 : index
    %c0_29 = arith.constant 0 : index
    %29 = vector.load %arg10[%c0_28, %c0_29] : memref<32x48xbf16, #tpu.memory_space<vmem>>, vector<32x48xbf16>
    %c0_30 = arith.constant 0 : index
    %c0_31 = arith.constant 0 : index
    %30 = vector.load %arg11[%c0_30, %c0_31] : memref<1x48xf32, #tpu.memory_space<vmem>>, vector<1x48xf32>
    %cst_32 = arith.constant dense<0.000000e+00> : vector<16x48xf32>
    %31 = tpu.matmul %0, %29, %cst_32 {dimension_numbers = #tpu.dot_dimension_numbers<[1], [0], [0], [1], [0, 0, 1, 1], [], []>} : vector<16x32xbf16>, vector<32x48xbf16>, vector<16x48xf32> -> vector<16x48xf32>
    %32 = vector.broadcast %30 : vector<1x48xf32> to vector<16x48xf32>
    %33 = arith.addf %31, %32 : vector<16x48xf32>
    %34 = arith.truncf %33 : vector<16x48xf32> to vector<16x48xbf16>
    %c0_33 = arith.constant 0 : index
    %c0_34 = arith.constant 0 : index
    %35 = vector.load %arg18[%c0_33, %c0_34] : memref<16x48xbf16, #tpu.memory_space<vmem>>, vector<16x48xbf16>
    tpu.vector_store %arg18[%c0_33, %c0_34], %34 {strides = array<i32>} : memref<16x48xbf16, #tpu.memory_space<vmem>>, vector<16x48xbf16>,
    %c0_35 = arith.constant 0 : index
    %c0_36 = arith.constant 0 : index
    %36 = vector.load %arg12[%c0_35, %c0_36] : memref<32x48xbf16, #tpu.memory_space<vmem>>, vector<32x48xbf16>
    %c0_37 = arith.constant 0 : index
    %c0_38 = arith.constant 0 : index
    %37 = vector.load %arg13[%c0_37, %c0_38] : memref<1x48xf32, #tpu.memory_space<vmem>>, vector<1x48xf32>
    %cst_39 = arith.constant dense<0.000000e+00> : vector<16x48xf32>
    %38 = tpu.matmul %0, %36, %cst_39 {dimension_numbers = #tpu.dot_dimension_numbers<[1], [0], [0], [1], [0, 0, 1, 1], [], []>} : vector<16x32xbf16>, vector<32x48xbf16>, vector<16x48xf32> -> vector<16x48xf32>
    %39 = vector.broadcast %37 : vector<1x48xf32> to vector<16x48xf32>
    %40 = arith.addf %38, %39 : vector<16x48xf32>
    %41 = arith.truncf %40 : vector<16x48xf32> to vector<16x48xbf16>
    %c0_40 = arith.constant 0 : index
    %c0_41 = arith.constant 0 : index
    %42 = vector.load %arg19[%c0_40, %c0_41] : memref<16x48xbf16, #tpu.memory_space<vmem>>, vector<16x48xbf16>
    tpu.vector_store %arg19[%c0_40, %c0_41], %41 {strides = array<i32>} : memref<16x48xbf16, #tpu.memory_space<vmem>>, vector<16x48xbf16>,
    return
  }
  func.func @transform_0(%arg0: i32) -> (i32, i32) {
    %c0_i32 = arith.constant 0 : i32
    %c0_i32_0 = arith.constant 0 : i32
    return %arg0, %c0_i32 : i32, i32
  }
  func.func @transform_1(%arg0: i32) -> (i32, i32) {
    %c0_i32 = arith.constant 0 : i32
    %c0_i32_0 = arith.constant 0 : i32
    %c0_i32_1 = arith.constant 0 : i32
    return %c0_i32, %c0_i32_0 : i32, i32
  }
  func.func @transform_2(%arg0: i32) -> (i32, i32) {
    %c0_i32 = arith.constant 0 : i32
    %c0_i32_0 = arith.constant 0 : i32
    %c0_i32_1 = arith.constant 0 : i32
    return %c0_i32, %c0_i32_0 : i32, i32
  }
  func.func @transform_3(%arg0: i32) -> (i32, i32) {
    %c0_i32 = arith.constant 0 : i32
    %c0_i32_0 = arith.constant 0 : i32
    %c0_i32_1 = arith.constant 0 : i32
    return %c0_i32, %c0_i32_0 : i32, i32
  }
  func.func @transform_4(%arg0: i32) -> (i32, i32) {
    %c0_i32 = arith.constant 0 : i32
    %c0_i32_0 = arith.constant 0 : i32
    %c0_i32_1 = arith.constant 0 : i32
    return %c0_i32, %c0_i32_0 : i32, i32
  }
  func.func @transform_5(%arg0: i32) -> (i32, i32) {
    %c0_i32 = arith.constant 0 : i32
    %c0_i32_0 = arith.constant 0 : i32
    %c0_i32_1 = arith.constant 0 : i32
    return %c0_i32, %c0_i32_0 : i32, i32
  }
  func.func @transform_6(%arg0: i32) -> (i32, i32) {
    %c0_i32 = arith.constant 0 : i32
    %c0_i32_0 = arith.constant 0 : i32
    %c0_i32_1 = arith.constant 0 : i32
    return %c0_i32, %c0_i32_0 : i32, i32
  }
  func.func @transform_7(%arg0: i32) -> (i32, i32) {
    %c0_i32 = arith.constant 0 : i32
    %c0_i32_0 = arith.constant 0 : i32
    %c0_i32_1 = arith.constant 0 : i32
    return %c0_i32, %c0_i32_0 : i32, i32
  }
  func.func @transform_8(%arg0: i32) -> (i32, i32) {
    %c0_i32 = arith.constant 0 : i32
    %c0_i32_0 = arith.constant 0 : i32
    %c0_i32_1 = arith.constant 0 : i32
    return %c0_i32, %c0_i32_0 : i32, i32
  }
  func.func @transform_9(%arg0: i32) -> (i32, i32) {
    %c0_i32 = arith.constant 0 : i32
    %c0_i32_0 = arith.constant 0 : i32
    %c0_i32_1 = arith.constant 0 : i32
    return %c0_i32, %c0_i32_0 : i32, i32
  }
  func.func @transform_10(%arg0: i32) -> (i32, i32) {
    %c0_i32 = arith.constant 0 : i32
    %c0_i32_0 = arith.constant 0 : i32
    %c0_i32_1 = arith.constant 0 : i32
    return %c0_i32, %c0_i32_0 : i32, i32
  }
  func.func @transform_11(%arg0: i32) -> (i32, i32) {
    %c0_i32 = arith.constant 0 : i32
    %c0_i32_0 = arith.constant 0 : i32
    %c0_i32_1 = arith.constant 0 : i32
    return %c0_i32, %c0_i32_0 : i32, i32
  }
  func.func @transform_12(%arg0: i32) -> (i32, i32) {
    %c0_i32 = arith.constant 0 : i32
    %c0_i32_0 = arith.constant 0 : i32
    %c0_i32_1 = arith.constant 0 : i32
    return %c0_i32, %c0_i32_0 : i32, i32
  }
  func.func @transform_13(%arg0: i32) -> (i32, i32) {
    %c0_i32 = arith.constant 0 : i32
    %c0_i32_0 = arith.constant 0 : i32
    return %arg0, %c0_i32 : i32, i32
  }
  func.func @transform_14(%arg0: i32) -> (i32, i32) {
    %c0_i32 = arith.constant 0 : i32
    %c0_i32_0 = arith.constant 0 : i32
    return %arg0, %c0_i32 : i32, i32
  }
  func.func @transform_15(%arg0: i32) -> (i32, i32) {
    %c0_i32 = arith.constant 0 : i32
    %c0_i32_0 = arith.constant 0 : i32
    return %arg0, %c0_i32 : i32, i32
  }
  func.func @transform_16(%arg0: i32) -> (i32, i32) {
    %c0_i32 = arith.constant 0 : i32
    %c0_i32_0 = arith.constant 0 : i32
    return %arg0, %c0_i32 : i32, i32
  }
  func.func @transform_17(%arg0: i32) -> (i32, i32) {
    %c0_i32 = arith.constant 0 : i32
    %c0_i32_0 = arith.constant 0 : i32
    return %arg0, %c0_i32 : i32, i32
  }
  func.func @transform_18(%arg0: i32) -> (i32, i32) {
    %c0_i32 = arith.constant 0 : i32
    %c0_i32_0 = arith.constant 0 : i32
    return %arg0, %c0_i32 : i32, i32
  }
}

module attributes {stable_mosaic.version = 11 : i64} {
  func.func @_multi_mlp_kernel(%arg0: i32, %arg1: memref<16x64xbf16, #tpu.memory_space<vmem>>, %arg2: memref<64x32xbf16, #tpu.memory_space<vmem>>, %arg3: memref<1x32xf32, #tpu.memory_space<vmem>>, %arg4: memref<32x32xbf16, #tpu.memory_space<vmem>>, %arg5: memref<1x32xf32, #tpu.memory_space<vmem>>, %arg6: memref<16x32xf32, #tpu.memory_space<vmem>>) attributes {dimension_semantics = [#tpu.dimension_semantics<parallel>], iteration_bounds = array<i64: 1>, scalar_prefetch = 0 : i64, scratch_operands = 0 : i64, tpu.core_type = #tpu.core_type<tc>, window_params = [{transform_indices = @transform_0, window_bounds = array<i64: 16, 64>}, {pipeline_mode = #tpu.pipeline_mode<synchronous>, transform_indices = @transform_1, window_bounds = array<i64: 64, 32>}, {pipeline_mode = #tpu.pipeline_mode<synchronous>, transform_indices = @transform_2, window_bounds = array<i64: 1, 32>}, {pipeline_mode = #tpu.pipeline_mode<synchronous>, transform_indices = @transform_3, window_bounds = array<i64: 32, 32>}, {pipeline_mode = #tpu.pipeline_mode<synchronous>, transform_indices = @transform_4, window_bounds = array<i64: 1, 32>}, {transform_indices = @transform_5, window_bounds = array<i64: 16, 32>}]} {
    %c0 = arith.constant 0 : index
    %c0_0 = arith.constant 0 : index
    %0 = vector.load %arg1[%c0, %c0_0] : memref<16x64xbf16, #tpu.memory_space<vmem>>, vector<16x64xbf16>
    %c0_1 = arith.constant 0 : index
    %c0_2 = arith.constant 0 : index
    %1 = vector.load %arg2[%c0_1, %c0_2] : memref<64x32xbf16, #tpu.memory_space<vmem>>, vector<64x32xbf16>
    %c0_3 = arith.constant 0 : index
    %c0_4 = arith.constant 0 : index
    %2 = vector.load %arg3[%c0_3, %c0_4] : memref<1x32xf32, #tpu.memory_space<vmem>>, vector<1x32xf32>
    %cst = arith.constant dense<0.000000e+00> : vector<16x32xf32>
    %3 = tpu.matmul %0, %1, %cst {dimension_numbers = #tpu.dot_dimension_numbers<[1], [0], [0], [1], [0, 0, 1, 1], [], []>} : vector<16x64xbf16>, vector<64x32xbf16>, vector<16x32xf32> -> vector<16x32xf32>
    %4 = vector.broadcast %2 : vector<1x32xf32> to vector<16x32xf32>
    %5 = arith.addf %3, %4 : vector<16x32xf32>
    %cst_5 = arith.constant 0.000000e+00 : f32
    %6 = vector.broadcast %cst_5 : f32 to vector<16x32xf32>
    %7 = arith.maximumf %5, %6 : vector<16x32xf32>
    %8 = arith.truncf %7 : vector<16x32xf32> to vector<16x32xbf16>
    %c0_6 = arith.constant 0 : index
    %c0_7 = arith.constant 0 : index
    %9 = vector.load %arg4[%c0_6, %c0_7] : memref<32x32xbf16, #tpu.memory_space<vmem>>, vector<32x32xbf16>
    %c0_8 = arith.constant 0 : index
    %c0_9 = arith.constant 0 : index
    %10 = vector.load %arg5[%c0_8, %c0_9] : memref<1x32xf32, #tpu.memory_space<vmem>>, vector<1x32xf32>
    %cst_10 = arith.constant dense<0.000000e+00> : vector<16x32xf32>
    %11 = tpu.matmul %8, %9, %cst_10 {dimension_numbers = #tpu.dot_dimension_numbers<[1], [0], [0], [1], [0, 0, 1, 1], [], []>} : vector<16x32xbf16>, vector<32x32xbf16>, vector<16x32xf32> -> vector<16x32xf32>
    %12 = vector.broadcast %10 : vector<1x32xf32> to vector<16x32xf32>
    %13 = arith.addf %11, %12 : vector<16x32xf32>
    %c0_11 = arith.constant 0 : index
    %c0_12 = arith.constant 0 : index
    %14 = vector.load %arg6[%c0_11, %c0_12] : memref<16x32xf32, #tpu.memory_space<vmem>>, vector<16x32xf32>
    tpu.vector_store %arg6[%c0_11, %c0_12], %13 {strides = array<i32>} : memref<16x32xf32, #tpu.memory_space<vmem>>, vector<16x32xf32>,
    return
  }
  func.func @transform_0(%arg0: i32) -> (i32, i32) {
    %c0_i32 = arith.constant 0 : i32
    %c0_i32_0 = arith.constant 0 : i32
    return %arg0, %c0_i32 : i32, i32
  }
  func.func @transform_1(%arg0: i32) -> (i32, i32) {
    %c0_i32 = arith.constant 0 : i32
    %c0_i32_0 = arith.constant 0 : i32
    %c0_i32_1 = arith.constant 0 : i32
    return %c0_i32, %c0_i32_0 : i32, i32
  }
  func.func @transform_2(%arg0: i32) -> (i32, i32) {
    %c0_i32 = arith.constant 0 : i32
    %c0_i32_0 = arith.constant 0 : i32
    %c0_i32_1 = arith.constant 0 : i32
    return %c0_i32, %c0_i32_0 : i32, i32
  }
  func.func @transform_3(%arg0: i32) -> (i32, i32) {
    %c0_i32 = arith.constant 0 : i32
    %c0_i32_0 = arith.constant 0 : i32
    %c0_i32_1 = arith.constant 0 : i32
    return %c0_i32, %c0_i32_0 : i32, i32
  }
  func.func @transform_4(%arg0: i32) -> (i32, i32) {
    %c0_i32 = arith.constant 0 : i32
    %c0_i32_0 = arith.constant 0 : i32
    %c0_i32_1 = arith.constant 0 : i32
    return %c0_i32, %c0_i32_0 : i32, i32
  }
  func.func @transform_5(%arg0: i32) -> (i32, i32) {
    %c0_i32 = arith.constant 0 : i32
    %c0_i32_0 = arith.constant 0 : i32
    return %arg0, %c0_i32 : i32, i32
  }
}

module attributes {stable_mosaic.version = 11 : i64} {
  func.func @_multi_mlp_kernel(%arg0: i32, %arg1: memref<16x304xbf16, #tpu.memory_space<vmem>>, %arg2: memref<304x32xbf16, #tpu.memory_space<vmem>>, %arg3: memref<1x32xf32, #tpu.memory_space<vmem>>, %arg4: memref<16x32xf32, #tpu.memory_space<vmem>>) attributes {dimension_semantics = [#tpu.dimension_semantics<parallel>], iteration_bounds = array<i64: 1>, scalar_prefetch = 0 : i64, scratch_operands = 0 : i64, tpu.core_type = #tpu.core_type<tc>, window_params = [{transform_indices = @transform_0, window_bounds = array<i64: 16, 304>}, {pipeline_mode = #tpu.pipeline_mode<synchronous>, transform_indices = @transform_1, window_bounds = array<i64: 304, 32>}, {pipeline_mode = #tpu.pipeline_mode<synchronous>, transform_indices = @transform_2, window_bounds = array<i64: 1, 32>}, {transform_indices = @transform_3, window_bounds = array<i64: 16, 32>}]} {
    %c0 = arith.constant 0 : index
    %c0_0 = arith.constant 0 : index
    %0 = vector.load %arg1[%c0, %c0_0] : memref<16x304xbf16, #tpu.memory_space<vmem>>, vector<16x304xbf16>
    %c0_1 = arith.constant 0 : index
    %c0_2 = arith.constant 0 : index
    %1 = vector.load %arg2[%c0_1, %c0_2] : memref<304x32xbf16, #tpu.memory_space<vmem>>, vector<304x32xbf16>
    %c0_3 = arith.constant 0 : index
    %c0_4 = arith.constant 0 : index
    %2 = vector.load %arg3[%c0_3, %c0_4] : memref<1x32xf32, #tpu.memory_space<vmem>>, vector<1x32xf32>
    %cst = arith.constant dense<0.000000e+00> : vector<16x32xf32>
    %3 = tpu.matmul %0, %1, %cst {dimension_numbers = #tpu.dot_dimension_numbers<[1], [0], [0], [1], [0, 0, 1, 1], [], []>} : vector<16x304xbf16>, vector<304x32xbf16>, vector<16x32xf32> -> vector<16x32xf32>
    %4 = vector.broadcast %2 : vector<1x32xf32> to vector<16x32xf32>
    %5 = arith.addf %3, %4 : vector<16x32xf32>
    %c0_5 = arith.constant 0 : index
    %c0_6 = arith.constant 0 : index
    %6 = vector.load %arg4[%c0_5, %c0_6] : memref<16x32xf32, #tpu.memory_space<vmem>>, vector<16x32xf32>
    tpu.vector_store %arg4[%c0_5, %c0_6], %5 {strides = array<i32>} : memref<16x32xf32, #tpu.memory_space<vmem>>, vector<16x32xf32>,
    return
  }
  func.func @transform_0(%arg0: i32) -> (i32, i32) {
    %c0_i32 = arith.constant 0 : i32
    %c0_i32_0 = arith.constant 0 : i32
    return %arg0, %c0_i32 : i32, i32
  }
  func.func @transform_1(%arg0: i32) -> (i32, i32) {
    %c0_i32 = arith.constant 0 : i32
    %c0_i32_0 = arith.constant 0 : i32
    %c0_i32_1 = arith.constant 0 : i32
    return %c0_i32, %c0_i32_0 : i32, i32
  }
  func.func @transform_2(%arg0: i32) -> (i32, i32) {
    %c0_i32 = arith.constant 0 : i32
    %c0_i32_0 = arith.constant 0 : i32
    %c0_i32_1 = arith.constant 0 : i32
    return %c0_i32, %c0_i32_0 : i32, i32
  }
  func.func @transform_3(%arg0: i32) -> (i32, i32) {
    %c0_i32 = arith.constant 0 : i32
    %c0_i32_0 = arith.constant 0 : i32
    return %arg0, %c0_i32 : i32, i32
  }
}

module attributes {stable_mosaic.version = 11 : i64} {
  func.func @_multi_mlp_kernel(%arg0: i32, %arg1: memref<16x32xbf16, #tpu.memory_space<vmem>>, %arg2: memref<32x32xbf16, #tpu.memory_space<vmem>>, %arg3: memref<1x32xf32, #tpu.memory_space<vmem>>, %arg4: memref<32x32xbf16, #tpu.memory_space<vmem>>, %arg5: memref<1x32xf32, #tpu.memory_space<vmem>>, %arg6: memref<32x32xbf16, #tpu.memory_space<vmem>>, %arg7: memref<1x32xf32, #tpu.memory_space<vmem>>, %arg8: memref<16x32xf32, #tpu.memory_space<vmem>>) attributes {dimension_semantics = [#tpu.dimension_semantics<parallel>], iteration_bounds = array<i64: 1>, scalar_prefetch = 0 : i64, scratch_operands = 0 : i64, tpu.core_type = #tpu.core_type<tc>, window_params = [{transform_indices = @transform_0, window_bounds = array<i64: 16, 32>}, {pipeline_mode = #tpu.pipeline_mode<synchronous>, transform_indices = @transform_1, window_bounds = array<i64: 32, 32>}, {pipeline_mode = #tpu.pipeline_mode<synchronous>, transform_indices = @transform_2, window_bounds = array<i64: 1, 32>}, {pipeline_mode = #tpu.pipeline_mode<synchronous>, transform_indices = @transform_3, window_bounds = array<i64: 32, 32>}, {pipeline_mode = #tpu.pipeline_mode<synchronous>, transform_indices = @transform_4, window_bounds = array<i64: 1, 32>}, {pipeline_mode = #tpu.pipeline_mode<synchronous>, transform_indices = @transform_5, window_bounds = array<i64: 32, 32>}, {pipeline_mode = #tpu.pipeline_mode<synchronous>, transform_indices = @transform_6, window_bounds = array<i64: 1, 32>}, {transform_indices = @transform_7, window_bounds = array<i64: 16, 32>}]} {
    %c0 = arith.constant 0 : index
    %c0_0 = arith.constant 0 : index
    %0 = vector.load %arg1[%c0, %c0_0] : memref<16x32xbf16, #tpu.memory_space<vmem>>, vector<16x32xbf16>
    %c0_1 = arith.constant 0 : index
    %c0_2 = arith.constant 0 : index
    %1 = vector.load %arg2[%c0_1, %c0_2] : memref<32x32xbf16, #tpu.memory_space<vmem>>, vector<32x32xbf16>
    %c0_3 = arith.constant 0 : index
    %c0_4 = arith.constant 0 : index
    %2 = vector.load %arg3[%c0_3, %c0_4] : memref<1x32xf32, #tpu.memory_space<vmem>>, vector<1x32xf32>
    %cst = arith.constant dense<0.000000e+00> : vector<16x32xf32>
    %3 = tpu.matmul %0, %1, %cst {dimension_numbers = #tpu.dot_dimension_numbers<[1], [0], [0], [1], [0, 0, 1, 1], [], []>} : vector<16x32xbf16>, vector<32x32xbf16>, vector<16x32xf32> -> vector<16x32xf32>
    %4 = vector.broadcast %2 : vector<1x32xf32> to vector<16x32xf32>
    %5 = arith.addf %3, %4 : vector<16x32xf32>
    %cst_5 = arith.constant 0.000000e+00 : f32
    %6 = vector.broadcast %cst_5 : f32 to vector<16x32xf32>
    %7 = arith.maximumf %5, %6 : vector<16x32xf32>
    %8 = arith.truncf %7 : vector<16x32xf32> to vector<16x32xbf16>
    %c0_6 = arith.constant 0 : index
    %c0_7 = arith.constant 0 : index
    %9 = vector.load %arg4[%c0_6, %c0_7] : memref<32x32xbf16, #tpu.memory_space<vmem>>, vector<32x32xbf16>
    %c0_8 = arith.constant 0 : index
    %c0_9 = arith.constant 0 : index
    %10 = vector.load %arg5[%c0_8, %c0_9] : memref<1x32xf32, #tpu.memory_space<vmem>>, vector<1x32xf32>
    %cst_10 = arith.constant dense<0.000000e+00> : vector<16x32xf32>
    %11 = tpu.matmul %8, %9, %cst_10 {dimension_numbers = #tpu.dot_dimension_numbers<[1], [0], [0], [1], [0, 0, 1, 1], [], []>} : vector<16x32xbf16>, vector<32x32xbf16>, vector<16x32xf32> -> vector<16x32xf32>
    %12 = vector.broadcast %10 : vector<1x32xf32> to vector<16x32xf32>
    %13 = arith.addf %11, %12 : vector<16x32xf32>
    %cst_11 = arith.constant 0.000000e+00 : f32
    %14 = vector.broadcast %cst_11 : f32 to vector<16x32xf32>
    %15 = arith.maximumf %13, %14 : vector<16x32xf32>
    %16 = arith.truncf %15 : vector<16x32xf32> to vector<16x32xbf16>
    %c0_12 = arith.constant 0 : index
    %c0_13 = arith.constant 0 : index
    %17 = vector.load %arg6[%c0_12, %c0_13] : memref<32x32xbf16, #tpu.memory_space<vmem>>, vector<32x32xbf16>
    %c0_14 = arith.constant 0 : index
    %c0_15 = arith.constant 0 : index
    %18 = vector.load %arg7[%c0_14, %c0_15] : memref<1x32xf32, #tpu.memory_space<vmem>>, vector<1x32xf32>
    %cst_16 = arith.constant dense<0.000000e+00> : vector<16x32xf32>
    %19 = tpu.matmul %16, %17, %cst_16 {dimension_numbers = #tpu.dot_dimension_numbers<[1], [0], [0], [1], [0, 0, 1, 1], [], []>} : vector<16x32xbf16>, vector<32x32xbf16>, vector<16x32xf32> -> vector<16x32xf32>
    %20 = vector.broadcast %18 : vector<1x32xf32> to vector<16x32xf32>
    %21 = arith.addf %19, %20 : vector<16x32xf32>
    %c0_17 = arith.constant 0 : index
    %c0_18 = arith.constant 0 : index
    %22 = vector.load %arg8[%c0_17, %c0_18] : memref<16x32xf32, #tpu.memory_space<vmem>>, vector<16x32xf32>
    tpu.vector_store %arg8[%c0_17, %c0_18], %21 {strides = array<i32>} : memref<16x32xf32, #tpu.memory_space<vmem>>, vector<16x32xf32>,
    return
  }
  func.func @transform_0(%arg0: i32) -> (i32, i32) {
    %c0_i32 = arith.constant 0 : i32
    %c0_i32_0 = arith.constant 0 : i32
    return %arg0, %c0_i32 : i32, i32
  }
  func.func @transform_1(%arg0: i32) -> (i32, i32) {
    %c0_i32 = arith.constant 0 : i32
    %c0_i32_0 = arith.constant 0 : i32
    %c0_i32_1 = arith.constant 0 : i32
    return %c0_i32, %c0_i32_0 : i32, i32
  }
  func.func @transform_2(%arg0: i32) -> (i32, i32) {
    %c0_i32 = arith.constant 0 : i32
    %c0_i32_0 = arith.constant 0 : i32
    %c0_i32_1 = arith.constant 0 : i32
    return %c0_i32, %c0_i32_0 : i32, i32
  }
  func.func @transform_3(%arg0: i32) -> (i32, i32) {
    %c0_i32 = arith.constant 0 : i32
    %c0_i32_0 = arith.constant 0 : i32
    %c0_i32_1 = arith.constant 0 : i32
    return %c0_i32, %c0_i32_0 : i32, i32
  }
  func.func @transform_4(%arg0: i32) -> (i32, i32) {
    %c0_i32 = arith.constant 0 : i32
    %c0_i32_0 = arith.constant 0 : i32
    %c0_i32_1 = arith.constant 0 : i32
    return %c0_i32, %c0_i32_0 : i32, i32
  }
  func.func @transform_5(%arg0: i32) -> (i32, i32) {
    %c0_i32 = arith.constant 0 : i32
    %c0_i32_0 = arith.constant 0 : i32
    %c0_i32_1 = arith.constant 0 : i32
    return %c0_i32, %c0_i32_0 : i32, i32
  }
  func.func @transform_6(%arg0: i32) -> (i32, i32) {
    %c0_i32 = arith.constant 0 : i32
    %c0_i32_0 = arith.constant 0 : i32
    %c0_i32_1 = arith.constant 0 : i32
    return %c0_i32, %c0_i32_0 : i32, i32
  }
  func.func @transform_7(%arg0: i32) -> (i32, i32) {
    %c0_i32 = arith.constant 0 : i32
    %c0_i32_0 = arith.constant 0 : i32
    return %arg0, %c0_i32 : i32, i32
  }
}

module attributes {stable_mosaic.version = 11 : i64} {
  func.func @_multi_mlp_kernel(%arg0: i32, %arg1: memref<16x35xbf16, #tpu.memory_space<vmem>>, %arg2: memref<35x32xbf16, #tpu.memory_space<vmem>>, %arg3: memref<1x32xf32, #tpu.memory_space<vmem>>, %arg4: memref<32x32xbf16, #tpu.memory_space<vmem>>, %arg5: memref<1x32xf32, #tpu.memory_space<vmem>>, %arg6: memref<32x3xbf16, #tpu.memory_space<vmem>>, %arg7: memref<1x3xf32, #tpu.memory_space<vmem>>, %arg8: memref<35x32xbf16, #tpu.memory_space<vmem>>, %arg9: memref<1x32xf32, #tpu.memory_space<vmem>>, %arg10: memref<32x32xbf16, #tpu.memory_space<vmem>>, %arg11: memref<1x32xf32, #tpu.memory_space<vmem>>, %arg12: memref<32x3xbf16, #tpu.memory_space<vmem>>, %arg13: memref<1x3xf32, #tpu.memory_space<vmem>>, %arg14: memref<35x32xbf16, #tpu.memory_space<vmem>>, %arg15: memref<1x32xf32, #tpu.memory_space<vmem>>, %arg16: memref<32x32xbf16, #tpu.memory_space<vmem>>, %arg17: memref<1x32xf32, #tpu.memory_space<vmem>>, %arg18: memref<32x20xbf16, #tpu.memory_space<vmem>>, %arg19: memref<1x20xf32, #tpu.memory_space<vmem>>, %arg20: memref<16x3xf32, #tpu.memory_space<vmem>>, %arg21: memref<16x3xf32, #tpu.memory_space<vmem>>, %arg22: memref<16x20xf32, #tpu.memory_space<vmem>>) attributes {dimension_semantics = [#tpu.dimension_semantics<parallel>], iteration_bounds = array<i64: 1>, scalar_prefetch = 0 : i64, scratch_operands = 0 : i64, tpu.core_type = #tpu.core_type<tc>, window_params = [{transform_indices = @transform_0, window_bounds = array<i64: 16, 35>}, {pipeline_mode = #tpu.pipeline_mode<synchronous>, transform_indices = @transform_1, window_bounds = array<i64: 35, 32>}, {pipeline_mode = #tpu.pipeline_mode<synchronous>, transform_indices = @transform_2, window_bounds = array<i64: 1, 32>}, {pipeline_mode = #tpu.pipeline_mode<synchronous>, transform_indices = @transform_3, window_bounds = array<i64: 32, 32>}, {pipeline_mode = #tpu.pipeline_mode<synchronous>, transform_indices = @transform_4, window_bounds = array<i64: 1, 32>}, {pipeline_mode = #tpu.pipeline_mode<synchronous>, transform_indices = @transform_5, window_bounds = array<i64: 32, 3>}, {pipeline_mode = #tpu.pipeline_mode<synchronous>, transform_indices = @transform_6, window_bounds = array<i64: 1, 3>}, {pipeline_mode = #tpu.pipeline_mode<synchronous>, transform_indices = @transform_7, window_bounds = array<i64: 35, 32>}, {pipeline_mode = #tpu.pipeline_mode<synchronous>, transform_indices = @transform_8, window_bounds = array<i64: 1, 32>}, {pipeline_mode = #tpu.pipeline_mode<synchronous>, transform_indices = @transform_9, window_bounds = array<i64: 32, 32>}, {pipeline_mode = #tpu.pipeline_mode<synchronous>, transform_indices = @transform_10, window_bounds = array<i64: 1, 32>}, {pipeline_mode = #tpu.pipeline_mode<synchronous>, transform_indices = @transform_11, window_bounds = array<i64: 32, 3>}, {pipeline_mode = #tpu.pipeline_mode<synchronous>, transform_indices = @transform_12, window_bounds = array<i64: 1, 3>}, {pipeline_mode = #tpu.pipeline_mode<synchronous>, transform_indices = @transform_13, window_bounds = array<i64: 35, 32>}, {pipeline_mode = #tpu.pipeline_mode<synchronous>, transform_indices = @transform_14, window_bounds = array<i64: 1, 32>}, {pipeline_mode = #tpu.pipeline_mode<synchronous>, transform_indices = @transform_15, window_bounds = array<i64: 32, 32>}, {pipeline_mode = #tpu.pipeline_mode<synchronous>, transform_indices = @transform_16, window_bounds = array<i64: 1, 32>}, {pipeline_mode = #tpu.pipeline_mode<synchronous>, transform_indices = @transform_17, window_bounds = array<i64: 32, 20>}, {pipeline_mode = #tpu.pipeline_mode<synchronous>, transform_indices = @transform_18, window_bounds = array<i64: 1, 20>}, {transform_indices = @transform_19, window_bounds = array<i64: 16, 3>}, {transform_indices = @transform_20, window_bounds = array<i64: 16, 3>}, {transform_indices = @transform_21, window_bounds = array<i64: 16, 20>}]} {
    %c0 = arith.constant 0 : index
    %c0_0 = arith.constant 0 : index
    %0 = vector.load %arg1[%c0, %c0_0] : memref<16x35xbf16, #tpu.memory_space<vmem>>, vector<16x35xbf16>
    %c0_1 = arith.constant 0 : index
    %c0_2 = arith.constant 0 : index
    %1 = vector.load %arg2[%c0_1, %c0_2] : memref<35x32xbf16, #tpu.memory_space<vmem>>, vector<35x32xbf16>
    %c0_3 = arith.constant 0 : index
    %c0_4 = arith.constant 0 : index
    %2 = vector.load %arg3[%c0_3, %c0_4] : memref<1x32xf32, #tpu.memory_space<vmem>>, vector<1x32xf32>
    %cst = arith.constant dense<0.000000e+00> : vector<16x32xf32>
    %3 = tpu.matmul %0, %1, %cst {dimension_numbers = #tpu.dot_dimension_numbers<[1], [0], [0], [1], [0, 0, 1, 1], [], []>} : vector<16x35xbf16>, vector<35x32xbf16>, vector<16x32xf32> -> vector<16x32xf32>
    %4 = vector.broadcast %2 : vector<1x32xf32> to vector<16x32xf32>
    %5 = arith.addf %3, %4 : vector<16x32xf32>
    %cst_5 = arith.constant 0.000000e+00 : f32
    %6 = vector.broadcast %cst_5 : f32 to vector<16x32xf32>
    %7 = arith.maximumf %5, %6 : vector<16x32xf32>
    %8 = arith.truncf %7 : vector<16x32xf32> to vector<16x32xbf16>
    %c0_6 = arith.constant 0 : index
    %c0_7 = arith.constant 0 : index
    %9 = vector.load %arg4[%c0_6, %c0_7] : memref<32x32xbf16, #tpu.memory_space<vmem>>, vector<32x32xbf16>
    %c0_8 = arith.constant 0 : index
    %c0_9 = arith.constant 0 : index
    %10 = vector.load %arg5[%c0_8, %c0_9] : memref<1x32xf32, #tpu.memory_space<vmem>>, vector<1x32xf32>
    %cst_10 = arith.constant dense<0.000000e+00> : vector<16x32xf32>
    %11 = tpu.matmul %8, %9, %cst_10 {dimension_numbers = #tpu.dot_dimension_numbers<[1], [0], [0], [1], [0, 0, 1, 1], [], []>} : vector<16x32xbf16>, vector<32x32xbf16>, vector<16x32xf32> -> vector<16x32xf32>
    %12 = vector.broadcast %10 : vector<1x32xf32> to vector<16x32xf32>
    %13 = arith.addf %11, %12 : vector<16x32xf32>
    %cst_11 = arith.constant 0.000000e+00 : f32
    %14 = vector.broadcast %cst_11 : f32 to vector<16x32xf32>
    %15 = arith.maximumf %13, %14 : vector<16x32xf32>
    %16 = arith.truncf %15 : vector<16x32xf32> to vector<16x32xbf16>
    %c0_12 = arith.constant 0 : index
    %c0_13 = arith.constant 0 : index
    %17 = vector.load %arg6[%c0_12, %c0_13] : memref<32x3xbf16, #tpu.memory_space<vmem>>, vector<32x3xbf16>
    %c0_14 = arith.constant 0 : index
    %c0_15 = arith.constant 0 : index
    %18 = vector.load %arg7[%c0_14, %c0_15] : memref<1x3xf32, #tpu.memory_space<vmem>>, vector<1x3xf32>
    %cst_16 = arith.constant dense<0.000000e+00> : vector<16x3xf32>
    %19 = tpu.matmul %16, %17, %cst_16 {dimension_numbers = #tpu.dot_dimension_numbers<[1], [0], [0], [1], [0, 0, 1, 1], [], []>} : vector<16x32xbf16>, vector<32x3xbf16>, vector<16x3xf32> -> vector<16x3xf32>
    %20 = vector.broadcast %18 : vector<1x3xf32> to vector<16x3xf32>
    %21 = arith.addf %19, %20 : vector<16x3xf32>
    %c0_17 = arith.constant 0 : index
    %c0_18 = arith.constant 0 : index
    %22 = vector.load %arg20[%c0_17, %c0_18] : memref<16x3xf32, #tpu.memory_space<vmem>>, vector<16x3xf32>
    tpu.vector_store %arg20[%c0_17, %c0_18], %21 {strides = array<i32>} : memref<16x3xf32, #tpu.memory_space<vmem>>, vector<16x3xf32>,
    %c0_19 = arith.constant 0 : index
    %c0_20 = arith.constant 0 : index
    %23 = vector.load %arg8[%c0_19, %c0_20] : memref<35x32xbf16, #tpu.memory_space<vmem>>, vector<35x32xbf16>
    %c0_21 = arith.constant 0 : index
    %c0_22 = arith.constant 0 : index
    %24 = vector.load %arg9[%c0_21, %c0_22] : memref<1x32xf32, #tpu.memory_space<vmem>>, vector<1x32xf32>
    %cst_23 = arith.constant dense<0.000000e+00> : vector<16x32xf32>
    %25 = tpu.matmul %0, %23, %cst_23 {dimension_numbers = #tpu.dot_dimension_numbers<[1], [0], [0], [1], [0, 0, 1, 1], [], []>} : vector<16x35xbf16>, vector<35x32xbf16>, vector<16x32xf32> -> vector<16x32xf32>
    %26 = vector.broadcast %24 : vector<1x32xf32> to vector<16x32xf32>
    %27 = arith.addf %25, %26 : vector<16x32xf32>
    %cst_24 = arith.constant 0.000000e+00 : f32
    %28 = vector.broadcast %cst_24 : f32 to vector<16x32xf32>
    %29 = arith.maximumf %27, %28 : vector<16x32xf32>
    %30 = arith.truncf %29 : vector<16x32xf32> to vector<16x32xbf16>
    %c0_25 = arith.constant 0 : index
    %c0_26 = arith.constant 0 : index
    %31 = vector.load %arg10[%c0_25, %c0_26] : memref<32x32xbf16, #tpu.memory_space<vmem>>, vector<32x32xbf16>
    %c0_27 = arith.constant 0 : index
    %c0_28 = arith.constant 0 : index
    %32 = vector.load %arg11[%c0_27, %c0_28] : memref<1x32xf32, #tpu.memory_space<vmem>>, vector<1x32xf32>
    %cst_29 = arith.constant dense<0.000000e+00> : vector<16x32xf32>
    %33 = tpu.matmul %30, %31, %cst_29 {dimension_numbers = #tpu.dot_dimension_numbers<[1], [0], [0], [1], [0, 0, 1, 1], [], []>} : vector<16x32xbf16>, vector<32x32xbf16>, vector<16x32xf32> -> vector<16x32xf32>
    %34 = vector.broadcast %32 : vector<1x32xf32> to vector<16x32xf32>
    %35 = arith.addf %33, %34 : vector<16x32xf32>
    %cst_30 = arith.constant 0.000000e+00 : f32
    %36 = vector.broadcast %cst_30 : f32 to vector<16x32xf32>
    %37 = arith.maximumf %35, %36 : vector<16x32xf32>
    %38 = arith.truncf %37 : vector<16x32xf32> to vector<16x32xbf16>
    %c0_31 = arith.constant 0 : index
    %c0_32 = arith.constant 0 : index
    %39 = vector.load %arg12[%c0_31, %c0_32] : memref<32x3xbf16, #tpu.memory_space<vmem>>, vector<32x3xbf16>
    %c0_33 = arith.constant 0 : index
    %c0_34 = arith.constant 0 : index
    %40 = vector.load %arg13[%c0_33, %c0_34] : memref<1x3xf32, #tpu.memory_space<vmem>>, vector<1x3xf32>
    %cst_35 = arith.constant dense<0.000000e+00> : vector<16x3xf32>
    %41 = tpu.matmul %38, %39, %cst_35 {dimension_numbers = #tpu.dot_dimension_numbers<[1], [0], [0], [1], [0, 0, 1, 1], [], []>} : vector<16x32xbf16>, vector<32x3xbf16>, vector<16x3xf32> -> vector<16x3xf32>
    %42 = vector.broadcast %40 : vector<1x3xf32> to vector<16x3xf32>
    %43 = arith.addf %41, %42 : vector<16x3xf32>
    %c0_36 = arith.constant 0 : index
    %c0_37 = arith.constant 0 : index
    %44 = vector.load %arg21[%c0_36, %c0_37] : memref<16x3xf32, #tpu.memory_space<vmem>>, vector<16x3xf32>
    tpu.vector_store %arg21[%c0_36, %c0_37], %43 {strides = array<i32>} : memref<16x3xf32, #tpu.memory_space<vmem>>, vector<16x3xf32>,
    %c0_38 = arith.constant 0 : index
    %c0_39 = arith.constant 0 : index
    %45 = vector.load %arg14[%c0_38, %c0_39] : memref<35x32xbf16, #tpu.memory_space<vmem>>, vector<35x32xbf16>
    %c0_40 = arith.constant 0 : index
    %c0_41 = arith.constant 0 : index
    %46 = vector.load %arg15[%c0_40, %c0_41] : memref<1x32xf32, #tpu.memory_space<vmem>>, vector<1x32xf32>
    %cst_42 = arith.constant dense<0.000000e+00> : vector<16x32xf32>
    %47 = tpu.matmul %0, %45, %cst_42 {dimension_numbers = #tpu.dot_dimension_numbers<[1], [0], [0], [1], [0, 0, 1, 1], [], []>} : vector<16x35xbf16>, vector<35x32xbf16>, vector<16x32xf32> -> vector<16x32xf32>
    %48 = vector.broadcast %46 : vector<1x32xf32> to vector<16x32xf32>
    %49 = arith.addf %47, %48 : vector<16x32xf32>
    %cst_43 = arith.constant 0.000000e+00 : f32
    %50 = vector.broadcast %cst_43 : f32 to vector<16x32xf32>
    %51 = arith.maximumf %49, %50 : vector<16x32xf32>
    %52 = arith.truncf %51 : vector<16x32xf32> to vector<16x32xbf16>
    %c0_44 = arith.constant 0 : index
    %c0_45 = arith.constant 0 : index
    %53 = vector.load %arg16[%c0_44, %c0_45] : memref<32x32xbf16, #tpu.memory_space<vmem>>, vector<32x32xbf16>
    %c0_46 = arith.constant 0 : index
    %c0_47 = arith.constant 0 : index
    %54 = vector.load %arg17[%c0_46, %c0_47] : memref<1x32xf32, #tpu.memory_space<vmem>>, vector<1x32xf32>
    %cst_48 = arith.constant dense<0.000000e+00> : vector<16x32xf32>
    %55 = tpu.matmul %52, %53, %cst_48 {dimension_numbers = #tpu.dot_dimension_numbers<[1], [0], [0], [1], [0, 0, 1, 1], [], []>} : vector<16x32xbf16>, vector<32x32xbf16>, vector<16x32xf32> -> vector<16x32xf32>
    %56 = vector.broadcast %54 : vector<1x32xf32> to vector<16x32xf32>
    %57 = arith.addf %55, %56 : vector<16x32xf32>
    %cst_49 = arith.constant 0.000000e+00 : f32
    %58 = vector.broadcast %cst_49 : f32 to vector<16x32xf32>
    %59 = arith.maximumf %57, %58 : vector<16x32xf32>
    %60 = arith.truncf %59 : vector<16x32xf32> to vector<16x32xbf16>
    %c0_50 = arith.constant 0 : index
    %c0_51 = arith.constant 0 : index
    %61 = vector.load %arg18[%c0_50, %c0_51] : memref<32x20xbf16, #tpu.memory_space<vmem>>, vector<32x20xbf16>
    %c0_52 = arith.constant 0 : index
    %c0_53 = arith.constant 0 : index
    %62 = vector.load %arg19[%c0_52, %c0_53] : memref<1x20xf32, #tpu.memory_space<vmem>>, vector<1x20xf32>
    %cst_54 = arith.constant dense<0.000000e+00> : vector<16x20xf32>
    %63 = tpu.matmul %60, %61, %cst_54 {dimension_numbers = #tpu.dot_dimension_numbers<[1], [0], [0], [1], [0, 0, 1, 1], [], []>} : vector<16x32xbf16>, vector<32x20xbf16>, vector<16x20xf32> -> vector<16x20xf32>
    %64 = vector.broadcast %62 : vector<1x20xf32> to vector<16x20xf32>
    %65 = arith.addf %63, %64 : vector<16x20xf32>
    %c0_55 = arith.constant 0 : index
    %c0_56 = arith.constant 0 : index
    %66 = vector.load %arg22[%c0_55, %c0_56] : memref<16x20xf32, #tpu.memory_space<vmem>>, vector<16x20xf32>
    tpu.vector_store %arg22[%c0_55, %c0_56], %65 {strides = array<i32>} : memref<16x20xf32, #tpu.memory_space<vmem>>, vector<16x20xf32>,
    return
  }
  func.func @transform_0(%arg0: i32) -> (i32, i32) {
    %c0_i32 = arith.constant 0 : i32
    %c0_i32_0 = arith.constant 0 : i32
    return %arg0, %c0_i32 : i32, i32
  }
  func.func @transform_1(%arg0: i32) -> (i32, i32) {
    %c0_i32 = arith.constant 0 : i32
    %c0_i32_0 = arith.constant 0 : i32
    %c0_i32_1 = arith.constant 0 : i32
    return %c0_i32, %c0_i32_0 : i32, i32
  }
  func.func @transform_2(%arg0: i32) -> (i32, i32) {
    %c0_i32 = arith.constant 0 : i32
    %c0_i32_0 = arith.constant 0 : i32
    %c0_i32_1 = arith.constant 0 : i32
    return %c0_i32, %c0_i32_0 : i32, i32
  }
  func.func @transform_3(%arg0: i32) -> (i32, i32) {
    %c0_i32 = arith.constant 0 : i32
    %c0_i32_0 = arith.constant 0 : i32
    %c0_i32_1 = arith.constant 0 : i32
    return %c0_i32, %c0_i32_0 : i32, i32
  }
  func.func @transform_4(%arg0: i32) -> (i32, i32) {
    %c0_i32 = arith.constant 0 : i32
    %c0_i32_0 = arith.constant 0 : i32
    %c0_i32_1 = arith.constant 0 : i32
    return %c0_i32, %c0_i32_0 : i32, i32
  }
  func.func @transform_5(%arg0: i32) -> (i32, i32) {
    %c0_i32 = arith.constant 0 : i32
    %c0_i32_0 = arith.constant 0 : i32
    %c0_i32_1 = arith.constant 0 : i32
    return %c0_i32, %c0_i32_0 : i32, i32
  }
  func.func @transform_6(%arg0: i32) -> (i32, i32) {
    %c0_i32 = arith.constant 0 : i32
    %c0_i32_0 = arith.constant 0 : i32
    %c0_i32_1 = arith.constant 0 : i32
    return %c0_i32, %c0_i32_0 : i32, i32
  }
  func.func @transform_7(%arg0: i32) -> (i32, i32) {
    %c0_i32 = arith.constant 0 : i32
    %c0_i32_0 = arith.constant 0 : i32
    %c0_i32_1 = arith.constant 0 : i32
    return %c0_i32, %c0_i32_0 : i32, i32
  }
  func.func @transform_8(%arg0: i32) -> (i32, i32) {
    %c0_i32 = arith.constant 0 : i32
    %c0_i32_0 = arith.constant 0 : i32
    %c0_i32_1 = arith.constant 0 : i32
    return %c0_i32, %c0_i32_0 : i32, i32
  }
  func.func @transform_9(%arg0: i32) -> (i32, i32) {
    %c0_i32 = arith.constant 0 : i32
    %c0_i32_0 = arith.constant 0 : i32
    %c0_i32_1 = arith.constant 0 : i32
    return %c0_i32, %c0_i32_0 : i32, i32
  }
  func.func @transform_10(%arg0: i32) -> (i32, i32) {
    %c0_i32 = arith.constant 0 : i32
    %c0_i32_0 = arith.constant 0 : i32
    %c0_i32_1 = arith.constant 0 : i32
    return %c0_i32, %c0_i32_0 : i32, i32
  }
  func.func @transform_11(%arg0: i32) -> (i32, i32) {
    %c0_i32 = arith.constant 0 : i32
    %c0_i32_0 = arith.constant 0 : i32
    %c0_i32_1 = arith.constant 0 : i32
    return %c0_i32, %c0_i32_0 : i32, i32
  }
  func.func @transform_12(%arg0: i32) -> (i32, i32) {
    %c0_i32 = arith.constant 0 : i32
    %c0_i32_0 = arith.constant 0 : i32
    %c0_i32_1 = arith.constant 0 : i32
    return %c0_i32, %c0_i32_0 : i32, i32
  }
  func.func @transform_13(%arg0: i32) -> (i32, i32) {
    %c0_i32 = arith.constant 0 : i32
    %c0_i32_0 = arith.constant 0 : i32
    %c0_i32_1 = arith.constant 0 : i32
    return %c0_i32, %c0_i32_0 : i32, i32
  }
  func.func @transform_14(%arg0: i32) -> (i32, i32) {
    %c0_i32 = arith.constant 0 : i32
    %c0_i32_0 = arith.constant 0 : i32
    %c0_i32_1 = arith.constant 0 : i32
    return %c0_i32, %c0_i32_0 : i32, i32
  }
  func.func @transform_15(%arg0: i32) -> (i32, i32) {
    %c0_i32 = arith.constant 0 : i32
    %c0_i32_0 = arith.constant 0 : i32
    %c0_i32_1 = arith.constant 0 : i32
    return %c0_i32, %c0_i32_0 : i32, i32
  }
  func.func @transform_16(%arg0: i32) -> (i32, i32) {
    %c0_i32 = arith.constant 0 : i32
    %c0_i32_0 = arith.constant 0 : i32
    %c0_i32_1 = arith.constant 0 : i32
    return %c0_i32, %c0_i32_0 : i32, i32
  }
  func.func @transform_17(%arg0: i32) -> (i32, i32) {
    %c0_i32 = arith.constant 0 : i32
    %c0_i32_0 = arith.constant 0 : i32
    %c0_i32_1 = arith.constant 0 : i32
    return %c0_i32, %c0_i32_0 : i32, i32
  }
  func.func @transform_18(%arg0: i32) -> (i32, i32) {
    %c0_i32 = arith.constant 0 : i32
    %c0_i32_0 = arith.constant 0 : i32
    %c0_i32_1 = arith.constant 0 : i32
    return %c0_i32, %c0_i32_0 : i32, i32
  }
  func.func @transform_19(%arg0: i32) -> (i32, i32) {
    %c0_i32 = arith.constant 0 : i32
    %c0_i32_0 = arith.constant 0 : i32
    return %arg0, %c0_i32 : i32, i32
  }
  func.func @transform_20(%arg0: i32) -> (i32, i32) {
    %c0_i32 = arith.constant 0 : i32
    %c0_i32_0 = arith.constant 0 : i32
    return %arg0, %c0_i32 : i32, i32
  }
  func.func @transform_21(%arg0: i32) -> (i32, i32) {
    %c0_i32 = arith.constant 0 : i32
    %c0_i32_0 = arith.constant 0 : i32
    return %arg0, %c0_i32 : i32, i32
  }
}

</mosaic_0001>

<llo_original>
// kernel: diffab_forward.13
$region0: #{diffab_forward.13}
  #allocation0 [shape = 'u32[]', space=smem, size = 0x4, offset = 0x4, fixed_abs, tag = 'smem constant byte address 0x4 - core index']
  #allocation1 [shape = 'u32[72,128]{1,0:T(1,128)}', space=vmem, size = 0x9000, scoped, tag = 'internal scratch']
  %s0 = inlined_call_operand.vmem [shape: bf16[128,32], index: 0, kind: input, shape index: {}]
  %s1 = inlined_call_operand.vmem [shape: bf16[128,32], index: 1, kind: input, shape index: {}]
  %s2 = inlined_call_operand.vmem [shape: bf16[128,25], index: 2, kind: input, shape index: {}]
  %s3 = inlined_call_operand.vmem [shape: bf16[128,26], index: 3, kind: input, shape index: {}]
  %s4 = inlined_call_operand.vmem [shape: bf16[128,2], index: 4, kind: input, shape index: {}]
  %s5 = inlined_call_operand.vmem [shape: bf16[25,32], index: 5, kind: input, shape index: {}]
  %s6 = inlined_call_operand.vmem [shape: f32[1,32], index: 6, kind: input, shape index: {}]
  %s7 = inlined_call_operand.vmem [shape: bf16[32,32], index: 7, kind: input, shape index: {}]
  %s8 = inlined_call_operand.vmem [shape: f32[1,32], index: 8, kind: input, shape index: {}]
  %s9 = inlined_call_operand.vmem [shape: bf16[32,32], index: 9, kind: input, shape index: {}]
  %s10 = inlined_call_operand.vmem [shape: bf16[32,32], index: 10, kind: input, shape index: {}]
  %s11 = inlined_call_operand.vmem [shape: bf16[32,32], index: 11, kind: input, shape index: {}]
  %s12 = inlined_call_operand.vmem [shape: bf16[26,32], index: 12, kind: input, shape index: {}]
  %s13 = inlined_call_operand.vmem [shape: f32[1,32], index: 13, kind: input, shape index: {}]
  %s14 = inlined_call_operand.vmem [shape: bf16[32,32], index: 14, kind: input, shape index: {}]
  %s15 = inlined_call_operand.vmem [shape: f32[1,32], index: 15, kind: input, shape index: {}]
  %s16 = inlined_call_operand.vmem [shape: bf16[32,32], index: 16, kind: input, shape index: {}]
  %s17 = inlined_call_operand.vmem [shape: f32[1,32], index: 17, kind: input, shape index: {}]
  %s18 = inlined_call_operand.vmem [shape: bf16[32,8], index: 18, kind: input, shape index: {}]
  %s19 = inlined_call_operand.vmem [shape: bf16[128,32], index: 19, kind: output, shape index: {0}]
  %s20 = inlined_call_operand.vmem [shape: f32[128,8], index: 20, kind: output, shape index: {1}]
  %21 = xla_tuple %s19, %s20
  %s22 = sld [smem:[#allocation0]]
  $region117: #{diffab_forward.13} parent=0
    _
  %s24 = ssub.s32 1, %s22
  %s25 = scalar_select 0, %s24, %s22
  loop: start=0, step=1, limit=4
  $region2: #{diffab_forward.13} parent=0 // loop_pre_header
    _
  $region3: #{diffab_forward.13} parent=0 // loop_header
    %s27 = sphi 0, %s31
    %p28 = scmp.ge.s32.totalorder %s27, 4
    %s37 = sphi 0, %s39
    %s40 = sphi 0, %s37
    %s41 = sphi 0, %s40
    %s57 = sphi 0, %s41
    %s63 = sphi 0, %s65
    %s66 = sphi 0, %s63
    %s67 = sphi 0, %s66
    %s83 = sphi 0, %s67
    %s89 = sphi 0, %s91
    %s92 = sphi 0, %s89
    %s93 = sphi 0, %s92
    %s109 = sphi 0, %s93
    %s115 = sphi 0, %s117
    %s118 = sphi 0, %s115
    %s119 = sphi 0, %s118
    %s135 = sphi 0, %s119
    %s141 = sphi 0, %s143
    %s144 = sphi 0, %s141
    %s145 = sphi 0, %s144
    %s161 = sphi 0, %s145
    %s165 = sphi 0, %s165
    %s167 = sphi 0, %s165
    %s168 = sphi 0, %s167
    %s182 = sphi 0, %s168
    %s186 = sphi 0, %s186
    %s188 = sphi 0, %s186
    %s189 = sphi 0, %s188
    %s203 = sphi 0, %s189
    %s207 = sphi 0, %s207
    %s209 = sphi 0, %s207
    %s210 = sphi 0, %s209
    %s224 = sphi 0, %s210
    %s228 = sphi 0, %s228
    %s230 = sphi 0, %s228
    %s231 = sphi 0, %s230
    %s245 = sphi 0, %s231
    %s249 = sphi 0, %s249
    %s251 = sphi 0, %s249
    %s252 = sphi 0, %s251
    %s266 = sphi 0, %s252
    %s270 = sphi 0, %s270
    %s272 = sphi 0, %s270
    %s273 = sphi 0, %s272
    %s287 = sphi 0, %s273
    %s291 = sphi 0, %s291
    %s293 = sphi 0, %s291
    %s294 = sphi 0, %s293
    %s308 = sphi 0, %s294
    %s312 = sphi 0, %s312
    %s314 = sphi 0, %s312
    %s315 = sphi 0, %s314
    %s329 = sphi 0, %s315
    %s333 = sphi 0, %s333
    %s335 = sphi 0, %s333
    %s336 = sphi 0, %s335
    %s350 = sphi 0, %s336
    %s354 = sphi 0, %s354
    %s356 = sphi 0, %s354
    %s357 = sphi 0, %s356
    %s371 = sphi 0, %s357
    %s375 = sphi 0, %s375
    %s377 = sphi 0, %s375
    %s378 = sphi 0, %s377
    %s392 = sphi 0, %s378
    %s396 = sphi 0, %s396
    %s398 = sphi 0, %s396
    %s399 = sphi 0, %s398
    %s413 = sphi 0, %s399
    %s417 = sphi 0, %s417
    %s419 = sphi 0, %s417
    %s420 = sphi 0, %s419
    %s434 = sphi 0, %s420
    %s438 = sphi 0, %s438
    %s440 = sphi 0, %s438
    %s441 = sphi 0, %s440
    %s455 = sphi 0, %s441
    %s461 = sphi 0, %s463
    %s464 = sphi 0, %s461
    %s465 = sphi 0, %s464
    %s481 = sphi 0, %s465
    %s487 = sphi 0, %s489
    %s490 = sphi 0, %s487
    %s491 = sphi 0, %s490
    %s507 = sphi 0, %s491
  $region4: #{diffab_forward.13} parent=0 // loop_header_branch
    %30 = sbr.rel (%p28) target = $region8
  $region5: #{diffab_forward.13} parent=0 // loop_body
    %s32 = ssub.s32 %s27, 1
    %s33 = ssub.s32 %s27, 2
    %s34 = sadd.s32 %s27, 1
    %s35 = ssub.s32 %s27, %s34
    %p36 = scmp.eq.s32.totalorder %s35, 0
    %s38 = sadd.s32 %s37, 1
    %s39 = scalar_select %p36, %s37, %s38
    %p42 = pneg %p36
    %p43 = scmp.eq.s32.totalorder %s27, 1
    %p44 = por %p42, %p43
    %p45 = scmp.ne.s32.totalorder %s37, %s40
    %p46 = scmp.eq.s32.totalorder %s27, 0
    %p47 = por %p45, %p46
    %p48 = scmp.ne.s32.totalorder %s37, %s40
    %p49 = scmp.eq.s32.totalorder %s32, 1
    %p50 = por %p48, %p49
    %p51 = scmp.ne.s32.totalorder %s40, %s41
    %p52 = scmp.eq.s32.totalorder %s32, 0
    %p53 = por %p51, %p52
    %p54 = scmp.ne.s32.totalorder %s40, %s41
    %p55 = scmp.eq.s32.totalorder %s33, 1
    %p56 = por %p54, %p55
    %p58 = scmp.ne.s32.totalorder %s41, %s57
    %p59 = scmp.eq.s32.totalorder %s33, 0
    %p60 = por %p58, %p59
    %s61 = ssub.s32 %s27, %s34
    %p62 = scmp.eq.s32.totalorder %s61, 0
    %s64 = sadd.s32 %s63, 1
    %s65 = scalar_select %p62, %s63, %s64
    %p68 = pneg %p62
    %p69 = scmp.eq.s32.totalorder %s27, 1
    %p70 = por %p68, %p69
    %p71 = scmp.ne.s32.totalorder %s63, %s66
    %p72 = scmp.eq.s32.totalorder %s27, 0
    %p73 = por %p71, %p72
    %p74 = scmp.ne.s32.totalorder %s63, %s66
    %p75 = scmp.eq.s32.totalorder %s32, 1
    %p76 = por %p74, %p75
    %p77 = scmp.ne.s32.totalorder %s66, %s67
    %p78 = scmp.eq.s32.totalorder %s32, 0
    %p79 = por %p77, %p78
    %p80 = scmp.ne.s32.totalorder %s66, %s67
    %p81 = scmp.eq.s32.totalorder %s33, 1
    %p82 = por %p80, %p81
    %p84 = scmp.ne.s32.totalorder %s67, %s83
    %p85 = scmp.eq.s32.totalorder %s33, 0
    %p86 = por %p84, %p85
    %s87 = ssub.s32 %s27, %s34
    %p88 = scmp.eq.s32.totalorder %s87, 0
    %s90 = sadd.s32 %s89, 1
    %s91 = scalar_select %p88, %s89, %s90
    %p94 = pneg %p88
    %p95 = scmp.eq.s32.totalorder %s27, 1
    %p96 = por %p94, %p95
    %p97 = scmp.ne.s32.totalorder %s89, %s92
    %p98 = scmp.eq.s32.totalorder %s27, 0
    %p99 = por %p97, %p98
    %p100 = scmp.ne.s32.totalorder %s89, %s92
    %p101 = scmp.eq.s32.totalorder %s32, 1
    %p102 = por %p100, %p101
    %p103 = scmp.ne.s32.totalorder %s92, %s93
    %p104 = scmp.eq.s32.totalorder %s32, 0
    %p105 = por %p103, %p104
    %p106 = scmp.ne.s32.totalorder %s92, %s93
    %p107 = scmp.eq.s32.totalorder %s33, 1
    %p108 = por %p106, %p107
    %p110 = scmp.ne.s32.totalorder %s93, %s109
    %p111 = scmp.eq.s32.totalorder %s33, 0
    %p112 = por %p110, %p111
    %s113 = ssub.s32 %s27, %s34
    %p114 = scmp.eq.s32.totalorder %s113, 0
    %s116 = sadd.s32 %s115, 1
    %s117 = scalar_select %p114, %s115, %s116
    %p120 = pneg %p114
    %p121 = scmp.eq.s32.totalorder %s27, 1
    %p122 = por %p120, %p121
    %p123 = scmp.ne.s32.totalorder %s115, %s118
    %p124 = scmp.eq.s32.totalorder %s27, 0
    %p125 = por %p123, %p124
    %p126 = scmp.ne.s32.totalorder %s115, %s118
    %p127 = scmp.eq.s32.totalorder %s32, 1
    %p128 = por %p126, %p127
    %p129 = scmp.ne.s32.totalorder %s118, %s119
    %p130 = scmp.eq.s32.totalorder %s32, 0
    %p131 = por %p129, %p130
    %p132 = scmp.ne.s32.totalorder %s118, %s119
    %p133 = scmp.eq.s32.totalorder %s33, 1
    %p134 = por %p132, %p133
    %p136 = scmp.ne.s32.totalorder %s119, %s135
    %p137 = scmp.eq.s32.totalorder %s33, 0
    %p138 = por %p136, %p137
    %s139 = ssub.s32 %s27, %s34
    %p140 = scmp.eq.s32.totalorder %s139, 0
    %s142 = sadd.s32 %s141, 1
    %s143 = scalar_select %p140, %s141, %s142
    %p146 = pneg %p140
    %p147 = scmp.eq.s32.totalorder %s27, 1
    %p148 = por %p146, %p147
    %p149 = scmp.ne.s32.totalorder %s141, %s144
    %p150 = scmp.eq.s32.totalorder %s27, 0
    %p151 = por %p149, %p150
    %p152 = scmp.ne.s32.totalorder %s141, %s144
    %p153 = scmp.eq.s32.totalorder %s32, 1
    %p154 = por %p152, %p153
    %p155 = scmp.ne.s32.totalorder %s144, %s145
    %p156 = scmp.eq.s32.totalorder %s32, 0
    %p157 = por %p155, %p156
    %p158 = scmp.ne.s32.totalorder %s144, %s145
    %p159 = scmp.eq.s32.totalorder %s33, 1
    %p160 = por %p158, %p159
    %p162 = scmp.ne.s32.totalorder %s145, %s161
    %p163 = scmp.eq.s32.totalorder %s33, 0
    %p164 = por %p162, %p163
    %s166 = sadd.s32 %s165, 1
    %p169 = scmp.eq.s32.totalorder %s27, 1
    %p170 = scmp.ne.s32.totalorder %s165, %s167
    %p171 = scmp.eq.s32.totalorder %s27, 0
    %p172 = por %p170, %p171
    %p173 = scmp.ne.s32.totalorder %s165, %s167
    %p174 = scmp.eq.s32.totalorder %s32, 1
    %p175 = por %p173, %p174
    %p176 = scmp.ne.s32.totalorder %s167, %s168
    %p177 = scmp.eq.s32.totalorder %s32, 0
    %p178 = por %p176, %p177
    %p179 = scmp.ne.s32.totalorder %s167, %s168
    %p180 = scmp.eq.s32.totalorder %s33, 1
    %p181 = por %p179, %p180
    %p183 = scmp.ne.s32.totalorder %s168, %s182
    %p184 = scmp.eq.s32.totalorder %s33, 0
    %p185 = por %p183, %p184
    %s187 = sadd.s32 %s186, 1
    %p190 = scmp.eq.s32.totalorder %s27, 1
    %p191 = scmp.ne.s32.totalorder %s186, %s188
    %p192 = scmp.eq.s32.totalorder %s27, 0
    %p193 = por %p191, %p192
    %p194 = scmp.ne.s32.totalorder %s186, %s188
    %p195 = scmp.eq.s32.totalorder %s32, 1
    %p196 = por %p194, %p195
    %p197 = scmp.ne.s32.totalorder %s188, %s189
    %p198 = scmp.eq.s32.totalorder %s32, 0
    %p199 = por %p197, %p198
    %p200 = scmp.ne.s32.totalorder %s188, %s189
    %p201 = scmp.eq.s32.totalorder %s33, 1
    %p202 = por %p200, %p201
    %p204 = scmp.ne.s32.totalorder %s189, %s203
    %p205 = scmp.eq.s32.totalorder %s33, 0
    %p206 = por %p204, %p205
    %s208 = sadd.s32 %s207, 1
    %p211 = scmp.eq.s32.totalorder %s27, 1
    %p212 = scmp.ne.s32.totalorder %s207, %s209
    %p213 = scmp.eq.s32.totalorder %s27, 0
    %p214 = por %p212, %p213
    %p215 = scmp.ne.s32.totalorder %s207, %s209
    %p216 = scmp.eq.s32.totalorder %s32, 1
    %p217 = por %p215, %p216
    %p218 = scmp.ne.s32.totalorder %s209, %s210
    %p219 = scmp.eq.s32.totalorder %s32, 0
    %p220 = por %p218, %p219
    %p221 = scmp.ne.s32.totalorder %s209, %s210
    %p222 = scmp.eq.s32.totalorder %s33, 1
    %p223 = por %p221, %p222
    %p225 = scmp.ne.s32.totalorder %s210, %s224
    %p226 = scmp.eq.s32.totalorder %s33, 0
    %p227 = por %p225, %p226
    %s229 = sadd.s32 %s228, 1
    %p232 = scmp.eq.s32.totalorder %s27, 1
    %p233 = scmp.ne.s32.totalorder %s228, %s230
    %p234 = scmp.eq.s32.totalorder %s27, 0
    %p235 = por %p233, %p234
    %p236 = scmp.ne.s32.totalorder %s228, %s230
    %p237 = scmp.eq.s32.totalorder %s32, 1
    %p238 = por %p236, %p237
    %p239 = scmp.ne.s32.totalorder %s230, %s231
    %p240 = scmp.eq.s32.totalorder %s32, 0
    %p241 = por %p239, %p240
    %p242 = scmp.ne.s32.totalorder %s230, %s231
    %p243 = scmp.eq.s32.totalorder %s33, 1
    %p244 = por %p242, %p243
    %p246 = scmp.ne.s32.totalorder %s231, %s245
    %p247 = scmp.eq.s32.totalorder %s33, 0
    %p248 = por %p246, %p247
    %s250 = sadd.s32 %s249, 1
    %p253 = scmp.eq.s32.totalorder %s27, 1
    %p254 = scmp.ne.s32.totalorder %s249, %s251
    %p255 = scmp.eq.s32.totalorder %s27, 0
    %p256 = por %p254, %p255
    %p257 = scmp.ne.s32.totalorder %s249, %s251
    %p258 = scmp.eq.s32.totalorder %s32, 1
    %p259 = por %p257, %p258
    %p260 = scmp.ne.s32.totalorder %s251, %s252
    %p261 = scmp.eq.s32.totalorder %s32, 0
    %p262 = por %p260, %p261
    %p263 = scmp.ne.s32.totalorder %s251, %s252
    %p264 = scmp.eq.s32.totalorder %s33, 1
    %p265 = por %p263, %p264
    %p267 = scmp.ne.s32.totalorder %s252, %s266
    %p268 = scmp.eq.s32.totalorder %s33, 0
    %p269 = por %p267, %p268
    %s271 = sadd.s32 %s270, 1
    %p274 = scmp.eq.s32.totalorder %s27, 1
    %p275 = scmp.ne.s32.totalorder %s270, %s272
    %p276 = scmp.eq.s32.totalorder %s27, 0
    %p277 = por %p275, %p276
    %p278 = scmp.ne.s32.totalorder %s270, %s272
    %p279 = scmp.eq.s32.totalorder %s32, 1
    %p280 = por %p278, %p279
    %p281 = scmp.ne.s32.totalorder %s272, %s273
    %p282 = scmp.eq.s32.totalorder %s32, 0
    %p283 = por %p281, %p282
    %p284 = scmp.ne.s32.totalorder %s272, %s273
    %p285 = scmp.eq.s32.totalorder %s33, 1
    %p286 = por %p284, %p285
    %p288 = scmp.ne.s32.totalorder %s273, %s287
    %p289 = scmp.eq.s32.totalorder %s33, 0
    %p290 = por %p288, %p289
    %s292 = sadd.s32 %s291, 1
    %p295 = scmp.eq.s32.totalorder %s27, 1
    %p296 = scmp.ne.s32.totalorder %s291, %s293
    %p297 = scmp.eq.s32.totalorder %s27, 0
    %p298 = por %p296, %p297
    %p299 = scmp.ne.s32.totalorder %s291, %s293
    %p300 = scmp.eq.s32.totalorder %s32, 1
    %p301 = por %p299, %p300
    %p302 = scmp.ne.s32.totalorder %s293, %s294
    %p303 = scmp.eq.s32.totalorder %s32, 0
    %p304 = por %p302, %p303
    %p305 = scmp.ne.s32.totalorder %s293, %s294
    %p306 = scmp.eq.s32.totalorder %s33, 1
    %p307 = por %p305, %p306
    %p309 = scmp.ne.s32.totalorder %s294, %s308
    %p310 = scmp.eq.s32.totalorder %s33, 0
    %p311 = por %p309, %p310
    %s313 = sadd.s32 %s312, 1
    %p316 = scmp.eq.s32.totalorder %s27, 1
    %p317 = scmp.ne.s32.totalorder %s312, %s314
    %p318 = scmp.eq.s32.totalorder %s27, 0
    %p319 = por %p317, %p318
    %p320 = scmp.ne.s32.totalorder %s312, %s314
    %p321 = scmp.eq.s32.totalorder %s32, 1
    %p322 = por %p320, %p321
    %p323 = scmp.ne.s32.totalorder %s314, %s315
    %p324 = scmp.eq.s32.totalorder %s32, 0
    %p325 = por %p323, %p324
    %p326 = scmp.ne.s32.totalorder %s314, %s315
    %p327 = scmp.eq.s32.totalorder %s33, 1
    %p328 = por %p326, %p327
    %p330 = scmp.ne.s32.totalorder %s315, %s329
    %p331 = scmp.eq.s32.totalorder %s33, 0
    %p332 = por %p330, %p331
    %s334 = sadd.s32 %s333, 1
    %p337 = scmp.eq.s32.totalorder %s27, 1
    %p338 = scmp.ne.s32.totalorder %s333, %s335
    %p339 = scmp.eq.s32.totalorder %s27, 0
    %p340 = por %p338, %p339
    %p341 = scmp.ne.s32.totalorder %s333, %s335
    %p342 = scmp.eq.s32.totalorder %s32, 1
    %p343 = por %p341, %p342
    %p344 = scmp.ne.s32.totalorder %s335, %s336
    %p345 = scmp.eq.s32.totalorder %s32, 0
    %p346 = por %p344, %p345
    %p347 = scmp.ne.s32.totalorder %s335, %s336
    %p348 = scmp.eq.s32.totalorder %s33, 1
    %p349 = por %p347, %p348
    %p351 = scmp.ne.s32.totalorder %s336, %s350
    %p352 = scmp.eq.s32.totalorder %s33, 0
    %p353 = por %p351, %p352
    %s355 = sadd.s32 %s354, 1
    %p358 = scmp.eq.s32.totalorder %s27, 1
    %p359 = scmp.ne.s32.totalorder %s354, %s356
    %p360 = scmp.eq.s32.totalorder %s27, 0
    %p361 = por %p359, %p360
    %p362 = scmp.ne.s32.totalorder %s354, %s356
    %p363 = scmp.eq.s32.totalorder %s32, 1
    %p364 = por %p362, %p363
    %p365 = scmp.ne.s32.totalorder %s356, %s357
    %p366 = scmp.eq.s32.totalorder %s32, 0
    %p367 = por %p365, %p366
    %p368 = scmp.ne.s32.totalorder %s356, %s357
    %p369 = scmp.eq.s32.totalorder %s33, 1
    %p370 = por %p368, %p369
    %p372 = scmp.ne.s32.totalorder %s357, %s371
    %p373 = scmp.eq.s32.totalorder %s33, 0
    %p374 = por %p372, %p373
    %s376 = sadd.s32 %s375, 1
    %p379 = scmp.eq.s32.totalorder %s27, 1
    %p380 = scmp.ne.s32.totalorder %s375, %s377
    %p381 = scmp.eq.s32.totalorder %s27, 0
    %p382 = por %p380, %p381
    %p383 = scmp.ne.s32.totalorder %s375, %s377
    %p384 = scmp.eq.s32.totalorder %s32, 1
    %p385 = por %p383, %p384
    %p386 = scmp.ne.s32.totalorder %s377, %s378
    %p387 = scmp.eq.s32.totalorder %s32, 0
    %p388 = por %p386, %p387
    %p389 = scmp.ne.s32.totalorder %s377, %s378
    %p390 = scmp.eq.s32.totalorder %s33, 1
    %p391 = por %p389, %p390
    %p393 = scmp.ne.s32.totalorder %s378, %s392
    %p394 = scmp.eq.s32.totalorder %s33, 0
    %p395 = por %p393, %p394
    %s397 = sadd.s32 %s396, 1
    %p400 = scmp.eq.s32.totalorder %s27, 1
    %p401 = scmp.ne.s32.totalorder %s396, %s398
    %p402 = scmp.eq.s32.totalorder %s27, 0
    %p403 = por %p401, %p402
    %p404 = scmp.ne.s32.totalorder %s396, %s398
    %p405 = scmp.eq.s32.totalorder %s32, 1
    %p406 = por %p404, %p405
    %p407 = scmp.ne.s32.totalorder %s398, %s399
    %p408 = scmp.eq.s32.totalorder %s32, 0
    %p409 = por %p407, %p408
    %p410 = scmp.ne.s32.totalorder %s398, %s399
    %p411 = scmp.eq.s32.totalorder %s33, 1
    %p412 = por %p410, %p411
    %p414 = scmp.ne.s32.totalorder %s399, %s413
    %p415 = scmp.eq.s32.totalorder %s33, 0
    %p416 = por %p414, %p415
    %s418 = sadd.s32 %s417, 1
    %p421 = scmp.eq.s32.totalorder %s27, 1
    %p422 = scmp.ne.s32.totalorder %s417, %s419
    %p423 = scmp.eq.s32.totalorder %s27, 0
    %p424 = por %p422, %p423
    %p425 = scmp.ne.s32.totalorder %s417, %s419
    %p426 = scmp.eq.s32.totalorder %s32, 1
    %p427 = por %p425, %p426
    %p428 = scmp.ne.s32.totalorder %s419, %s420
    %p429 = scmp.eq.s32.totalorder %s32, 0
    %p430 = por %p428, %p429
    %p431 = scmp.ne.s32.totalorder %s419, %s420
    %p432 = scmp.eq.s32.totalorder %s33, 1
    %p433 = por %p431, %p432
    %p435 = scmp.ne.s32.totalorder %s420, %s434
    %p436 = scmp.eq.s32.totalorder %s33, 0
    %p437 = por %p435, %p436
    %s439 = sadd.s32 %s438, 1
    %p442 = scmp.eq.s32.totalorder %s27, 1
    %p443 = scmp.ne.s32.totalorder %s438, %s440
    %p444 = scmp.eq.s32.totalorder %s27, 0
    %p445 = por %p443, %p444
    %p446 = scmp.ne.s32.totalorder %s438, %s440
    %p447 = scmp.eq.s32.totalorder %s32, 1
    %p448 = por %p446, %p447
    %p449 = scmp.ne.s32.totalorder %s440, %s441
    %p450 = scmp.eq.s32.totalorder %s32, 0
    %p451 = por %p449, %p450
    %p452 = scmp.ne.s32.totalorder %s440, %s441
    %p453 = scmp.eq.s32.totalorder %s33, 1
    %p454 = por %p452, %p453
    %p456 = scmp.ne.s32.totalorder %s441, %s455
    %p457 = scmp.eq.s32.totalorder %s33, 0
    %p458 = por %p456, %p457
    %s459 = ssub.s32 %s27, %s34
    %p460 = scmp.eq.s32.totalorder %s459, 0
    %s462 = sadd.s32 %s461, 1
    %s463 = scalar_select %p460, %s461, %s462
    %p466 = pneg %p460
    %p467 = scmp.eq.s32.totalorder %s27, 1
    %p468 = por %p466, %p467
    %p469 = scmp.ne.s32.totalorder %s461, %s464
    %p470 = scmp.eq.s32.totalorder %s27, 0
    %p471 = por %p469, %p470
    %p472 = scmp.ne.s32.totalorder %s461, %s464
    %p473 = scmp.eq.s32.totalorder %s32, 1
    %p474 = por %p472, %p473
    %p475 = scmp.ne.s32.totalorder %s464, %s465
    %p476 = scmp.eq.s32.totalorder %s32, 0
    %p477 = por %p475, %p476
    %p478 = scmp.ne.s32.totalorder %s464, %s465
    %p479 = scmp.eq.s32.totalorder %s33, 1
    %p480 = por %p478, %p479
    %p482 = scmp.ne.s32.totalorder %s465, %s481
    %p483 = scmp.eq.s32.totalorder %s33, 0
    %p484 = por %p482, %p483
    %s485 = ssub.s32 %s27, %s34
    %p486 = scmp.eq.s32.totalorder %s485, 0
    %s488 = sadd.s32 %s487, 1
    %s489 = scalar_select %p486, %s487, %s488
    %p492 = pneg %p486
    %p493 = scmp.eq.s32.totalorder %s27, 1
    %p494 = por %p492, %p493
    %p495 = scmp.ne.s32.totalorder %s487, %s490
    %p496 = scmp.eq.s32.totalorder %s27, 0
    %p497 = por %p495, %p496
    %p498 = scmp.ne.s32.totalorder %s487, %s490
    %p499 = scmp.eq.s32.totalorder %s32, 1
    %p500 = por %p498, %p499
    %p501 = scmp.ne.s32.totalorder %s490, %s491
    %p502 = scmp.eq.s32.totalorder %s32, 0
    %p503 = por %p501, %p502
    %p504 = scmp.ne.s32.totalorder %s490, %s491
    %p505 = scmp.eq.s32.totalorder %s33, 1
    %p506 = por %p504, %p505
    %p508 = scmp.ne.s32.totalorder %s491, %s507
    %p509 = scmp.eq.s32.totalorder %s33, 0
    %p510 = por %p508, %p509
    %p511 = scmp.le.s32.totalorder 1, %s27
    %p512 = scmp.lt.s32.totalorder %s27, 3
    %p513 = pnand %p511, %p512
    %p514 = pneg %p513
    // Predicated region
    $region9: #{diffab_forward.13} parent=5 // pred_check
      _
    $region10: #{diffab_forward.13} parent=5 // pred_check_branch
      %516 = sbr.rel (%p513) target = $region12
    $region11: #{diffab_forward.13} parent=5 // pred_region
      %s517 = ssub.s32 %s27, 1
      // Predicated region
      $region13: #{diffab_forward.13} parent=11 // pred_check
        %p518 = pneg %p178
      $region14: #{diffab_forward.13} parent=11 // pred_check_branch
        %520 = sbr.rel (%p518) target = $region16
      $region15: #{diffab_forward.13} parent=11 // pred_region
        _
      $region16: #{diffab_forward.13} parent=11 // pred_fallthru
        _
      // Predicated region
      $region17: #{diffab_forward.13} parent=11 // pred_check
        %p521 = pneg %p199
      $region18: #{diffab_forward.13} parent=11 // pred_check_branch
        %523 = sbr.rel (%p521) target = $region20
      $region19: #{diffab_forward.13} parent=11 // pred_region
        _
      $region20: #{diffab_forward.13} parent=11 // pred_fallthru
        _
      // Predicated region
      $region21: #{diffab_forward.13} parent=11 // pred_check
        %p524 = pneg %p220
      $region22: #{diffab_forward.13} parent=11 // pred_check_branch
        %526 = sbr.rel (%p524) target = $region24
      $region23: #{diffab_forward.13} parent=11 // pred_region
        _
      $region24: #{diffab_forward.13} parent=11 // pred_fallthru
        _
      // Predicated region
      $region25: #{diffab_forward.13} parent=11 // pred_check
        %p527 = pneg %p241
      $region26: #{diffab_forward.13} parent=11 // pred_check_branch
        %529 = sbr.rel (%p527) target = $region28
      $region27: #{diffab_forward.13} parent=11 // pred_region
        _
      $region28: #{diffab_forward.13} parent=11 // pred_fallthru
        _
      // Predicated region
      $region29: #{diffab_forward.13} parent=11 // pred_check
        %p530 = pneg %p262
      $region30: #{diffab_forward.13} parent=11 // pred_check_branch
        %532 = sbr.rel (%p530) target = $region32
      $region31: #{diffab_forward.13} parent=11 // pred_region
        _
      $region32: #{diffab_forward.13} parent=11 // pred_fallthru
        _
      // Predicated region
      $region33: #{diffab_forward.13} parent=11 // pred_check
        %p533 = pneg %p283
      $region34: #{diffab_forward.13} parent=11 // pred_check_branch
        %535 = sbr.rel (%p533) target = $region36
      $region35: #{diffab_forward.13} parent=11 // pred_region
        _
      $region36: #{diffab_forward.13} parent=11 // pred_fallthru
        _
      // Predicated region
      $region37: #{diffab_forward.13} parent=11 // pred_check
        %p536 = pneg %p304
      $region38: #{diffab_forward.13} parent=11 // pred_check_branch
        %538 = sbr.rel (%p536) target = $region40
      $region39: #{diffab_forward.13} parent=11 // pred_region
        _
      $region40: #{diffab_forward.13} parent=11 // pred_fallthru
        _
      // Predicated region
      $region41: #{diffab_forward.13} parent=11 // pred_check
        %p539 = pneg %p325
      $region42: #{diffab_forward.13} parent=11 // pred_check_branch
        %541 = sbr.rel (%p539) target = $region44
      $region43: #{diffab_forward.13} parent=11 // pred_region
        _
      $region44: #{diffab_forward.13} parent=11 // pred_fallthru
        _
      // Predicated region
      $region45: #{diffab_forward.13} parent=11 // pred_check
        %p542 = pneg %p346
      $region46: #{diffab_forward.13} parent=11 // pred_check_branch
        %544 = sbr.rel (%p542) target = $region48
      $region47: #{diffab_forward.13} parent=11 // pred_region
        _
      $region48: #{diffab_forward.13} parent=11 // pred_fallthru
        _
      // Predicated region
      $region49: #{diffab_forward.13} parent=11 // pred_check
        %p545 = pneg %p367
      $region50: #{diffab_forward.13} parent=11 // pred_check_branch
        %547 = sbr.rel (%p545) target = $region52
      $region51: #{diffab_forward.13} parent=11 // pred_region
        _
      $region52: #{diffab_forward.13} parent=11 // pred_fallthru
        _
      // Predicated region
      $region53: #{diffab_forward.13} parent=11 // pred_check
        %p548 = pneg %p388
      $region54: #{diffab_forward.13} parent=11 // pred_check_branch
        %550 = sbr.rel (%p548) target = $region56
      $region55: #{diffab_forward.13} parent=11 // pred_region
        _
      $region56: #{diffab_forward.13} parent=11 // pred_fallthru
        _
      // Predicated region
      $region57: #{diffab_forward.13} parent=11 // pred_check
        %p551 = pneg %p409
      $region58: #{diffab_forward.13} parent=11 // pred_check_branch
        %553 = sbr.rel (%p551) target = $region60
      $region59: #{diffab_forward.13} parent=11 // pred_region
        _
      $region60: #{diffab_forward.13} parent=11 // pred_fallthru
        _
      // Predicated region
      $region61: #{diffab_forward.13} parent=11 // pred_check
        %p554 = pneg %p430
      $region62: #{diffab_forward.13} parent=11 // pred_check_branch
        %556 = sbr.rel (%p554) target = $region64
      $region63: #{diffab_forward.13} parent=11 // pred_region
        _
      $region64: #{diffab_forward.13} parent=11 // pred_fallthru
        _
      // Predicated region
      $region65: #{diffab_forward.13} parent=11 // pred_check
        %p557 = pneg %p451
      $region66: #{diffab_forward.13} parent=11 // pred_check_branch
        %559 = sbr.rel (%p557) target = $region68
      $region67: #{diffab_forward.13} parent=11 // pred_region
        _
      $region68: #{diffab_forward.13} parent=11 // pred_fallthru
        _
    $region12: #{diffab_forward.13} parent=5 // pred_fallthru
      _
    %p560 = scmp.lt.s32.totalorder %s27, 2
    // Predicated region
    $region69: #{diffab_forward.13} parent=5 // pred_check
      %p561 = pneg %p560
    $region70: #{diffab_forward.13} parent=5 // pred_check_branch
      %563 = sbr.rel (%p561) target = $region72
    $region71: #{diffab_forward.13} parent=5 // pred_region
      // Predicated region
      $region73: #{diffab_forward.13} parent=71 // pred_check
        %p564 = pneg %p47
      $region74: #{diffab_forward.13} parent=71 // pred_check_branch
        %566 = sbr.rel (%p564) target = $region76
      $region75: #{diffab_forward.13} parent=71 // pred_region
        %s567 = smul.u32 8, %s27
        %p568 = scmp.lt.s32.totalorder %s567, 15
        %s569 = scalar_select %p568, %s567, 15
        %s570 = smul.addr %s569, 4
        %s571 = scalar_lea.vmem %s0, %s570
        %s572 = smul.u32 8, %s27
      $region76: #{diffab_forward.13} parent=71 // pred_fallthru
        _
      // Predicated region
      $region77: #{diffab_forward.13} parent=71 // pred_check
        %p573 = pneg %p73
      $region78: #{diffab_forward.13} parent=71 // pred_check_branch
        %575 = sbr.rel (%p573) target = $region80
      $region79: #{diffab_forward.13} parent=71 // pred_region
        %s576 = smul.u32 8, %s27
        %p577 = scmp.lt.s32.totalorder %s576, 15
        %s578 = scalar_select %p577, %s576, 15
        %s579 = smul.addr %s578, 4
        %s580 = scalar_lea.vmem %s1, %s579
        %s581 = smul.u32 8, %s27
      $region80: #{diffab_forward.13} parent=71 // pred_fallthru
        _
      // Predicated region
      $region81: #{diffab_forward.13} parent=71 // pred_check
        %p582 = pneg %p99
      $region82: #{diffab_forward.13} parent=71 // pred_check_branch
        %584 = sbr.rel (%p582) target = $region84
      $region83: #{diffab_forward.13} parent=71 // pred_region
        %s585 = smul.u32 8, %s27
        %p586 = scmp.lt.s32.totalorder %s585, 15
        %s587 = scalar_select %p586, %s585, 15
        %s588 = smul.addr %s587, 4
        %s589 = scalar_lea.vmem %s2, %s588
        %s590 = smul.u32 8, %s27
      $region84: #{diffab_forward.13} parent=71 // pred_fallthru
        _
      // Predicated region
      $region85: #{diffab_forward.13} parent=71 // pred_check
        %p591 = pneg %p125
      $region86: #{diffab_forward.13} parent=71 // pred_check_branch
        %593 = sbr.rel (%p591) target = $region88
      $region87: #{diffab_forward.13} parent=71 // pred_region
        %s594 = smul.u32 8, %s27
        %p595 = scmp.lt.s32.totalorder %s594, 15
        %s596 = scalar_select %p595, %s594, 15
        %s597 = smul.addr %s596, 4
        %s598 = scalar_lea.vmem %s3, %s597
        %s599 = smul.u32 8, %s27
      $region88: #{diffab_forward.13} parent=71 // pred_fallthru
        _
      // Predicated region
      $region89: #{diffab_forward.13} parent=71 // pred_check
        %p600 = pneg %p151
      $region90: #{diffab_forward.13} parent=71 // pred_check_branch
        %602 = sbr.rel (%p600) target = $region92
      $region91: #{diffab_forward.13} parent=71 // pred_region
        %s603 = smul.u32 8, %s27
        %p604 = scmp.lt.s32.totalorder %s603, 15
        %s605 = scalar_select %p604, %s603, 15
        %s606 = smul.addr %s605, 4
        %s607 = scalar_lea.vmem %s4, %s606
        %s608 = smul.u32 8, %s27
      $region92: #{diffab_forward.13} parent=71 // pred_fallthru
        _
    $region72: #{diffab_forward.13} parent=5 // pred_fallthru
      _
    %p609 = scmp.le.s32.totalorder 1, %s27
    %p610 = scmp.lt.s32.totalorder %s27, 3
    %p611 = pnand %p609, %p610
    %p612 = pneg %p611
    // Predicated region
    $region93: #{diffab_forward.13} parent=5 // pred_check
      _
    $region94: #{diffab_forward.13} parent=5 // pred_check_branch
      %614 = sbr.rel (%p611) target = $region96
    $region95: #{diffab_forward.13} parent=5 // pred_region
      %s615 = ssub.s32 %s27, 1
      %s616 = smul.u32 8, %s32
      %p617 = scmp.lt.s32.totalorder %s616, 15
      %s618 = scalar_select %p617, %s616, 15
      %s619 = smul.addr %s618, 4
      %s620 = scalar_lea.vmem %s0, %s619
      %p621 = pneg %p53
      %p622 = pneg %p50
      %s623 = smul.u32 8, %s32
      %p624 = scmp.lt.s32.totalorder %s623, 15
      %s625 = scalar_select %p624, %s623, 15
      %s626 = smul.addr %s625, 4
      %s627 = scalar_lea.vmem %s1, %s626
      %p628 = pneg %p79
      %p629 = pneg %p76
      %s630 = smul.u32 8, %s32
      %p631 = scmp.lt.s32.totalorder %s630, 15
      %s632 = scalar_select %p631, %s630, 15
      %s633 = smul.addr %s632, 4
      %s634 = scalar_lea.vmem %s2, %s633
      %p635 = pneg %p105
      %p636 = pneg %p102
      %s637 = smul.u32 8, %s32
      %p638 = scmp.lt.s32.totalorder %s637, 15
      %s639 = scalar_select %p638, %s637, 15
      %s640 = smul.addr %s639, 4
      %s641 = scalar_lea.vmem %s3, %s640
      %p642 = pneg %p131
      %p643 = pneg %p128
      %s644 = smul.u32 8, %s32
      %p645 = scmp.lt.s32.totalorder %s644, 15
      %s646 = scalar_select %p645, %s644, 15
      %s647 = smul.addr %s646, 4
      %s648 = scalar_lea.vmem %s4, %s647
      %p649 = pneg %p157
      %p650 = pneg %p154
      %p651 = pneg %p178
      %p652 = pneg %p175
      %p653 = pneg %p199
      %p654 = pneg %p196
      %p655 = pneg %p220
      %p656 = pneg %p217
      %p657 = pneg %p241
      %p658 = pneg %p238
      %p659 = pneg %p262
      %p660 = pneg %p259
      %p661 = pneg %p283
      %p662 = pneg %p280
      %p663 = pneg %p304
      %p664 = pneg %p301
      %p665 = pneg %p325
      %p666 = pneg %p322
      %p667 = pneg %p346
      %p668 = pneg %p343
      %p669 = pneg %p367
      %p670 = pneg %p364
      %p671 = pneg %p388
      %p672 = pneg %p385
      %p673 = pneg %p409
      %p674 = pneg %p406
      %p675 = pneg %p430
      %p676 = pneg %p427
      %p677 = pneg %p451
      %p678 = pneg %p448
      %p679 = pneg %p477
      %p680 = pneg %p474
      %s681 = smul.u32 8, %s32
      %p682 = scmp.lt.s32.totalorder %s681, 15
      %s683 = scalar_select %p682, %s681, 15
      %s684 = smul.addr %s683, 4
      %s685 = scalar_lea.vmem %s19, %s684
      %p686 = pneg %p503
      %p687 = pneg %p500
      %s688 = smul.u32 8, %s32
      %p689 = scmp.lt.s32.totalorder %s688, 15
      %s690 = scalar_select %p689, %s688, 15
      %s691 = smul.addr %s690, 8
      %s692 = scalar_lea.vmem %s20, %s691
      %s693 = smul.u32 8, %s32
      %p694 = scmp.lt.s32.totalorder %s693, 15
      %s695 = scalar_select %p694, %s693, 15
      %s696 = smul.addr %s695, 4
      %s697 = scalar_lea.vmem %s0, %s696
      %s698 = smul.u32 8, %s32
      %s699 = smul.u32 8, %s32
      %p700 = scmp.lt.s32.totalorder %s699, 15
      %s701 = scalar_select %p700, %s699, 15
      %s702 = smul.addr %s701, 4
      %s703 = scalar_lea.vmem %s1, %s702
      %s704 = smul.u32 8, %s32
      %s705 = smul.u32 8, %s32
      %p706 = scmp.lt.s32.totalorder %s705, 15
      %s707 = scalar_select %p706, %s705, 15
      %s708 = smul.addr %s707, 4
      %s709 = scalar_lea.vmem %s2, %s708
      %s710 = smul.u32 8, %s32
      %s711 = smul.u32 8, %s32
      %p712 = scmp.lt.s32.totalorder %s711, 15
      %s713 = scalar_select %p712, %s711, 15
      %s714 = smul.addr %s713, 4
      %s715 = scalar_lea.vmem %s3, %s714
      %s716 = smul.u32 8, %s32
      %s717 = smul.u32 8, %s32
      %p718 = scmp.lt.s32.totalorder %s717, 15
      %s719 = scalar_select %p718, %s717, 15
      %s720 = smul.addr %s719, 4
      %s721 = scalar_lea.vmem %s4, %s720
      %s722 = smul.u32 8, %s32
      %s723 = smul.u32 8, %s32
      %p724 = scmp.lt.s32.totalorder %s723, 15
      %s725 = scalar_select %p724, %s723, 15
      %s726 = smul.addr %s725, 4
      %s727 = scalar_lea.vmem %s19, %s726
      %s728 = smul.u32 8, %s32
      %s729 = smul.u32 8, %s32
      %p730 = scmp.lt.s32.totalorder %s729, 15
      %s731 = scalar_select %p730, %s729, 15
      %s732 = smul.addr %s731, 8
      %s733 = scalar_lea.vmem %s20, %s732
      %s734 = smul.u32 8, %s32
      %v736 = vld [vmem:[%s721] sm:$0xf]
      %v737 = vld [vmem:[%s721 + $0x4] sm:$0xf]
      %v738 = vld [vmem:[%s721 + $0x8] sm:$0xf]
      %v739 = vld [vmem:[%s721 + $0xc] sm:$0xf]
      %v740 = vld [vmem:[%s721 + $0x10] sm:$0xf]
      %v741 = vld [vmem:[%s721 + $0x14] sm:$0xf]
      %v742 = vld [vmem:[%s721 + $0x18] sm:$0xf]
      %v743 = vld [vmem:[%s721 + $0x1c] sm:$0xf]
      %v744 = vunpack.c.l.bf16 %v736
      %v745 = vunpack.c.l.bf16 %v737
      %v746 = vunpack.c.l.bf16 %v738
      %v747 = vunpack.c.l.bf16 %v739
      %v748 = vunpack.c.l.bf16 %v740
      %v749 = vunpack.c.l.bf16 %v741
      %v750 = vunpack.c.l.bf16 %v742
      %v751 = vunpack.c.l.bf16 %v743
      %v752 = vld [vmem:[%s709] sm:$0xf]
      %v753 = vld [vmem:[%s709 + $0x4] sm:$0xf]
      %v754 = vld [vmem:[%s709 + $0x8] sm:$0xf]
      %v755 = vld [vmem:[%s709 + $0xc] sm:$0xf]
      %v756 = vld [vmem:[%s709 + $0x10] sm:$0xf]
      %v757 = vld [vmem:[%s709 + $0x14] sm:$0xf]
      %v758 = vld [vmem:[%s709 + $0x18] sm:$0xf]
      %v759 = vld [vmem:[%s709 + $0x1c] sm:$0xf]
      %v760 = vld [vmem:[%s5] sm:$0xf]
      %v761 = vld [vmem:[%s5 + $0x4] sm:$0xf]
      %v762 = vld [vmem:[%s5 + $0x8] sm:$0xf]
      %v763 = vld [vmem:[%s5 + $0xc] sm:$0x1]
      %v764 = vld [vmem:[%s6] sm:$0x1]
      %v766 = vperm.slane %v764, 0
      %v776 = vunpack.c.l.b16 %v752
      %v777 = vunpack.c.l.b16 %v753
      %v778 = vunpack.c.l.b16 %v754
      %v779 = vunpack.c.l.b16 %v755
      %v780 = vunpack.c.l.b16 %v756
      %v781 = vunpack.c.l.b16 %v757
      %v782 = vunpack.c.l.b16 %v758
      %v783 = vunpack.c.l.b16 %v759
      %v784 = vpack.c.b16 %v777, %v776
      %v785 = vpack.c.b16 %v779, %v778
      %v786 = vpack.c.b16 %v781, %v780
      %v787 = vpack.c.b16 %v783, %v782
      %v792 = vunpack.c.l.b16 %v760
      %v793 = vunpack.c.l.b16 %v761
      %v794 = vunpack.c.l.b16 %v762
      %v795 = vunpack.c.l.b16 %v763
      %v796 = vpack.c.b16 %v793, %v792
      %v797 = vpack.c.b16 %v795, %v794
      %vm799 = vcmask 203776
      %v801 = vsel %vm799, %v784, 0
      %v804 = vsel %vm799, %v785, 0
      %v807 = vsel %vm799, %v786, 0
      %v810 = vsel %vm799, %v787, 0
      %vm812 = vcmask 1043456
      %vm813 = vcmask 1044480
      %v814 = vsel %vm812, 4294967295, 65535
      %v815 = vsel %vm813, %v814, 0
      %v817 = vand.u32 %v797, %v815
      %819 = vmatpush.bf16.msra.mxu0 0
      %820 = vmatpush.bf16.msra.mxu0 0
      %821 = vmatpush.bf16.msra.mxu0 0
      %822 = vmatpush.bf16.msra.mxu0 0
      %823 = vmatpush.bf16.msra.mxu0 0
      %824 = vmatpush.bf16.msra.mxu0 0
      %825 = vmatpush.bf16.msra.mxu0 %v817
      %826 = vmatpush.bf16.msra.mxu0 %v796
      %827 = vmatmul.bf16.gmra.mxu0 %v801
      %v828 = vpop.f32.mrf.mxu0
      %v829 = vadd.f32 %v766, %v828
      %v830 = vpop.f32.mrf.mxu0
      %v831 = vadd.f32 %v766, %v830
      %832 = vmatmul.bf16.gmra.mxu0 %v804
      %v833 = vpop.f32.mrf.mxu0
      %v834 = vadd.f32 %v766, %v833
      %v835 = vpop.f32.mrf.mxu0
      %v836 = vadd.f32 %v766, %v835
      %837 = vmatmul.bf16.gmra.mxu0 %v807
      %v838 = vpop.f32.mrf.mxu0
      %v839 = vadd.f32 %v766, %v838
      %v840 = vpop.f32.mrf.mxu0
      %v841 = vadd.f32 %v766, %v840
      %842 = vmatmul.bf16.gmra.mxu0 %v810
      %v843 = vpop.f32.mrf.mxu0
      %v844 = vadd.f32 %v766, %v843
      %v845 = vpop.f32.mrf.mxu0
      %v846 = vadd.f32 %v766, %v845
      %847 = vdwg.mxu0
      %v848 = vmax.f32 %v829, 0.0
      %v849 = vmax.f32 %v831, 0.0
      %v850 = vmax.f32 %v834, 0.0
      %v851 = vmax.f32 %v836, 0.0
      %v852 = vmax.f32 %v839, 0.0
      %v853 = vmax.f32 %v841, 0.0
      %v854 = vmax.f32 %v844, 0.0
      %v855 = vmax.f32 %v846, 0.0
      %v856 = vpack.c.bf16 %v849, %v848
      %v857 = vpack.c.bf16 %v851, %v850
      %v858 = vpack.c.bf16 %v853, %v852
      %v859 = vpack.c.bf16 %v855, %v854
      %v860 = vld [vmem:[%s7] sm:$0xf]
      %v861 = vld [vmem:[%s7 + $0x4] sm:$0xf]
      %v862 = vld [vmem:[%s7 + $0x8] sm:$0xf]
      %v863 = vld [vmem:[%s7 + $0xc] sm:$0xf]
      %v864 = vld [vmem:[%s8] sm:$0x1]
      %v866 = vperm.slane %v864, 0
      %v872 = vunpack.c.l.b16 %v860
      %v873 = vunpack.c.l.b16 %v861
      %v874 = vunpack.c.l.b16 %v862
      %v875 = vunpack.c.l.b16 %v863
      %v876 = vpack.c.b16 %v873, %v872
      %v877 = vpack.c.b16 %v875, %v874
      %vm880 = vcmask 261120
      %v882 = vsel %vm880, %v856, 0
      %v885 = vsel %vm880, %v857, 0
      %v888 = vsel %vm880, %v858, 0
      %v891 = vsel %vm880, %v859, 0
      %893 = vmatpush.bf16.msra.mxu0 0
      %894 = vmatpush.bf16.msra.mxu0 0
      %895 = vmatpush.bf16.msra.mxu0 0
      %896 = vmatpush.bf16.msra.mxu0 0
      %897 = vmatpush.bf16.msra.mxu0 0
      %898 = vmatpush.bf16.msra.mxu0 0
      %899 = vmatpush.bf16.msra.mxu0 %v877
      %900 = vmatpush.bf16.msra.mxu0 %v876
      %901 = vmatmul.bf16.gmra.mxu0 %v882
      %v902 = vpop.f32.mrf.mxu0
      %v903 = vadd.f32 %v866, %v902
      %v904 = vpop.f32.mrf.mxu0
      %v905 = vadd.f32 %v866, %v904
      %906 = vmatmul.bf16.gmra.mxu0 %v885
      %v907 = vpop.f32.mrf.mxu0
      %v908 = vadd.f32 %v866, %v907
      %v909 = vpop.f32.mrf.mxu0
      %v910 = vadd.f32 %v866, %v909
      %911 = vmatmul.bf16.gmra.mxu0 %v888
      %v912 = vpop.f32.mrf.mxu0
      %v913 = vadd.f32 %v866, %v912
      %v914 = vpop.f32.mrf.mxu0
      %v915 = vadd.f32 %v866, %v914
      %916 = vmatmul.bf16.gmra.mxu0 %v891
      %v917 = vpop.f32.mrf.mxu0
      %v918 = vadd.f32 %v866, %v917
      %v919 = vpop.f32.mrf.mxu0
      %v920 = vadd.f32 %v866, %v919
      %921 = vdwg.mxu0
      %v922 = vmax.f32 %v903, 0.0
      %v923 = vmax.f32 %v905, 0.0
      %v924 = vmax.f32 %v908, 0.0
      %v925 = vmax.f32 %v910, 0.0
      %v926 = vmax.f32 %v913, 0.0
      %v927 = vmax.f32 %v915, 0.0
      %v928 = vmax.f32 %v918, 0.0
      %v929 = vmax.f32 %v920, 0.0
      %931 = vset.pattern.permute.xlu0 0
      %932 = vperm.xlu0 %931, %v744
      %v933 = vpop.permute.xlu0 %932
      %936 = vset.pattern.permute.xlu0 0
      %937 = vperm.xlu0 %936, %v745
      %v938 = vpop.permute.xlu0 %937
      %941 = vset.pattern.permute.xlu0 0
      %942 = vperm.xlu0 %941, %v746
      %v943 = vpop.permute.xlu0 %942
      %946 = vset.pattern.permute.xlu0 0
      %947 = vperm.xlu0 %946, %v747
      %v948 = vpop.permute.xlu0 %947
      %951 = vset.pattern.permute.xlu0 0
      %952 = vperm.xlu0 %951, %v748
      %v953 = vpop.permute.xlu0 %952
      %956 = vset.pattern.permute.xlu0 0
      %957 = vperm.xlu0 %956, %v749
      %v958 = vpop.permute.xlu0 %957
      %961 = vset.pattern.permute.xlu0 0
      %962 = vperm.xlu0 %961, %v750
      %v963 = vpop.permute.xlu0 %962
      %966 = vset.pattern.permute.xlu0 0
      %967 = vperm.xlu0 %966, %v751
      %v968 = vpop.permute.xlu0 %967
      %v970 = vmul.f32 %v922, %v933
      %v971 = vmul.f32 %v923, %v938
      %v972 = vmul.f32 %v924, %v943
      %v973 = vmul.f32 %v925, %v948
      %v974 = vmul.f32 %v926, %v953
      %v975 = vmul.f32 %v927, %v958
      %v976 = vmul.f32 %v928, %v963
      %v977 = vmul.f32 %v929, %v968
      %v978 = vpack.c.bf16 %v971, %v970
      %v979 = vpack.c.bf16 %v973, %v972
      %v980 = vpack.c.bf16 %v975, %v974
      %v981 = vpack.c.bf16 %v977, %v976
      %v982 = vld [vmem:[%s715] sm:$0xf]
      %v983 = vld [vmem:[%s715 + $0x4] sm:$0xf]
      %v984 = vld [vmem:[%s715 + $0x8] sm:$0xf]
      %v985 = vld [vmem:[%s715 + $0xc] sm:$0xf]
      %v986 = vld [vmem:[%s715 + $0x10] sm:$0xf]
      %v987 = vld [vmem:[%s715 + $0x14] sm:$0xf]
      %v988 = vld [vmem:[%s715 + $0x18] sm:$0xf]
      %v989 = vld [vmem:[%s715 + $0x1c] sm:$0xf]
      %v990 = vunpack.c.l.bf16 %v982
      %v991 = vunpack.c.l.bf16 %v983
      %v992 = vunpack.c.l.bf16 %v984
      %v993 = vunpack.c.l.bf16 %v985
      %v994 = vunpack.c.l.bf16 %v986
      %v995 = vunpack.c.l.bf16 %v987
      %v996 = vunpack.c.l.bf16 %v988
      %v997 = vunpack.c.l.bf16 %v989
      %v998 = vmul.f32 %v990, %v933
      %v999 = vmul.f32 %v991, %v938
      %v1000 = vmul.f32 %v992, %v943
      %v1001 = vmul.f32 %v993, %v948
      %v1002 = vmul.f32 %v994, %v953
      %v1003 = vmul.f32 %v995, %v958
      %v1004 = vmul.f32 %v996, %v963
      %v1005 = vmul.f32 %v997, %v968
      %v1006 = vpack.c.bf16 %v999, %v998
      %v1007 = vpack.c.bf16 %v1001, %v1000
      %v1008 = vpack.c.bf16 %v1003, %v1002
      %v1009 = vpack.c.bf16 %v1005, %v1004
      %v1010 = vld [vmem:[%s697] sm:$0xf]
      %v1011 = vld [vmem:[%s697 + $0x4] sm:$0xf]
      %v1012 = vld [vmem:[%s697 + $0x8] sm:$0xf]
      %v1013 = vld [vmem:[%s697 + $0xc] sm:$0xf]
      %v1014 = vld [vmem:[%s697 + $0x10] sm:$0xf]
      %v1015 = vld [vmem:[%s697 + $0x14] sm:$0xf]
      %v1016 = vld [vmem:[%s697 + $0x18] sm:$0xf]
      %v1017 = vld [vmem:[%s697 + $0x1c] sm:$0xf]
      %v1018 = vld [vmem:[%s9] sm:$0xf]
      %v1019 = vld [vmem:[%s9 + $0x4] sm:$0xf]
      %v1020 = vld [vmem:[%s9 + $0x8] sm:$0xf]
      %v1021 = vld [vmem:[%s9 + $0xc] sm:$0xf]
      %v1022 = vld [vmem:[%s703] sm:$0xf]
      %v1023 = vld [vmem:[%s703 + $0x4] sm:$0xf]
      %v1024 = vld [vmem:[%s703 + $0x8] sm:$0xf]
      %v1025 = vld [vmem:[%s703 + $0xc] sm:$0xf]
      %v1026 = vld [vmem:[%s703 + $0x10] sm:$0xf]
      %v1027 = vld [vmem:[%s703 + $0x14] sm:$0xf]
      %v1028 = vld [vmem:[%s703 + $0x18] sm:$0xf]
      %v1029 = vld [vmem:[%s703 + $0x1c] sm:$0xf]
      %v1030 = vld [vmem:[%s10] sm:$0xf]
      %v1031 = vld [vmem:[%s10 + $0x4] sm:$0xf]
      %v1032 = vld [vmem:[%s10 + $0x8] sm:$0xf]
      %v1033 = vld [vmem:[%s10 + $0xc] sm:$0xf]
      %v1042 = vunpack.c.l.b16 %v1022
      %v1043 = vunpack.c.l.b16 %v1023
      %v1044 = vunpack.c.l.b16 %v1024
      %v1045 = vunpack.c.l.b16 %v1025
      %v1046 = vunpack.c.l.b16 %v1026
      %v1047 = vunpack.c.l.b16 %v1027
      %v1048 = vunpack.c.l.b16 %v1028
      %v1049 = vunpack.c.l.b16 %v1029
      %v1050 = vpack.c.b16 %v1043, %v1042
      %v1051 = vpack.c.b16 %v1045, %v1044
      %v1052 = vpack.c.b16 %v1047, %v1046
      %v1053 = vpack.c.b16 %v1049, %v1048
      %v1058 = vunpack.c.l.b16 %v1030
      %v1059 = vunpack.c.l.b16 %v1031
      %v1060 = vunpack.c.l.b16 %v1032
      %v1061 = vunpack.c.l.b16 %v1033
      %v1062 = vpack.c.b16 %v1059, %v1058
      %v1063 = vpack.c.b16 %v1061, %v1060
      %v1067 = vsel %vm880, %v1050, 0
      %v1070 = vsel %vm880, %v1051, 0
      %v1073 = vsel %vm880, %v1052, 0
      %v1076 = vsel %vm880, %v1053, 0
      %1078 = vmatpush.bf16.msra.mxu0 0
      %1079 = vmatpush.bf16.msra.mxu0 0
      %1080 = vmatpush.bf16.msra.mxu0 0
      %1081 = vmatpush.bf16.msra.mxu0 0
      %1082 = vmatpush.bf16.msra.mxu0 0
      %1083 = vmatpush.bf16.msra.mxu0 0
      %1084 = vmatpush.bf16.msra.mxu0 %v1063
      %1085 = vmatpush.bf16.msra.mxu0 %v1062
      %1086 = vmatmul.bf16.gmra.mxu0 %v1067
      %v1087 = vpop.f32.mrf.mxu0
      %v1088 = vadd.f32 0.0, %v1087
      %v1089 = vpop.f32.mrf.mxu0
      %v1090 = vadd.f32 0.0, %v1089
      %1091 = vmatmul.bf16.gmra.mxu0 %v1070
      %v1092 = vpop.f32.mrf.mxu0
      %v1093 = vadd.f32 0.0, %v1092
      %v1094 = vpop.f32.mrf.mxu0
      %v1095 = vadd.f32 0.0, %v1094
      %1096 = vmatmul.bf16.gmra.mxu0 %v1073
      %v1097 = vpop.f32.mrf.mxu0
      %v1098 = vadd.f32 0.0, %v1097
      %v1099 = vpop.f32.mrf.mxu0
      %v1100 = vadd.f32 0.0, %v1099
      %1101 = vmatmul.bf16.gmra.mxu0 %v1076
      %v1102 = vpop.f32.mrf.mxu0
      %v1103 = vadd.f32 0.0, %v1102
      %v1104 = vpop.f32.mrf.mxu0
      %v1105 = vadd.f32 0.0, %v1104
      %1106 = vdwg.mxu0
      %v1115 = vunpack.c.l.b16 %v1010
      %v1116 = vunpack.c.l.b16 %v1011
      %v1117 = vunpack.c.l.b16 %v1012
      %v1118 = vunpack.c.l.b16 %v1013
      %v1119 = vunpack.c.l.b16 %v1014
      %v1120 = vunpack.c.l.b16 %v1015
      %v1121 = vunpack.c.l.b16 %v1016
      %v1122 = vunpack.c.l.b16 %v1017
      %v1123 = vpack.c.b16 %v1116, %v1115
      %v1124 = vpack.c.b16 %v1118, %v1117
      %v1125 = vpack.c.b16 %v1120, %v1119
      %v1126 = vpack.c.b16 %v1122, %v1121
      %v1131 = vunpack.c.l.b16 %v1018
      %v1132 = vunpack.c.l.b16 %v1019
      %v1133 = vunpack.c.l.b16 %v1020
      %v1134 = vunpack.c.l.b16 %v1021
      %v1135 = vpack.c.b16 %v1132, %v1131
      %v1136 = vpack.c.b16 %v1134, %v1133
      %v1140 = vsel %vm880, %v1123, 0
      %v1143 = vsel %vm880, %v1124, 0
      %v1146 = vsel %vm880, %v1125, 0
      %v1149 = vsel %vm880, %v1126, 0
      %1151 = vmatpush.bf16.msra.mxu0 0
      %1152 = vmatpush.bf16.msra.mxu0 0
      %1153 = vmatpush.bf16.msra.mxu0 0
      %1154 = vmatpush.bf16.msra.mxu0 0
      %1155 = vmatpush.bf16.msra.mxu0 0
      %1156 = vmatpush.bf16.msra.mxu0 0
      %1157 = vmatpush.bf16.msra.mxu0 %v1136
      %1158 = vmatpush.bf16.msra.mxu0 %v1135
      %1159 = vmatmul.bf16.gmra.mxu0 %v1140
      %v1160 = vpop.f32.mrf.mxu0
      %v1161 = vadd.f32 %v1088, %v1160
      %v1162 = vpop.f32.mrf.mxu0
      %v1163 = vadd.f32 %v1090, %v1162
      %1164 = vmatmul.bf16.gmra.mxu0 %v1143
      %v1165 = vpop.f32.mrf.mxu0
      %v1166 = vadd.f32 %v1093, %v1165
      %v1167 = vpop.f32.mrf.mxu0
      %v1168 = vadd.f32 %v1095, %v1167
      %1169 = vmatmul.bf16.gmra.mxu0 %v1146
      %v1170 = vpop.f32.mrf.mxu0
      %v1171 = vadd.f32 %v1098, %v1170
      %v1172 = vpop.f32.mrf.mxu0
      %v1173 = vadd.f32 %v1100, %v1172
      %1174 = vmatmul.bf16.gmra.mxu0 %v1149
      %v1175 = vpop.f32.mrf.mxu0
      %v1176 = vadd.f32 %v1103, %v1175
      %v1177 = vpop.f32.mrf.mxu0
      %v1178 = vadd.f32 %v1105, %v1177
      %1179 = vdwg.mxu0
      %v1180 = vld [vmem:[%s11] sm:$0xf]
      %v1181 = vld [vmem:[%s11 + $0x4] sm:$0xf]
      %v1182 = vld [vmem:[%s11 + $0x8] sm:$0xf]
      %v1183 = vld [vmem:[%s11 + $0xc] sm:$0xf]
      %v1188 = vunpack.c.l.b16 %v1180
      %v1189 = vunpack.c.l.b16 %v1181
      %v1190 = vunpack.c.l.b16 %v1182
      %v1191 = vunpack.c.l.b16 %v1183
      %v1192 = vpack.c.b16 %v1189, %v1188
      %v1193 = vpack.c.b16 %v1191, %v1190
      %v1197 = vsel %vm880, %v978, 0
      %v1200 = vsel %vm880, %v979, 0
      %v1203 = vsel %vm880, %v980, 0
      %v1206 = vsel %vm880, %v981, 0
      %1208 = vmatpush.bf16.msra.mxu0 0
      %1209 = vmatpush.bf16.msra.mxu0 0
      %1210 = vmatpush.bf16.msra.mxu0 0
      %1211 = vmatpush.bf16.msra.mxu0 0
      %1212 = vmatpush.bf16.msra.mxu0 0
      %1213 = vmatpush.bf16.msra.mxu0 0
      %1214 = vmatpush.bf16.msra.mxu0 %v1193
      %1215 = vmatpush.bf16.msra.mxu0 %v1192
      %1216 = vmatmul.bf16.gmra.mxu0 %v1197
      %v1217 = vpop.f32.mrf.mxu0
      %v1218 = vadd.f32 0.0, %v1217
      %v1219 = vpop.f32.mrf.mxu0
      %v1220 = vadd.f32 0.0, %v1219
      %1221 = vmatmul.bf16.gmra.mxu0 %v1200
      %v1222 = vpop.f32.mrf.mxu0
      %v1223 = vadd.f32 0.0, %v1222
      %v1224 = vpop.f32.mrf.mxu0
      %v1225 = vadd.f32 0.0, %v1224
      %1226 = vmatmul.bf16.gmra.mxu0 %v1203
      %v1227 = vpop.f32.mrf.mxu0
      %v1228 = vadd.f32 0.0, %v1227
      %v1229 = vpop.f32.mrf.mxu0
      %v1230 = vadd.f32 0.0, %v1229
      %1231 = vmatmul.bf16.gmra.mxu0 %v1206
      %v1232 = vpop.f32.mrf.mxu0
      %v1233 = vadd.f32 0.0, %v1232
      %v1234 = vpop.f32.mrf.mxu0
      %v1235 = vadd.f32 0.0, %v1234
      %1236 = vdwg.mxu0
      %v1237 = vadd.f32 %v1161, %v1218
      %v1238 = vadd.f32 %v1163, %v1220
      %v1239 = vadd.f32 %v1166, %v1223
      %v1240 = vadd.f32 %v1168, %v1225
      %v1241 = vadd.f32 %v1171, %v1228
      %v1242 = vadd.f32 %v1173, %v1230
      %v1243 = vadd.f32 %v1176, %v1233
      %v1244 = vadd.f32 %v1178, %v1235
      %v1245 = vld [vmem:[%s12] sm:$0xf]
      %v1246 = vld [vmem:[%s12 + $0x4] sm:$0xf]
      %v1247 = vld [vmem:[%s12 + $0x8] sm:$0xf]
      %v1248 = vld [vmem:[%s12 + $0xc] sm:$0x1]
      %v1253 = vunpack.c.l.b16 %v1245
      %v1254 = vunpack.c.l.b16 %v1246
      %v1255 = vunpack.c.l.b16 %v1247
      %v1256 = vunpack.c.l.b16 %v1248
      %v1257 = vpack.c.b16 %v1254, %v1253
      %v1258 = vpack.c.b16 %v1256, %v1255
      %vm1260 = vcmask 211968
      %v1262 = vsel %vm1260, %v1006, 0
      %v1265 = vsel %vm1260, %v1007, 0
      %v1268 = vsel %vm1260, %v1008, 0
      %v1271 = vsel %vm1260, %v1009, 0
      %v1274 = vsel %vm813, %v1258, 0
      %1276 = vmatpush.bf16.msra.mxu0 0
      %1277 = vmatpush.bf16.msra.mxu0 0
      %1278 = vmatpush.bf16.msra.mxu0 0
      %1279 = vmatpush.bf16.msra.mxu0 0
      %1280 = vmatpush.bf16.msra.mxu0 0
      %1281 = vmatpush.bf16.msra.mxu0 0
      %1282 = vmatpush.bf16.msra.mxu0 %v1274
      %1283 = vmatpush.bf16.msra.mxu0 %v1257
      %1284 = vmatmul.bf16.gmra.mxu0 %v1262
      %v1285 = vpop.f32.mrf.mxu0
      %v1286 = vadd.f32 0.0, %v1285
      %v1287 = vpop.f32.mrf.mxu0
      %v1288 = vadd.f32 0.0, %v1287
      %1289 = vmatmul.bf16.gmra.mxu0 %v1265
      %v1290 = vpop.f32.mrf.mxu0
      %v1291 = vadd.f32 0.0, %v1290
      %v1292 = vpop.f32.mrf.mxu0
      %v1293 = vadd.f32 0.0, %v1292
      %1294 = vmatmul.bf16.gmra.mxu0 %v1268
      %v1295 = vpop.f32.mrf.mxu0
      %v1296 = vadd.f32 0.0, %v1295
      %v1297 = vpop.f32.mrf.mxu0
      %v1298 = vadd.f32 0.0, %v1297
      %1299 = vmatmul.bf16.gmra.mxu0 %v1271
      %v1300 = vpop.f32.mrf.mxu0
      %v1301 = vadd.f32 0.0, %v1300
      %v1302 = vpop.f32.mrf.mxu0
      %v1303 = vadd.f32 0.0, %v1302
      %1304 = vdwg.mxu0
      %v1305 = vadd.f32 %v1237, %v1286
      %v1306 = vadd.f32 %v1238, %v1288
      %v1307 = vadd.f32 %v1239, %v1291
      %v1308 = vadd.f32 %v1240, %v1293
      %v1309 = vadd.f32 %v1241, %v1296
      %v1310 = vadd.f32 %v1242, %v1298
      %v1311 = vadd.f32 %v1243, %v1301
      %v1312 = vadd.f32 %v1244, %v1303
      %v1313 = vld [vmem:[%s13] sm:$0x1]
      %v1315 = vperm.slane %v1313, 0
      %v1317 = vadd.f32 %v1305, %v1315
      %v1318 = vadd.f32 %v1306, %v1315
      %v1319 = vadd.f32 %v1307, %v1315
      %v1320 = vadd.f32 %v1308, %v1315
      %v1321 = vadd.f32 %v1309, %v1315
      %v1322 = vadd.f32 %v1310, %v1315
      %v1323 = vadd.f32 %v1311, %v1315
      %v1324 = vadd.f32 %v1312, %v1315
      %v1325 = vmax.f32 %v1317, 0.0
      %v1326 = vmax.f32 %v1318, 0.0
      %v1327 = vmax.f32 %v1319, 0.0
      %v1328 = vmax.f32 %v1320, 0.0
      %v1329 = vmax.f32 %v1321, 0.0
      %v1330 = vmax.f32 %v1322, 0.0
      %v1331 = vmax.f32 %v1323, 0.0
      %v1332 = vmax.f32 %v1324, 0.0
      %v1333 = vpack.c.bf16 %v1326, %v1325
      %v1334 = vpack.c.bf16 %v1328, %v1327
      %v1335 = vpack.c.bf16 %v1330, %v1329
      %v1336 = vpack.c.bf16 %v1332, %v1331
      %v1337 = vld [vmem:[%s14] sm:$0xf]
      %v1338 = vld [vmem:[%s14 + $0x4] sm:$0xf]
      %v1339 = vld [vmem:[%s14 + $0x8] sm:$0xf]
      %v1340 = vld [vmem:[%s14 + $0xc] sm:$0xf]
      %v1341 = vld [vmem:[%s15] sm:$0x1]
      %v1343 = vperm.slane %v1341, 0
      %v1349 = vunpack.c.l.b16 %v1337
      %v1350 = vunpack.c.l.b16 %v1338
      %v1351 = vunpack.c.l.b16 %v1339
      %v1352 = vunpack.c.l.b16 %v1340
      %v1353 = vpack.c.b16 %v1350, %v1349
      %v1354 = vpack.c.b16 %v1352, %v1351
      %v1358 = vsel %vm880, %v1333, 0
      %v1361 = vsel %vm880, %v1334, 0
      %v1364 = vsel %vm880, %v1335, 0
      %v1367 = vsel %vm880, %v1336, 0
      %1369 = vmatpush.bf16.msra.mxu0 0
      %1370 = vmatpush.bf16.msra.mxu0 0
      %1371 = vmatpush.bf16.msra.mxu0 0
      %1372 = vmatpush.bf16.msra.mxu0 0
      %1373 = vmatpush.bf16.msra.mxu0 0
      %1374 = vmatpush.bf16.msra.mxu0 0
      %1375 = vmatpush.bf16.msra.mxu0 %v1354
      %1376 = vmatpush.bf16.msra.mxu0 %v1353
      %1377 = vmatmul.bf16.gmra.mxu0 %v1358
      %v1378 = vpop.f32.mrf.mxu0
      %v1379 = vadd.f32 %v1343, %v1378
      %v1380 = vpop.f32.mrf.mxu0
      %v1381 = vadd.f32 %v1343, %v1380
      %1382 = vmatmul.bf16.gmra.mxu0 %v1361
      %v1383 = vpop.f32.mrf.mxu0
      %v1384 = vadd.f32 %v1343, %v1383
      %v1385 = vpop.f32.mrf.mxu0
      %v1386 = vadd.f32 %v1343, %v1385
      %1387 = vmatmul.bf16.gmra.mxu0 %v1364
      %v1388 = vpop.f32.mrf.mxu0
      %v1389 = vadd.f32 %v1343, %v1388
      %v1390 = vpop.f32.mrf.mxu0
      %v1391 = vadd.f32 %v1343, %v1390
      %1392 = vmatmul.bf16.gmra.mxu0 %v1367
      %v1393 = vpop.f32.mrf.mxu0
      %v1394 = vadd.f32 %v1343, %v1393
      %v1395 = vpop.f32.mrf.mxu0
      %v1396 = vadd.f32 %v1343, %v1395
      %1397 = vdwg.mxu0
      %v1398 = vmax.f32 %v1379, 0.0
      %v1399 = vmax.f32 %v1381, 0.0
      %v1400 = vmax.f32 %v1384, 0.0
      %v1401 = vmax.f32 %v1386, 0.0
      %v1402 = vmax.f32 %v1389, 0.0
      %v1403 = vmax.f32 %v1391, 0.0
      %v1404 = vmax.f32 %v1394, 0.0
      %v1405 = vmax.f32 %v1396, 0.0
      %v1406 = vpack.c.bf16 %v1399, %v1398
      %v1407 = vpack.c.bf16 %v1401, %v1400
      %v1408 = vpack.c.bf16 %v1403, %v1402
      %v1409 = vpack.c.bf16 %v1405, %v1404
      %v1410 = vld [vmem:[%s16] sm:$0xf]
      %v1411 = vld [vmem:[%s16 + $0x4] sm:$0xf]
      %v1412 = vld [vmem:[%s16 + $0x8] sm:$0xf]
      %v1413 = vld [vmem:[%s16 + $0xc] sm:$0xf]
      %v1414 = vld [vmem:[%s17] sm:$0x1]
      %v1416 = vperm.slane %v1414, 0
      %v1422 = vunpack.c.l.b16 %v1410
      %v1423 = vunpack.c.l.b16 %v1411
      %v1424 = vunpack.c.l.b16 %v1412
      %v1425 = vunpack.c.l.b16 %v1413
      %v1426 = vpack.c.b16 %v1423, %v1422
      %v1427 = vpack.c.b16 %v1425, %v1424
      %v1431 = vsel %vm880, %v1406, 0
      %v1434 = vsel %vm880, %v1407, 0
      %v1437 = vsel %vm880, %v1408, 0
      %v1440 = vsel %vm880, %v1409, 0
      %1442 = vmatpush.bf16.msra.mxu0 0
      %1443 = vmatpush.bf16.msra.mxu0 0
      %1444 = vmatpush.bf16.msra.mxu0 0
      %1445 = vmatpush.bf16.msra.mxu0 0
      %1446 = vmatpush.bf16.msra.mxu0 0
      %1447 = vmatpush.bf16.msra.mxu0 0
      %1448 = vmatpush.bf16.msra.mxu0 %v1427
      %1449 = vmatpush.bf16.msra.mxu0 %v1426
      %1450 = vmatmul.bf16.gmra.mxu0 %v1431
      %v1451 = vpop.f32.mrf.mxu0
      %v1452 = vadd.f32 %v1416, %v1451
      %v1453 = vpop.f32.mrf.mxu0
      %v1454 = vadd.f32 %v1416, %v1453
      %1455 = vmatmul.bf16.gmra.mxu0 %v1434
      %v1456 = vpop.f32.mrf.mxu0
      %v1457 = vadd.f32 %v1416, %v1456
      %v1458 = vpop.f32.mrf.mxu0
      %v1459 = vadd.f32 %v1416, %v1458
      %1460 = vmatmul.bf16.gmra.mxu0 %v1437
      %v1461 = vpop.f32.mrf.mxu0
      %v1462 = vadd.f32 %v1416, %v1461
      %v1463 = vpop.f32.mrf.mxu0
      %v1464 = vadd.f32 %v1416, %v1463
      %1465 = vmatmul.bf16.gmra.mxu0 %v1440
      %v1466 = vpop.f32.mrf.mxu0
      %v1467 = vadd.f32 %v1416, %v1466
      %v1468 = vpop.f32.mrf.mxu0
      %v1469 = vadd.f32 %v1416, %v1468
      %1470 = vdwg.mxu0
      %1471 = vset.pattern.permute.xlu0 1
      %1472 = vperm.xlu0 %1471, %v744
      %v1473 = vpop.permute.xlu0 %1472
      %1475 = vset.pattern.permute.xlu0 1
      %1476 = vperm.xlu0 %1475, %v745
      %v1477 = vpop.permute.xlu0 %1476
      %1479 = vset.pattern.permute.xlu0 1
      %1480 = vperm.xlu0 %1479, %v746
      %v1481 = vpop.permute.xlu0 %1480
      %1483 = vset.pattern.permute.xlu0 1
      %1484 = vperm.xlu0 %1483, %v747
      %v1485 = vpop.permute.xlu0 %1484
      %1487 = vset.pattern.permute.xlu0 1
      %1488 = vperm.xlu0 %1487, %v748
      %v1489 = vpop.permute.xlu0 %1488
      %1491 = vset.pattern.permute.xlu0 1
      %1492 = vperm.xlu0 %1491, %v749
      %v1493 = vpop.permute.xlu0 %1492
      %1495 = vset.pattern.permute.xlu0 1
      %1496 = vperm.xlu0 %1495, %v750
      %v1497 = vpop.permute.xlu0 %1496
      %1499 = vset.pattern.permute.xlu0 1
      %1500 = vperm.xlu0 %1499, %v751
      %v1501 = vpop.permute.xlu0 %1500
      %v1503 = vmul.f32 %v1452, %v1473
      %v1504 = vmul.f32 %v1454, %v1477
      %v1505 = vmul.f32 %v1457, %v1481
      %v1506 = vmul.f32 %v1459, %v1485
      %v1507 = vmul.f32 %v1462, %v1489
      %v1508 = vmul.f32 %v1464, %v1493
      %v1509 = vmul.f32 %v1467, %v1497
      %v1510 = vmul.f32 %v1469, %v1501
      %v1511 = vpack.c.bf16 %v1503, %v1503
      %v1512 = vpack.c.bf16 %v1504, %v1504
      %v1513 = vpack.c.bf16 %v1505, %v1505
      %v1514 = vpack.c.bf16 %v1506, %v1506
      %v1515 = vpack.c.bf16 %v1507, %v1507
      %v1516 = vpack.c.bf16 %v1508, %v1508
      %v1517 = vpack.c.bf16 %v1509, %v1509
      %v1518 = vpack.c.bf16 %v1510, %v1510
      %vm1519 = vcmask 257024
      %1520 = vst.msk [vmem:[%s727] sm:$0xf] %vm1519, %v1511
      %1521 = vst.msk [vmem:[%s727 + $0x4] sm:$0xf] %vm1519, %v1512
      %1522 = vst.msk [vmem:[%s727 + $0x8] sm:$0xf] %vm1519, %v1513
      %1523 = vst.msk [vmem:[%s727 + $0xc] sm:$0xf] %vm1519, %v1514
      %1524 = vst.msk [vmem:[%s727 + $0x10] sm:$0xf] %vm1519, %v1515
      %1525 = vst.msk [vmem:[%s727 + $0x14] sm:$0xf] %vm1519, %v1516
      %1526 = vst.msk [vmem:[%s727 + $0x18] sm:$0xf] %vm1519, %v1517
      %1527 = vst.msk [vmem:[%s727 + $0x1c] sm:$0xf] %vm1519, %v1518
      %v1528 = vld [vmem:[%s18] sm:$0xf]
      %v1529 = vld [vmem:[%s18 + $0x4] sm:$0xf]
      %v1530 = vld [vmem:[%s18 + $0x8] sm:$0xf]
      %v1531 = vld [vmem:[%s18 + $0xc] sm:$0xf]
      %v1540 = vunpack.c.l.b16 %v1511
      %v1541 = vunpack.c.l.b16 %v1512
      %v1542 = vunpack.c.l.b16 %v1513
      %v1543 = vunpack.c.l.b16 %v1514
      %v1544 = vunpack.c.l.b16 %v1515
      %v1545 = vunpack.c.l.b16 %v1516
      %v1546 = vunpack.c.l.b16 %v1517
      %v1547 = vunpack.c.l.b16 %v1518
      %v1548 = vpack.c.b16 %v1541, %v1540
      %v1549 = vpack.c.b16 %v1543, %v1542
      %v1550 = vpack.c.b16 %v1545, %v1544
      %v1551 = vpack.c.b16 %v1547, %v1546
      %v1556 = vunpack.c.l.b16 %v1528
      %v1557 = vunpack.c.l.b16 %v1529
      %v1558 = vunpack.c.l.b16 %v1530
      %v1559 = vunpack.c.l.b16 %v1531
      %v1560 = vpack.c.b16 %v1557, %v1556
      %v1561 = vpack.c.b16 %v1559, %v1558
      %v1565 = vsel %vm880, %v1548, 0
      %v1568 = vsel %vm880, %v1549, 0
      %v1571 = vsel %vm880, %v1550, 0
      %v1574 = vsel %vm880, %v1551, 0
      %1576 = vmatpush.bf16.msra.mxu0 0
      %1577 = vmatpush.bf16.msra.mxu0 0
      %1578 = vmatpush.bf16.msra.mxu0 0
      %1579 = vmatpush.bf16.msra.mxu0 0
      %1580 = vmatpush.bf16.msra.mxu0 0
      %1581 = vmatpush.bf16.msra.mxu0 0
      %1582 = vmatpush.bf16.msra.mxu0 %v1561
      %1583 = vmatpush.bf16.msra.mxu0 %v1560
      %1584 = vmatmul.bf16.gmra.mxu0 %v1565
      %v1585 = vpop.f32.mrf.mxu0
      %v1586 = vadd.f32 0.0, %v1585
      %v1587 = vpop.f32.mrf.mxu0
      %v1588 = vadd.f32 0.0, %v1587
      %1589 = vmatmul.bf16.gmra.mxu0 %v1568
      %v1590 = vpop.f32.mrf.mxu0
      %v1591 = vadd.f32 0.0, %v1590
      %v1592 = vpop.f32.mrf.mxu0
      %v1593 = vadd.f32 0.0, %v1592
      %1594 = vmatmul.bf16.gmra.mxu0 %v1571
      %v1595 = vpop.f32.mrf.mxu0
      %v1596 = vadd.f32 0.0, %v1595
      %v1597 = vpop.f32.mrf.mxu0
      %v1598 = vadd.f32 0.0, %v1597
      %1599 = vmatmul.bf16.gmra.mxu0 %v1574
      %v1600 = vpop.f32.mrf.mxu0
      %v1601 = vadd.f32 0.0, %v1600
      %v1602 = vpop.f32.mrf.mxu0
      %v1603 = vadd.f32 0.0, %v1602
      %1604 = vdwg.mxu0
      %vm1605 = vcmask 64512
      %1606 = vst.msk [vmem:[%s733] sm:$0xff] %vm1605, %v1586
      %1607 = vst.msk [vmem:[%s733 + $0x8] sm:$0xff] %vm1605, %v1588
      %1608 = vst.msk [vmem:[%s733 + $0x10] sm:$0xff] %vm1605, %v1591
      %1609 = vst.msk [vmem:[%s733 + $0x18] sm:$0xff] %vm1605, %v1593
      %1610 = vst.msk [vmem:[%s733 + $0x20] sm:$0xff] %vm1605, %v1596
      %1611 = vst.msk [vmem:[%s733 + $0x28] sm:$0xff] %vm1605, %v1598
      %1612 = vst.msk [vmem:[%s733 + $0x30] sm:$0xff] %vm1605, %v1601
      %1613 = vst.msk [vmem:[%s733 + $0x38] sm:$0xff] %vm1605, %v1603
      %s1614 = smul.u32 8, %s32
      %p1615 = scmp.lt.s32.totalorder %s1614, 15
      %s1616 = scalar_select %p1615, %s1614, 15
      %s1617 = smul.addr %s1616, 4
      %s1618 = scalar_lea.vmem %s19, %s1617
      %s1619 = smul.u32 8, %s32
      %p1620 = scmp.lt.s32.totalorder %s1619, 15
      %s1621 = scalar_select %p1620, %s1619, 15
      %s1622 = smul.addr %s1621, 8
      %s1623 = scalar_lea.vmem %s20, %s1622
      // Predicated region
      $region97: #{diffab_forward.13} parent=95 // pred_check
        %p1624 = pneg %p474
      $region98: #{diffab_forward.13} parent=95 // pred_check_branch
        %1626 = sbr.rel (%p1624) target = $region100
      $region99: #{diffab_forward.13} parent=95 // pred_region
        %s1627 = smul.u32 8, %s32
      $region100: #{diffab_forward.13} parent=95 // pred_fallthru
        _
      // Predicated region
      $region101: #{diffab_forward.13} parent=95 // pred_check
        %p1628 = pneg %p500
      $region102: #{diffab_forward.13} parent=95 // pred_check_branch
        %1630 = sbr.rel (%p1628) target = $region104
      $region103: #{diffab_forward.13} parent=95 // pred_region
        %s1631 = smul.u32 8, %s32
      $region104: #{diffab_forward.13} parent=95 // pred_fallthru
        _
    $region96: #{diffab_forward.13} parent=5 // pred_fallthru
      _
    %p1632 = scmp.le.s32.totalorder 2, %s27
    // Predicated region
    $region105: #{diffab_forward.13} parent=5 // pred_check
      %p1633 = pneg %p1632
    $region106: #{diffab_forward.13} parent=5 // pred_check_branch
      %1635 = sbr.rel (%p1633) target = $region108
    $region107: #{diffab_forward.13} parent=5 // pred_region
      %s1636 = ssub.s32 %s27, 2
      // Predicated region
      $region109: #{diffab_forward.13} parent=107 // pred_check
        %p1637 = pneg %p480
      $region110: #{diffab_forward.13} parent=107 // pred_check_branch
        %1639 = sbr.rel (%p1637) target = $region112
      $region111: #{diffab_forward.13} parent=107 // pred_region
        %s1640 = smul.u32 8, %s33
        %p1641 = scmp.lt.s32.totalorder %s1640, 15
        %s1642 = scalar_select %p1641, %s1640, 15
        %s1643 = smul.addr %s1642, 4
        %s1644 = scalar_lea.vmem %s19, %s1643
      $region112: #{diffab_forward.13} parent=107 // pred_fallthru
        _
      // Predicated region
      $region113: #{diffab_forward.13} parent=107 // pred_check
        %p1645 = pneg %p506
      $region114: #{diffab_forward.13} parent=107 // pred_check_branch
        %1647 = sbr.rel (%p1645) target = $region116
      $region115: #{diffab_forward.13} parent=107 // pred_region
        %s1648 = smul.u32 8, %s33
        %p1649 = scmp.lt.s32.totalorder %s1648, 15
        %s1650 = scalar_select %p1649, %s1648, 15
        %s1651 = smul.addr %s1650, 8
        %s1652 = scalar_lea.vmem %s20, %s1651
      $region116: #{diffab_forward.13} parent=107 // pred_fallthru
        _
    $region108: #{diffab_forward.13} parent=5 // pred_fallthru
      _
  $region6: #{diffab_forward.13} parent=0 // loop_footer
    %s31 = sadd.s32 1, %s27
  $region7: #{diffab_forward.13} parent=0 // loop_footer_branch
    %26 = sbr.rel target = $region3
  $region8: #{diffab_forward.13} parent=0 // loop_exit
    _

// kernel: diffab_forward.10
$region0: #{diffab_forward.10}
  #allocation0 [shape = 'u32[]', space=smem, size = 0x4, offset = 0x4, fixed_abs, tag = 'smem constant byte address 0x4 - core index']
  #allocation1 [shape = 'u32[72,128]{1,0:T(1,128)}', space=vmem, size = 0x9000, scoped, tag = 'internal scratch']
  %s0 = inlined_call_operand.vmem [shape: bf16[16,433], index: 0, kind: input, shape index: {}]
  %s1 = inlined_call_operand.vmem [shape: bf16[433,64], index: 1, kind: input, shape index: {}]
  %s2 = inlined_call_operand.vmem [shape: f32[1,64], index: 2, kind: input, shape index: {}]
  %s3 = inlined_call_operand.vmem [shape: bf16[64,32], index: 3, kind: input, shape index: {}]
  %s4 = inlined_call_operand.vmem [shape: f32[1,32], index: 4, kind: input, shape index: {}]
  %s5 = inlined_call_operand.vmem [shape: bf16[32,32], index: 5, kind: input, shape index: {}]
  %s6 = inlined_call_operand.vmem [shape: f32[1,32], index: 6, kind: input, shape index: {}]
  %s7 = inlined_call_operand.vmem [shape: bf16[32,32], index: 7, kind: input, shape index: {}]
  %s8 = inlined_call_operand.vmem [shape: f32[1,32], index: 8, kind: input, shape index: {}]
  %s9 = inlined_call_operand.vmem [shape: f32[16,32], index: 9, kind: output, shape index: {}]
  %s10 = sld [smem:[#allocation0]]
  $region46: #{diffab_forward.10} parent=0
    _
  %s12 = ssub.s32 1, %s10
  %s13 = scalar_select 0, %s12, %s10
  // Predicated region
  $region2: #{diffab_forward.10} parent=0 // pred_check
    _
  $region3: #{diffab_forward.10} parent=0 // pred_check_branch
    %15 = sbr.rel (0) target = $region5
  $region4: #{diffab_forward.10} parent=0 // pred_region
    _
  $region5: #{diffab_forward.10} parent=0 // pred_fallthru
    _
  // Predicated region
  $region6: #{diffab_forward.10} parent=0 // pred_check
    _
  $region7: #{diffab_forward.10} parent=0 // pred_check_branch
    %17 = sbr.rel (0) target = $region9
  $region8: #{diffab_forward.10} parent=0 // pred_region
    _
  $region9: #{diffab_forward.10} parent=0 // pred_fallthru
    _
  // Predicated region
  $region10: #{diffab_forward.10} parent=0 // pred_check
    _
  $region11: #{diffab_forward.10} parent=0 // pred_check_branch
    %19 = sbr.rel (0) target = $region13
  $region12: #{diffab_forward.10} parent=0 // pred_region
    _
  $region13: #{diffab_forward.10} parent=0 // pred_fallthru
    _
  // Predicated region
  $region14: #{diffab_forward.10} parent=0 // pred_check
    _
  $region15: #{diffab_forward.10} parent=0 // pred_check_branch
    %21 = sbr.rel (0) target = $region17
  $region16: #{diffab_forward.10} parent=0 // pred_region
    _
  $region17: #{diffab_forward.10} parent=0 // pred_fallthru
    _
  // Predicated region
  $region18: #{diffab_forward.10} parent=0 // pred_check
    _
  $region19: #{diffab_forward.10} parent=0 // pred_check_branch
    %23 = sbr.rel (0) target = $region21
  $region20: #{diffab_forward.10} parent=0 // pred_region
    _
  $region21: #{diffab_forward.10} parent=0 // pred_fallthru
    _
  // Predicated region
  $region22: #{diffab_forward.10} parent=0 // pred_check
    _
  $region23: #{diffab_forward.10} parent=0 // pred_check_branch
    %25 = sbr.rel (0) target = $region25
  $region24: #{diffab_forward.10} parent=0 // pred_region
    _
  $region25: #{diffab_forward.10} parent=0 // pred_fallthru
    _
  // Predicated region
  $region26: #{diffab_forward.10} parent=0 // pred_check
    _
  $region27: #{diffab_forward.10} parent=0 // pred_check_branch
    %27 = sbr.rel (0) target = $region29
  $region28: #{diffab_forward.10} parent=0 // pred_region
    _
  $region29: #{diffab_forward.10} parent=0 // pred_fallthru
    _
  // Predicated region
  $region30: #{diffab_forward.10} parent=0 // pred_check
    _
  $region31: #{diffab_forward.10} parent=0 // pred_check_branch
    %29 = sbr.rel (0) target = $region33
  $region32: #{diffab_forward.10} parent=0 // pred_region
    _
  $region33: #{diffab_forward.10} parent=0 // pred_fallthru
    _
  // Predicated region
  $region34: #{diffab_forward.10} parent=0 // pred_check
    _
  $region35: #{diffab_forward.10} parent=0 // pred_check_branch
    %31 = sbr.rel (0) target = $region37
  $region36: #{diffab_forward.10} parent=0 // pred_region
    _
  $region37: #{diffab_forward.10} parent=0 // pred_fallthru
    _
  %v33 = vld [vmem:[%s0] sm:$0xff]
  %v34 = vld [vmem:[%s0 + $0x8] sm:$0xff]
  %v35 = vld [vmem:[%s0 + $0x10] sm:$0xff]
  %v36 = vld [vmem:[%s0 + $0x18] sm:$0xff]
  %v37 = vld [vmem:[%s1] sm:$0xf]
  %v38 = vld [vmem:[%s1 + $0x4] sm:$0xf]
  %v39 = vld [vmem:[%s1 + $0x8] sm:$0xf]
  %v40 = vld [vmem:[%s1 + $0xc] sm:$0xf]
  %v41 = vld [vmem:[%s1 + $0x10] sm:$0xf]
  %v42 = vld [vmem:[%s1 + $0x14] sm:$0xf]
  %v43 = vld [vmem:[%s1 + $0x18] sm:$0xf]
  %v44 = vld [vmem:[%s1 + $0x1c] sm:$0xf]
  %v45 = vld [vmem:[%s1 + $0x20] sm:$0xf]
  %v46 = vld [vmem:[%s1 + $0x24] sm:$0xf]
  %v47 = vld [vmem:[%s1 + $0x28] sm:$0xf]
  %v48 = vld [vmem:[%s1 + $0x2c] sm:$0xf]
  %v49 = vld [vmem:[%s1 + $0x30] sm:$0xf]
  %v50 = vld [vmem:[%s1 + $0x34] sm:$0xf]
  %v51 = vld [vmem:[%s1 + $0x38] sm:$0xf]
  %v52 = vld [vmem:[%s1 + $0x3c] sm:$0xf]
  %v53 = vld [vmem:[%s1 + $0x40] sm:$0xf]
  %v54 = vld [vmem:[%s1 + $0x44] sm:$0xf]
  %v55 = vld [vmem:[%s1 + $0x48] sm:$0xf]
  %v56 = vld [vmem:[%s1 + $0x4c] sm:$0xf]
  %v57 = vld [vmem:[%s1 + $0x50] sm:$0xf]
  %v58 = vld [vmem:[%s1 + $0x54] sm:$0xf]
  %v59 = vld [vmem:[%s1 + $0x58] sm:$0xf]
  %v60 = vld [vmem:[%s1 + $0x5c] sm:$0xf]
  %v61 = vld [vmem:[%s1 + $0x60] sm:$0xf]
  %v62 = vld [vmem:[%s1 + $0x64] sm:$0xf]
  %v63 = vld [vmem:[%s1 + $0x68] sm:$0xf]
  %v64 = vld [vmem:[%s1 + $0x6c] sm:$0xf]
  %v65 = vld [vmem:[%s1 + $0x70] sm:$0xf]
  %v66 = vld [vmem:[%s1 + $0x74] sm:$0xf]
  %v67 = vld [vmem:[%s1 + $0x78] sm:$0xf]
  %v68 = vld [vmem:[%s1 + $0x7c] sm:$0xf]
  %v69 = vld [vmem:[%s1 + $0x80] sm:$0xf]
  %v70 = vld [vmem:[%s1 + $0x84] sm:$0xf]
  %v71 = vld [vmem:[%s1 + $0x88] sm:$0xf]
  %v72 = vld [vmem:[%s1 + $0x8c] sm:$0xf]
  %v73 = vld [vmem:[%s1 + $0x90] sm:$0xf]
  %v74 = vld [vmem:[%s1 + $0x94] sm:$0xf]
  %v75 = vld [vmem:[%s1 + $0x98] sm:$0xf]
  %v76 = vld [vmem:[%s1 + $0x9c] sm:$0xf]
  %v77 = vld [vmem:[%s1 + $0xa0] sm:$0xf]
  %v78 = vld [vmem:[%s1 + $0xa4] sm:$0xf]
  %v79 = vld [vmem:[%s1 + $0xa8] sm:$0xf]
  %v80 = vld [vmem:[%s1 + $0xac] sm:$0xf]
  %v81 = vld [vmem:[%s1 + $0xb0] sm:$0xf]
  %v82 = vld [vmem:[%s1 + $0xb4] sm:$0xf]
  %v83 = vld [vmem:[%s1 + $0xb8] sm:$0xf]
  %v84 = vld [vmem:[%s1 + $0xbc] sm:$0xf]
  %v85 = vld [vmem:[%s1 + $0xc0] sm:$0xf]
  %v86 = vld [vmem:[%s1 + $0xc4] sm:$0xf]
  %v87 = vld [vmem:[%s1 + $0xc8] sm:$0xf]
  %v88 = vld [vmem:[%s1 + $0xcc] sm:$0xf]
  %v89 = vld [vmem:[%s1 + $0xd0] sm:$0xf]
  %v90 = vld [vmem:[%s1 + $0xd4] sm:$0xf]
  %v91 = vld [vmem:[%s1 + $0xd8] sm:$0x1]
  %v92 = vld [vmem:[%s2] sm:$0x1]
  %v94 = vperm.slane %v92, 0
  %v100 = vunpack.c.l.b16 %v33
  %v101 = vunpack.c.h.b16 %v33
  %v102 = vunpack.c.l.b16 %v34
  %v103 = vunpack.c.h.b16 %v34
  %v104 = vunpack.c.l.b16 %v35
  %v105 = vunpack.c.h.b16 %v35
  %v106 = vunpack.c.l.b16 %v36
  %v107 = vunpack.c.h.b16 %v36
  %v108 = vpack.c.b16 %v104, %v100
  %v109 = vpack.c.b16 %v105, %v101
  %v110 = vpack.c.b16 %v106, %v102
  %v111 = vpack.c.b16 %v107, %v103
  %v170 = vunpack.c.l.b16 %v37
  %v171 = vunpack.c.l.b16 %v38
  %v172 = vunpack.c.l.b16 %v39
  %v173 = vunpack.c.l.b16 %v40
  %v174 = vunpack.c.l.b16 %v41
  %v175 = vunpack.c.l.b16 %v42
  %v176 = vunpack.c.l.b16 %v43
  %v177 = vunpack.c.l.b16 %v44
  %v178 = vunpack.c.l.b16 %v45
  %v179 = vunpack.c.l.b16 %v46
  %v180 = vunpack.c.l.b16 %v47
  %v181 = vunpack.c.l.b16 %v48
  %v182 = vunpack.c.l.b16 %v49
  %v183 = vunpack.c.l.b16 %v50
  %v184 = vunpack.c.l.b16 %v51
  %v185 = vunpack.c.l.b16 %v52
  %v186 = vunpack.c.l.b16 %v53
  %v187 = vunpack.c.l.b16 %v54
  %v188 = vunpack.c.l.b16 %v55
  %v189 = vunpack.c.l.b16 %v56
  %v190 = vunpack.c.l.b16 %v57
  %v191 = vunpack.c.l.b16 %v58
  %v192 = vunpack.c.l.b16 %v59
  %v193 = vunpack.c.l.b16 %v60
  %v194 = vunpack.c.l.b16 %v61
  %v195 = vunpack.c.l.b16 %v62
  %v196 = vunpack.c.l.b16 %v63
  %v197 = vunpack.c.l.b16 %v64
  %v198 = vunpack.c.l.b16 %v65
  %v199 = vunpack.c.l.b16 %v66
  %v200 = vunpack.c.l.b16 %v67
  %v201 = vunpack.c.l.b16 %v68
  %v202 = vunpack.c.l.b16 %v69
  %v203 = vunpack.c.l.b16 %v70
  %v204 = vunpack.c.l.b16 %v71
  %v205 = vunpack.c.l.b16 %v72
  %v206 = vunpack.c.l.b16 %v73
  %v207 = vunpack.c.l.b16 %v74
  %v208 = vunpack.c.l.b16 %v75
  %v209 = vunpack.c.l.b16 %v76
  %v210 = vunpack.c.l.b16 %v77
  %v211 = vunpack.c.l.b16 %v78
  %v212 = vunpack.c.l.b16 %v79
  %v213 = vunpack.c.l.b16 %v80
  %v214 = vunpack.c.l.b16 %v81
  %v215 = vunpack.c.l.b16 %v82
  %v216 = vunpack.c.l.b16 %v83
  %v217 = vunpack.c.l.b16 %v84
  %v218 = vunpack.c.l.b16 %v85
  %v219 = vunpack.c.l.b16 %v86
  %v220 = vunpack.c.l.b16 %v87
  %v221 = vunpack.c.l.b16 %v88
  %v222 = vunpack.c.l.b16 %v89
  %v223 = vunpack.c.l.b16 %v90
  %v224 = vunpack.c.l.b16 %v91
  %v225 = vpack.c.b16 %v171, %v170
  %v226 = vpack.c.b16 %v173, %v172
  %v227 = vpack.c.b16 %v175, %v174
  %v228 = vpack.c.b16 %v177, %v176
  %v229 = vpack.c.b16 %v179, %v178
  %v230 = vpack.c.b16 %v181, %v180
  %v231 = vpack.c.b16 %v183, %v182
  %v232 = vpack.c.b16 %v185, %v184
  %v233 = vpack.c.b16 %v187, %v186
  %v234 = vpack.c.b16 %v189, %v188
  %v235 = vpack.c.b16 %v191, %v190
  %v236 = vpack.c.b16 %v193, %v192
  %v237 = vpack.c.b16 %v195, %v194
  %v238 = vpack.c.b16 %v197, %v196
  %v239 = vpack.c.b16 %v199, %v198
  %v240 = vpack.c.b16 %v201, %v200
  %v241 = vpack.c.b16 %v203, %v202
  %v242 = vpack.c.b16 %v205, %v204
  %v243 = vpack.c.b16 %v207, %v206
  %v244 = vpack.c.b16 %v209, %v208
  %v245 = vpack.c.b16 %v211, %v210
  %v246 = vpack.c.b16 %v213, %v212
  %v247 = vpack.c.b16 %v215, %v214
  %v248 = vpack.c.b16 %v217, %v216
  %v249 = vpack.c.b16 %v219, %v218
  %v250 = vpack.c.b16 %v221, %v220
  %v251 = vpack.c.b16 %v223, %v222
  %v252 = vpack.c.b16 %v224, %v224
  %vm280 = vcmask 400384
  %v282 = vsel %vm280, %v111, 0
  %vm284 = vcmask 1040384
  %v285 = vsel 0, 4294967295, 65535
  %v286 = vsel %vm284, %v285, 0
  %v288 = vand.u32 %v252, %v286
  %290 = vmatpush.bf16.msra.mxu0 %v232
  %291 = vmatpush.bf16.msra.mxu0 %v231
  %292 = vmatpush.bf16.msra.mxu0 %v230
  %293 = vmatpush.bf16.msra.mxu0 %v229
  %294 = vmatpush.bf16.msra.mxu0 %v228
  %295 = vmatpush.bf16.msra.mxu0 %v227
  %296 = vmatpush.bf16.msra.mxu0 %v226
  %297 = vmatpush.bf16.msra.mxu0 %v225
  %298 = vmatmul.bf16.gmra.mxu0 %v108
  %v299 = vpop.f32.mrf.mxu0
  %v300 = vadd.f32 %v94, %v299
  %v301 = vpop.f32.mrf.mxu0
  %v302 = vadd.f32 %v94, %v301
  %303 = vdwg.mxu0
  %304 = vmatpush.bf16.msra.mxu0 %v240
  %305 = vmatpush.bf16.msra.mxu0 %v239
  %306 = vmatpush.bf16.msra.mxu0 %v238
  %307 = vmatpush.bf16.msra.mxu0 %v237
  %308 = vmatpush.bf16.msra.mxu0 %v236
  %309 = vmatpush.bf16.msra.mxu0 %v235
  %310 = vmatpush.bf16.msra.mxu0 %v234
  %311 = vmatpush.bf16.msra.mxu0 %v233
  %312 = vmatmul.bf16.gmra.mxu0 %v109
  %v313 = vpop.f32.mrf.mxu0
  %v314 = vadd.f32 %v300, %v313
  %v315 = vpop.f32.mrf.mxu0
  %v316 = vadd.f32 %v302, %v315
  %317 = vdwg.mxu0
  %318 = vmatpush.bf16.msra.mxu0 %v248
  %319 = vmatpush.bf16.msra.mxu0 %v247
  %320 = vmatpush.bf16.msra.mxu0 %v246
  %321 = vmatpush.bf16.msra.mxu0 %v245
  %322 = vmatpush.bf16.msra.mxu0 %v244
  %323 = vmatpush.bf16.msra.mxu0 %v243
  %324 = vmatpush.bf16.msra.mxu0 %v242
  %325 = vmatpush.bf16.msra.mxu0 %v241
  %326 = vmatmul.bf16.gmra.mxu0 %v110
  %v327 = vpop.f32.mrf.mxu0
  %v328 = vadd.f32 %v314, %v327
  %v329 = vpop.f32.mrf.mxu0
  %v330 = vadd.f32 %v316, %v329
  %331 = vdwg.mxu0
  %332 = vmatpush.bf16.msra.mxu0 0
  %333 = vmatpush.bf16.msra.mxu0 0
  %334 = vmatpush.bf16.msra.mxu0 0
  %335 = vmatpush.bf16.msra.mxu0 0
  %336 = vmatpush.bf16.msra.mxu0 %v288
  %337 = vmatpush.bf16.msra.mxu0 %v251
  %338 = vmatpush.bf16.msra.mxu0 %v250
  %339 = vmatpush.bf16.msra.mxu0 %v249
  %340 = vmatmul.bf16.gmra.mxu0 %v282
  %v341 = vpop.f32.mrf.mxu0
  %v342 = vadd.f32 %v328, %v341
  %v343 = vpop.f32.mrf.mxu0
  %v344 = vadd.f32 %v330, %v343
  %345 = vdwg.mxu0
  %v346 = vmax.f32 %v342, 0.0
  %v347 = vmax.f32 %v344, 0.0
  %v348 = vpack.c.bf16 %v347, %v346
  %v349 = vld [vmem:[%s3] sm:$0xf]
  %v350 = vld [vmem:[%s3 + $0x4] sm:$0xf]
  %v351 = vld [vmem:[%s3 + $0x8] sm:$0xf]
  %v352 = vld [vmem:[%s3 + $0xc] sm:$0xf]
  %v353 = vld [vmem:[%s3 + $0x10] sm:$0xf]
  %v354 = vld [vmem:[%s3 + $0x14] sm:$0xf]
  %v355 = vld [vmem:[%s3 + $0x18] sm:$0xf]
  %v356 = vld [vmem:[%s3 + $0x1c] sm:$0xf]
  %v357 = vld [vmem:[%s4] sm:$0x1]
  %v359 = vperm.slane %v357, 0
  %v369 = vunpack.c.l.b16 %v349
  %v370 = vunpack.c.l.b16 %v350
  %v371 = vunpack.c.l.b16 %v351
  %v372 = vunpack.c.l.b16 %v352
  %v373 = vunpack.c.l.b16 %v353
  %v374 = vunpack.c.l.b16 %v354
  %v375 = vunpack.c.l.b16 %v355
  %v376 = vunpack.c.l.b16 %v356
  %v377 = vpack.c.b16 %v370, %v369
  %v378 = vpack.c.b16 %v372, %v371
  %v379 = vpack.c.b16 %v374, %v373
  %v380 = vpack.c.b16 %v376, %v375
  %vm385 = vcmask 523264
  %v387 = vsel %vm385, %v348, 0
  %389 = vmatpush.bf16.msra.mxu0 0
  %390 = vmatpush.bf16.msra.mxu0 0
  %391 = vmatpush.bf16.msra.mxu0 0
  %392 = vmatpush.bf16.msra.mxu0 0
  %393 = vmatpush.bf16.msra.mxu0 %v380
  %394 = vmatpush.bf16.msra.mxu0 %v379
  %395 = vmatpush.bf16.msra.mxu0 %v378
  %396 = vmatpush.bf16.msra.mxu0 %v377
  %397 = vmatmul.bf16.gmra.mxu0 %v387
  %v398 = vpop.f32.mrf.mxu0
  %v399 = vadd.f32 %v359, %v398
  %v400 = vpop.f32.mrf.mxu0
  %v401 = vadd.f32 %v359, %v400
  %402 = vdwg.mxu0
  %v403 = vmax.f32 %v399, 0.0
  %v404 = vmax.f32 %v401, 0.0
  %v405 = vpack.c.bf16 %v404, %v403
  %v406 = vld [vmem:[%s5] sm:$0xf]
  %v407 = vld [vmem:[%s5 + $0x4] sm:$0xf]
  %v408 = vld [vmem:[%s5 + $0x8] sm:$0xf]
  %v409 = vld [vmem:[%s5 + $0xc] sm:$0xf]
  %v410 = vld [vmem:[%s6] sm:$0x1]
  %v412 = vperm.slane %v410, 0
  %v418 = vunpack.c.l.b16 %v406
  %v419 = vunpack.c.l.b16 %v407
  %v420 = vunpack.c.l.b16 %v408
  %v421 = vunpack.c.l.b16 %v409
  %v422 = vpack.c.b16 %v419, %v418
  %v423 = vpack.c.b16 %v421, %v420
  %vm426 = vcmask 261120
  %v428 = vsel %vm426, %v405, 0
  %430 = vmatpush.bf16.msra.mxu0 0
  %431 = vmatpush.bf16.msra.mxu0 0
  %432 = vmatpush.bf16.msra.mxu0 0
  %433 = vmatpush.bf16.msra.mxu0 0
  %434 = vmatpush.bf16.msra.mxu0 0
  %435 = vmatpush.bf16.msra.mxu0 0
  %436 = vmatpush.bf16.msra.mxu0 %v423
  %437 = vmatpush.bf16.msra.mxu0 %v422
  %438 = vmatmul.bf16.gmra.mxu0 %v428
  %v439 = vpop.f32.mrf.mxu0
  %v440 = vadd.f32 %v412, %v439
  %v441 = vpop.f32.mrf.mxu0
  %v442 = vadd.f32 %v412, %v441
  %443 = vdwg.mxu0
  %v444 = vmax.f32 %v440, 0.0
  %v445 = vmax.f32 %v442, 0.0
  %v446 = vpack.c.bf16 %v445, %v444
  %v447 = vld [vmem:[%s7] sm:$0xf]
  %v448 = vld [vmem:[%s7 + $0x4] sm:$0xf]
  %v449 = vld [vmem:[%s7 + $0x8] sm:$0xf]
  %v450 = vld [vmem:[%s7 + $0xc] sm:$0xf]
  %v451 = vld [vmem:[%s8] sm:$0x1]
  %v453 = vperm.slane %v451, 0
  %v459 = vunpack.c.l.b16 %v447
  %v460 = vunpack.c.l.b16 %v448
  %v461 = vunpack.c.l.b16 %v449
  %v462 = vunpack.c.l.b16 %v450
  %v463 = vpack.c.b16 %v460, %v459
  %v464 = vpack.c.b16 %v462, %v461
  %v468 = vsel %vm426, %v446, 0
  %470 = vmatpush.bf16.msra.mxu0 0
  %471 = vmatpush.bf16.msra.mxu0 0
  %472 = vmatpush.bf16.msra.mxu0 0
  %473 = vmatpush.bf16.msra.mxu0 0
  %474 = vmatpush.bf16.msra.mxu0 0
  %475 = vmatpush.bf16.msra.mxu0 0
  %476 = vmatpush.bf16.msra.mxu0 %v464
  %477 = vmatpush.bf16.msra.mxu0 %v463
  %478 = vmatmul.bf16.gmra.mxu0 %v468
  %v479 = vpop.f32.mrf.mxu0
  %v480 = vadd.f32 %v453, %v479
  %v481 = vpop.f32.mrf.mxu0
  %v482 = vadd.f32 %v453, %v481
  %483 = vdwg.mxu0
  %484 = vst.msk [vmem:[%s9] sm:$0xff] %vm426, %v480
  %485 = vst.msk [vmem:[%s9 + $0x8] sm:$0xff] %vm426, %v482
  // Predicated region
  $region38: #{diffab_forward.10} parent=0 // pred_check
    _
  $region39: #{diffab_forward.10} parent=0 // pred_check_branch
    %487 = sbr.rel (0) target = $region41
  $region40: #{diffab_forward.10} parent=0 // pred_region
    _
  $region41: #{diffab_forward.10} parent=0 // pred_fallthru
    _
  // Predicated region
  $region42: #{diffab_forward.10} parent=0 // pred_check
    _
  $region43: #{diffab_forward.10} parent=0 // pred_check_branch
    %489 = sbr.rel (0) target = $region45
  $region44: #{diffab_forward.10} parent=0 // pred_region
    _
  $region45: #{diffab_forward.10} parent=0 // pred_fallthru
    _

// kernel: diffab_forward.11
$region0: #{diffab_forward.11}
  #allocation0 [shape = 'u32[]', space=smem, size = 0x4, offset = 0x4, fixed_abs, tag = 'smem constant byte address 0x4 - core index']
  #allocation1 [shape = 'u32[72,128]{1,0:T(1,128)}', space=vmem, size = 0x9000, scoped, tag = 'internal scratch']
  %s0 = inlined_call_operand.vmem [shape: bf16[16,64], index: 0, kind: input, shape index: {}]
  %s1 = inlined_call_operand.vmem [shape: bf16[64,32], index: 1, kind: input, shape index: {}]
  %s2 = inlined_call_operand.vmem [shape: f32[1,32], index: 2, kind: input, shape index: {}]
  %s3 = inlined_call_operand.vmem [shape: bf16[32,32], index: 3, kind: input, shape index: {}]
  %s4 = inlined_call_operand.vmem [shape: f32[1,32], index: 4, kind: input, shape index: {}]
  %s5 = inlined_call_operand.vmem [shape: f32[16,32], index: 5, kind: output, shape index: {}]
  %s6 = sld [smem:[#allocation0]]
  $region30: #{diffab_forward.11} parent=0
    _
  %s8 = ssub.s32 1, %s6
  %s9 = scalar_select 0, %s8, %s6
  // Predicated region
  $region2: #{diffab_forward.11} parent=0 // pred_check
    _
  $region3: #{diffab_forward.11} parent=0 // pred_check_branch
    %11 = sbr.rel (0) target = $region5
  $region4: #{diffab_forward.11} parent=0 // pred_region
    _
  $region5: #{diffab_forward.11} parent=0 // pred_fallthru
    _
  // Predicated region
  $region6: #{diffab_forward.11} parent=0 // pred_check
    _
  $region7: #{diffab_forward.11} parent=0 // pred_check_branch
    %13 = sbr.rel (0) target = $region9
  $region8: #{diffab_forward.11} parent=0 // pred_region
    _
  $region9: #{diffab_forward.11} parent=0 // pred_fallthru
    _
  // Predicated region
  $region10: #{diffab_forward.11} parent=0 // pred_check
    _
  $region11: #{diffab_forward.11} parent=0 // pred_check_branch
    %15 = sbr.rel (0) target = $region13
  $region12: #{diffab_forward.11} parent=0 // pred_region
    _
  $region13: #{diffab_forward.11} parent=0 // pred_fallthru
    _
  // Predicated region
  $region14: #{diffab_forward.11} parent=0 // pred_check
    _
  $region15: #{diffab_forward.11} parent=0 // pred_check_branch
    %17 = sbr.rel (0) target = $region17
  $region16: #{diffab_forward.11} parent=0 // pred_region
    _
  $region17: #{diffab_forward.11} parent=0 // pred_fallthru
    _
  // Predicated region
  $region18: #{diffab_forward.11} parent=0 // pred_check
    _
  $region19: #{diffab_forward.11} parent=0 // pred_check_branch
    %19 = sbr.rel (0) target = $region21
  $region20: #{diffab_forward.11} parent=0 // pred_region
    _
  $region21: #{diffab_forward.11} parent=0 // pred_fallthru
    _
  %v21 = vld [vmem:[%s0] sm:$0xf]
  %v22 = vld [vmem:[%s0 + $0x4] sm:$0xf]
  %v23 = vld [vmem:[%s1] sm:$0xf]
  %v24 = vld [vmem:[%s1 + $0x4] sm:$0xf]
  %v25 = vld [vmem:[%s1 + $0x8] sm:$0xf]
  %v26 = vld [vmem:[%s1 + $0xc] sm:$0xf]
  %v27 = vld [vmem:[%s1 + $0x10] sm:$0xf]
  %v28 = vld [vmem:[%s1 + $0x14] sm:$0xf]
  %v29 = vld [vmem:[%s1 + $0x18] sm:$0xf]
  %v30 = vld [vmem:[%s1 + $0x1c] sm:$0xf]
  %v31 = vld [vmem:[%s2] sm:$0x1]
  %v33 = vperm.slane %v31, 0
  %v37 = vunpack.c.l.b16 %v21
  %v38 = vunpack.c.l.b16 %v22
  %v39 = vpack.c.b16 %v38, %v37
  %v48 = vunpack.c.l.b16 %v23
  %v49 = vunpack.c.l.b16 %v24
  %v50 = vunpack.c.l.b16 %v25
  %v51 = vunpack.c.l.b16 %v26
  %v52 = vunpack.c.l.b16 %v27
  %v53 = vunpack.c.l.b16 %v28
  %v54 = vunpack.c.l.b16 %v29
  %v55 = vunpack.c.l.b16 %v30
  %v56 = vpack.c.b16 %v49, %v48
  %v57 = vpack.c.b16 %v51, %v50
  %v58 = vpack.c.b16 %v53, %v52
  %v59 = vpack.c.b16 %v55, %v54
  %vm64 = vcmask 523264
  %v66 = vsel %vm64, %v39, 0
  %68 = vmatpush.bf16.msra.mxu0 0
  %69 = vmatpush.bf16.msra.mxu0 0
  %70 = vmatpush.bf16.msra.mxu0 0
  %71 = vmatpush.bf16.msra.mxu0 0
  %72 = vmatpush.bf16.msra.mxu0 %v59
  %73 = vmatpush.bf16.msra.mxu0 %v58
  %74 = vmatpush.bf16.msra.mxu0 %v57
  %75 = vmatpush.bf16.msra.mxu0 %v56
  %76 = vmatmul.bf16.gmra.mxu0 %v66
  %v77 = vpop.f32.mrf.mxu0
  %v78 = vadd.f32 %v33, %v77
  %v79 = vpop.f32.mrf.mxu0
  %v80 = vadd.f32 %v33, %v79
  %81 = vdwg.mxu0
  %v82 = vmax.f32 %v78, 0.0
  %v83 = vmax.f32 %v80, 0.0
  %v84 = vpack.c.bf16 %v83, %v82
  %v85 = vld [vmem:[%s3] sm:$0xf]
  %v86 = vld [vmem:[%s3 + $0x4] sm:$0xf]
  %v87 = vld [vmem:[%s3 + $0x8] sm:$0xf]
  %v88 = vld [vmem:[%s3 + $0xc] sm:$0xf]
  %v89 = vld [vmem:[%s4] sm:$0x1]
  %v91 = vperm.slane %v89, 0
  %v97 = vunpack.c.l.b16 %v85
  %v98 = vunpack.c.l.b16 %v86
  %v99 = vunpack.c.l.b16 %v87
  %v100 = vunpack.c.l.b16 %v88
  %v101 = vpack.c.b16 %v98, %v97
  %v102 = vpack.c.b16 %v100, %v99
  %vm105 = vcmask 261120
  %v107 = vsel %vm105, %v84, 0
  %109 = vmatpush.bf16.msra.mxu0 0
  %110 = vmatpush.bf16.msra.mxu0 0
  %111 = vmatpush.bf16.msra.mxu0 0
  %112 = vmatpush.bf16.msra.mxu0 0
  %113 = vmatpush.bf16.msra.mxu0 0
  %114 = vmatpush.bf16.msra.mxu0 0
  %115 = vmatpush.bf16.msra.mxu0 %v102
  %116 = vmatpush.bf16.msra.mxu0 %v101
  %117 = vmatmul.bf16.gmra.mxu0 %v107
  %v118 = vpop.f32.mrf.mxu0
  %v119 = vadd.f32 %v91, %v118
  %v120 = vpop.f32.mrf.mxu0
  %v121 = vadd.f32 %v91, %v120
  %122 = vdwg.mxu0
  %123 = vst.msk [vmem:[%s5] sm:$0xff] %vm105, %v119
  %124 = vst.msk [vmem:[%s5 + $0x8] sm:$0xff] %vm105, %v121
  // Predicated region
  $region22: #{diffab_forward.11} parent=0 // pred_check
    _
  $region23: #{diffab_forward.11} parent=0 // pred_check_branch
    %126 = sbr.rel (0) target = $region25
  $region24: #{diffab_forward.11} parent=0 // pred_region
    _
  $region25: #{diffab_forward.11} parent=0 // pred_fallthru
    _
  // Predicated region
  $region26: #{diffab_forward.11} parent=0 // pred_check
    _
  $region27: #{diffab_forward.11} parent=0 // pred_check_branch
    %128 = sbr.rel (0) target = $region29
  $region28: #{diffab_forward.11} parent=0 // pred_region
    _
  $region29: #{diffab_forward.11} parent=0 // pred_fallthru
    _

// kernel: diffab_forward.12
$region0: #{diffab_forward.12}
  #allocation0 [shape = 'u32[]', space=smem, size = 0x4, offset = 0x4, fixed_abs, tag = 'smem constant byte address 0x4 - core index']
  #allocation1 [shape = 'u32[72,128]{1,0:T(1,128)}', space=vmem, size = 0x9000, scoped, tag = 'internal scratch']
  %s0 = inlined_call_operand.vmem [shape: bf16[16,32], index: 0, kind: input, shape index: {}]
  %s1 = inlined_call_operand.vmem [shape: bf16[32,64], index: 1, kind: input, shape index: {}]
  %s2 = inlined_call_operand.vmem [shape: f32[1,64], index: 2, kind: input, shape index: {}, may-alias: {2,4,6}]
  %s3 = inlined_call_operand.vmem [shape: bf16[32,64], index: 3, kind: input, shape index: {}]
  %s4 = inlined_call_operand.vmem [shape: f32[1,64], index: 4, kind: input, shape index: {}, may-alias: {2,4,6}]
  %s5 = inlined_call_operand.vmem [shape: bf16[32,64], index: 5, kind: input, shape index: {}]
  %s6 = inlined_call_operand.vmem [shape: f32[1,64], index: 6, kind: input, shape index: {}, may-alias: {2,4,6}]
  %s7 = inlined_call_operand.vmem [shape: bf16[32,48], index: 7, kind: input, shape index: {}]
  %s8 = inlined_call_operand.vmem [shape: f32[1,48], index: 8, kind: input, shape index: {}, may-alias: {8,10,12}]
  %s9 = inlined_call_operand.vmem [shape: bf16[32,48], index: 9, kind: input, shape index: {}]
  %s10 = inlined_call_operand.vmem [shape: f32[1,48], index: 10, kind: input, shape index: {}, may-alias: {8,10,12}]
  %s11 = inlined_call_operand.vmem [shape: bf16[32,48], index: 11, kind: input, shape index: {}]
  %s12 = inlined_call_operand.vmem [shape: f32[1,48], index: 12, kind: input, shape index: {}, may-alias: {8,10,12}]
  %s13 = inlined_call_operand.vmem [shape: bf16[16,64], index: 13, kind: output, shape index: {0}]
  %s14 = inlined_call_operand.vmem [shape: bf16[16,64], index: 14, kind: output, shape index: {1}]
  %s15 = inlined_call_operand.vmem [shape: bf16[16,64], index: 15, kind: output, shape index: {2}]
  %s16 = inlined_call_operand.vmem [shape: bf16[16,48], index: 16, kind: output, shape index: {3}]
  %s17 = inlined_call_operand.vmem [shape: bf16[16,48], index: 17, kind: output, shape index: {4}]
  %s18 = inlined_call_operand.vmem [shape: bf16[16,48], index: 18, kind: output, shape index: {5}]
  %19 = xla_tuple %s13, %s14, %s15, %s16, %s17, %s18
  %s20 = sld [smem:[#allocation0]]
  $region102: #{diffab_forward.12} parent=0
    _
  %s22 = ssub.s32 1, %s20
  %s23 = scalar_select 0, %s22, %s20
  // Predicated region
  $region2: #{diffab_forward.12} parent=0 // pred_check
    _
  $region3: #{diffab_forward.12} parent=0 // pred_check_branch
    %25 = sbr.rel (0) target = $region5
  $region4: #{diffab_forward.12} parent=0 // pred_region
    _
  $region5: #{diffab_forward.12} parent=0 // pred_fallthru
    _
  // Predicated region
  $region6: #{diffab_forward.12} parent=0 // pred_check
    _
  $region7: #{diffab_forward.12} parent=0 // pred_check_branch
    %27 = sbr.rel (0) target = $region9
  $region8: #{diffab_forward.12} parent=0 // pred_region
    _
  $region9: #{diffab_forward.12} parent=0 // pred_fallthru
    _
  // Predicated region
  $region10: #{diffab_forward.12} parent=0 // pred_check
    _
  $region11: #{diffab_forward.12} parent=0 // pred_check_branch
    %29 = sbr.rel (0) target = $region13
  $region12: #{diffab_forward.12} parent=0 // pred_region
    _
  $region13: #{diffab_forward.12} parent=0 // pred_fallthru
    _
  // Predicated region
  $region14: #{diffab_forward.12} parent=0 // pred_check
    _
  $region15: #{diffab_forward.12} parent=0 // pred_check_branch
    %31 = sbr.rel (0) target = $region17
  $region16: #{diffab_forward.12} parent=0 // pred_region
    _
  $region17: #{diffab_forward.12} parent=0 // pred_fallthru
    _
  // Predicated region
  $region18: #{diffab_forward.12} parent=0 // pred_check
    _
  $region19: #{diffab_forward.12} parent=0 // pred_check_branch
    %33 = sbr.rel (0) target = $region21
  $region20: #{diffab_forward.12} parent=0 // pred_region
    _
  $region21: #{diffab_forward.12} parent=0 // pred_fallthru
    _
  // Predicated region
  $region22: #{diffab_forward.12} parent=0 // pred_check
    _
  $region23: #{diffab_forward.12} parent=0 // pred_check_branch
    %35 = sbr.rel (0) target = $region25
  $region24: #{diffab_forward.12} parent=0 // pred_region
    _
  $region25: #{diffab_forward.12} parent=0 // pred_fallthru
    _
  // Predicated region
  $region26: #{diffab_forward.12} parent=0 // pred_check
    _
  $region27: #{diffab_forward.12} parent=0 // pred_check_branch
    %37 = sbr.rel (0) target = $region29
  $region28: #{diffab_forward.12} parent=0 // pred_region
    _
  $region29: #{diffab_forward.12} parent=0 // pred_fallthru
    _
  // Predicated region
  $region30: #{diffab_forward.12} parent=0 // pred_check
    _
  $region31: #{diffab_forward.12} parent=0 // pred_check_branch
    %39 = sbr.rel (0) target = $region33
  $region32: #{diffab_forward.12} parent=0 // pred_region
    _
  $region33: #{diffab_forward.12} parent=0 // pred_fallthru
    _
  // Predicated region
  $region34: #{diffab_forward.12} parent=0 // pred_check
    _
  $region35: #{diffab_forward.12} parent=0 // pred_check_branch
    %41 = sbr.rel (0) target = $region37
  $region36: #{diffab_forward.12} parent=0 // pred_region
    _
  $region37: #{diffab_forward.12} parent=0 // pred_fallthru
    _
  // Predicated region
  $region38: #{diffab_forward.12} parent=0 // pred_check
    _
  $region39: #{diffab_forward.12} parent=0 // pred_check_branch
    %43 = sbr.rel (0) target = $region41
  $region40: #{diffab_forward.12} parent=0 // pred_region
    _
  $region41: #{diffab_forward.12} parent=0 // pred_fallthru
    _
  // Predicated region
  $region42: #{diffab_forward.12} parent=0 // pred_check
    _
  $region43: #{diffab_forward.12} parent=0 // pred_check_branch
    %45 = sbr.rel (0) target = $region45
  $region44: #{diffab_forward.12} parent=0 // pred_region
    _
  $region45: #{diffab_forward.12} parent=0 // pred_fallthru
    _
  // Predicated region
  $region46: #{diffab_forward.12} parent=0 // pred_check
    _
  $region47: #{diffab_forward.12} parent=0 // pred_check_branch
    %47 = sbr.rel (0) target = $region49
  $region48: #{diffab_forward.12} parent=0 // pred_region
    _
  $region49: #{diffab_forward.12} parent=0 // pred_fallthru
    _
  // Predicated region
  $region50: #{diffab_forward.12} parent=0 // pred_check
    _
  $region51: #{diffab_forward.12} parent=0 // pred_check_branch
    %49 = sbr.rel (0) target = $region53
  $region52: #{diffab_forward.12} parent=0 // pred_region
    _
  $region53: #{diffab_forward.12} parent=0 // pred_fallthru
    _
  %v51 = vld [vmem:[%s0] sm:$0xf]
  %v52 = vld [vmem:[%s0 + $0x4] sm:$0xf]
  %v53 = vld [vmem:[%s1] sm:$0xf]
  %v54 = vld [vmem:[%s1 + $0x4] sm:$0xf]
  %v55 = vld [vmem:[%s1 + $0x8] sm:$0xf]
  %v56 = vld [vmem:[%s1 + $0xc] sm:$0xf]
  %v57 = vld [vmem:[%s2] sm:$0x1]
  %v59 = vperm.slane %v57, 0
  %v63 = vunpack.c.l.b16 %v51
  %v64 = vunpack.c.l.b16 %v52
  %v65 = vpack.c.b16 %v64, %v63
  %v70 = vunpack.c.l.b16 %v53
  %v71 = vunpack.c.l.b16 %v54
  %v72 = vunpack.c.l.b16 %v55
  %v73 = vunpack.c.l.b16 %v56
  %v74 = vpack.c.b16 %v71, %v70
  %v75 = vpack.c.b16 %v73, %v72
  %vm78 = vcmask 261120
  %v80 = vsel %vm78, %v65, 0
  %82 = vmatpush.bf16.msra.mxu0 0
  %83 = vmatpush.bf16.msra.mxu0 0
  %84 = vmatpush.bf16.msra.mxu0 0
  %85 = vmatpush.bf16.msra.mxu0 0
  %86 = vmatpush.bf16.msra.mxu0 0
  %87 = vmatpush.bf16.msra.mxu0 0
  %88 = vmatpush.bf16.msra.mxu0 %v75
  %89 = vmatpush.bf16.msra.mxu0 %v74
  %90 = vmatmul.bf16.gmra.mxu0 %v80
  %v91 = vpop.f32.mrf.mxu0
  %v92 = vadd.f32 %v59, %v91
  %v93 = vpop.f32.mrf.mxu0
  %v94 = vadd.f32 %v59, %v93
  %95 = vdwg.mxu0
  %v96 = vpack.c.bf16 %v92, %v92
  %v97 = vpack.c.bf16 %v94, %v94
  %vm98 = vcmask 519168
  %99 = vst.msk [vmem:[%s13] sm:$0xf] %vm98, %v96
  %100 = vst.msk [vmem:[%s13 + $0x4] sm:$0xf] %vm98, %v97
  %v101 = vld [vmem:[%s3] sm:$0xf]
  %v102 = vld [vmem:[%s3 + $0x4] sm:$0xf]
  %v103 = vld [vmem:[%s3 + $0x8] sm:$0xf]
  %v104 = vld [vmem:[%s3 + $0xc] sm:$0xf]
  %v105 = vld [vmem:[%s4] sm:$0x1]
  %v107 = vperm.slane %v105, 0
  %v113 = vunpack.c.l.b16 %v101
  %v114 = vunpack.c.l.b16 %v102
  %v115 = vunpack.c.l.b16 %v103
  %v116 = vunpack.c.l.b16 %v104
  %v117 = vpack.c.b16 %v114, %v113
  %v118 = vpack.c.b16 %v116, %v115
  %121 = vmatpush.bf16.msra.mxu0 0
  %122 = vmatpush.bf16.msra.mxu0 0
  %123 = vmatpush.bf16.msra.mxu0 0
  %124 = vmatpush.bf16.msra.mxu0 0
  %125 = vmatpush.bf16.msra.mxu0 0
  %126 = vmatpush.bf16.msra.mxu0 0
  %127 = vmatpush.bf16.msra.mxu0 %v118
  %128 = vmatpush.bf16.msra.mxu0 %v117
  %129 = vmatmul.bf16.gmra.mxu0 %v80
  %v130 = vpop.f32.mrf.mxu0
  %v131 = vadd.f32 %v107, %v130
  %v132 = vpop.f32.mrf.mxu0
  %v133 = vadd.f32 %v107, %v132
  %134 = vdwg.mxu0
  %v135 = vpack.c.bf16 %v131, %v131
  %v136 = vpack.c.bf16 %v133, %v133
  %137 = vst.msk [vmem:[%s14] sm:$0xf] %vm98, %v135
  %138 = vst.msk [vmem:[%s14 + $0x4] sm:$0xf] %vm98, %v136
  %v139 = vld [vmem:[%s5] sm:$0xf]
  %v140 = vld [vmem:[%s5 + $0x4] sm:$0xf]
  %v141 = vld [vmem:[%s5 + $0x8] sm:$0xf]
  %v142 = vld [vmem:[%s5 + $0xc] sm:$0xf]
  %v143 = vld [vmem:[%s6] sm:$0x1]
  %v145 = vperm.slane %v143, 0
  %v151 = vunpack.c.l.b16 %v139
  %v152 = vunpack.c.l.b16 %v140
  %v153 = vunpack.c.l.b16 %v141
  %v154 = vunpack.c.l.b16 %v142
  %v155 = vpack.c.b16 %v152, %v151
  %v156 = vpack.c.b16 %v154, %v153
  %159 = vmatpush.bf16.msra.mxu0 0
  %160 = vmatpush.bf16.msra.mxu0 0
  %161 = vmatpush.bf16.msra.mxu0 0
  %162 = vmatpush.bf16.msra.mxu0 0
  %163 = vmatpush.bf16.msra.mxu0 0
  %164 = vmatpush.bf16.msra.mxu0 0
  %165 = vmatpush.bf16.msra.mxu0 %v156
  %166 = vmatpush.bf16.msra.mxu0 %v155
  %167 = vmatmul.bf16.gmra.mxu0 %v80
  %v168 = vpop.f32.mrf.mxu0
  %v169 = vadd.f32 %v145, %v168
  %v170 = vpop.f32.mrf.mxu0
  %v171 = vadd.f32 %v145, %v170
  %172 = vdwg.mxu0
  %v173 = vpack.c.bf16 %v169, %v169
  %v174 = vpack.c.bf16 %v171, %v171
  %175 = vst.msk [vmem:[%s15] sm:$0xf] %vm98, %v173
  %176 = vst.msk [vmem:[%s15 + $0x4] sm:$0xf] %vm98, %v174
  %v177 = vld [vmem:[%s7] sm:$0xf]
  %v178 = vld [vmem:[%s7 + $0x4] sm:$0xf]
  %v179 = vld [vmem:[%s7 + $0x8] sm:$0xf]
  %v180 = vld [vmem:[%s7 + $0xc] sm:$0xf]
  %v181 = vld [vmem:[%s8] sm:$0x1]
  %v183 = vperm.slane %v181, 0
  %v189 = vunpack.c.l.b16 %v177
  %v190 = vunpack.c.l.b16 %v178
  %v191 = vunpack.c.l.b16 %v179
  %v192 = vunpack.c.l.b16 %v180
  %v193 = vpack.c.b16 %v190, %v189
  %v194 = vpack.c.b16 %v192, %v191
  %197 = vmatpush.bf16.msra.mxu0 0
  %198 = vmatpush.bf16.msra.mxu0 0
  %199 = vmatpush.bf16.msra.mxu0 0
  %200 = vmatpush.bf16.msra.mxu0 0
  %201 = vmatpush.bf16.msra.mxu0 0
  %202 = vmatpush.bf16.msra.mxu0 0
  %203 = vmatpush.bf16.msra.mxu0 %v194
  %204 = vmatpush.bf16.msra.mxu0 %v193
  %205 = vmatmul.bf16.gmra.mxu0 %v80
  %v206 = vpop.f32.mrf.mxu0
  %v207 = vadd.f32 %v183, %v206
  %v208 = vpop.f32.mrf.mxu0
  %v209 = vadd.f32 %v183, %v208
  %210 = vdwg.mxu0
  %v211 = vpack.c.bf16 %v207, %v207
  %v212 = vpack.c.bf16 %v209, %v209
  %vm213 = vcmask 388096
  %214 = vst.msk [vmem:[%s16] sm:$0xf] %vm213, %v211
  %215 = vst.msk [vmem:[%s16 + $0x4] sm:$0xf] %vm213, %v212
  %v216 = vld [vmem:[%s9] sm:$0xf]
  %v217 = vld [vmem:[%s9 + $0x4] sm:$0xf]
  %v218 = vld [vmem:[%s9 + $0x8] sm:$0xf]
  %v219 = vld [vmem:[%s9 + $0xc] sm:$0xf]
  %v220 = vld [vmem:[%s10] sm:$0x1]
  %v222 = vperm.slane %v220, 0
  %v228 = vunpack.c.l.b16 %v216
  %v229 = vunpack.c.l.b16 %v217
  %v230 = vunpack.c.l.b16 %v218
  %v231 = vunpack.c.l.b16 %v219
  %v232 = vpack.c.b16 %v229, %v228
  %v233 = vpack.c.b16 %v231, %v230
  %236 = vmatpush.bf16.msra.mxu0 0
  %237 = vmatpush.bf16.msra.mxu0 0
  %238 = vmatpush.bf16.msra.mxu0 0
  %239 = vmatpush.bf16.msra.mxu0 0
  %240 = vmatpush.bf16.msra.mxu0 0
  %241 = vmatpush.bf16.msra.mxu0 0
  %242 = vmatpush.bf16.msra.mxu0 %v233
  %243 = vmatpush.bf16.msra.mxu0 %v232
  %244 = vmatmul.bf16.gmra.mxu0 %v80
  %v245 = vpop.f32.mrf.mxu0
  %v246 = vadd.f32 %v222, %v245
  %v247 = vpop.f32.mrf.mxu0
  %v248 = vadd.f32 %v222, %v247
  %249 = vdwg.mxu0
  %v250 = vpack.c.bf16 %v246, %v246
  %v251 = vpack.c.bf16 %v248, %v248
  %252 = vst.msk [vmem:[%s17] sm:$0xf] %vm213, %v250
  %253 = vst.msk [vmem:[%s17 + $0x4] sm:$0xf] %vm213, %v251
  %v254 = vld [vmem:[%s11] sm:$0xf]
  %v255 = vld [vmem:[%s11 + $0x4] sm:$0xf]
  %v256 = vld [vmem:[%s11 + $0x8] sm:$0xf]
  %v257 = vld [vmem:[%s11 + $0xc] sm:$0xf]
  %v258 = vld [vmem:[%s12] sm:$0x1]
  %v260 = vperm.slane %v258, 0
  %v266 = vunpack.c.l.b16 %v254
  %v267 = vunpack.c.l.b16 %v255
  %v268 = vunpack.c.l.b16 %v256
  %v269 = vunpack.c.l.b16 %v257
  %v270 = vpack.c.b16 %v267, %v266
  %v271 = vpack.c.b16 %v269, %v268
  %274 = vmatpush.bf16.msra.mxu0 0
  %275 = vmatpush.bf16.msra.mxu0 0
  %276 = vmatpush.bf16.msra.mxu0 0
  %277 = vmatpush.bf16.msra.mxu0 0
  %278 = vmatpush.bf16.msra.mxu0 0
  %279 = vmatpush.bf16.msra.mxu0 0
  %280 = vmatpush.bf16.msra.mxu0 %v271
  %281 = vmatpush.bf16.msra.mxu0 %v270
  %282 = vmatmul.bf16.gmra.mxu0 %v80
  %v283 = vpop.f32.mrf.mxu0
  %v284 = vadd.f32 %v260, %v283
  %v285 = vpop.f32.mrf.mxu0
  %v286 = vadd.f32 %v260, %v285
  %287 = vdwg.mxu0
  %v288 = vpack.c.bf16 %v284, %v284
  %v289 = vpack.c.bf16 %v286, %v286
  %290 = vst.msk [vmem:[%s18] sm:$0xf] %vm213, %v288
  %291 = vst.msk [vmem:[%s18 + $0x4] sm:$0xf] %vm213, %v289
  // Predicated region
  $region54: #{diffab_forward.12} parent=0 // pred_check
    _
  $region55: #{diffab_forward.12} parent=0 // pred_check_branch
    %293 = sbr.rel (0) target = $region57
  $region56: #{diffab_forward.12} parent=0 // pred_region
    _
  $region57: #{diffab_forward.12} parent=0 // pred_fallthru
    _
  // Predicated region
  $region58: #{diffab_forward.12} parent=0 // pred_check
    _
  $region59: #{diffab_forward.12} parent=0 // pred_check_branch
    %295 = sbr.rel (0) target = $region61
  $region60: #{diffab_forward.12} parent=0 // pred_region
    _
  $region61: #{diffab_forward.12} parent=0 // pred_fallthru
    _
  // Predicated region
  $region62: #{diffab_forward.12} parent=0 // pred_check
    _
  $region63: #{diffab_forward.12} parent=0 // pred_check_branch
    %297 = sbr.rel (0) target = $region65
  $region64: #{diffab_forward.12} parent=0 // pred_region
    _
  $region65: #{diffab_forward.12} parent=0 // pred_fallthru
    _
  // Predicated region
  $region66: #{diffab_forward.12} parent=0 // pred_check
    _
  $region67: #{diffab_forward.12} parent=0 // pred_check_branch
    %299 = sbr.rel (0) target = $region69
  $region68: #{diffab_forward.12} parent=0 // pred_region
    _
  $region69: #{diffab_forward.12} parent=0 // pred_fallthru
    _
  // Predicated region
  $region70: #{diffab_forward.12} parent=0 // pred_check
    _
  $region71: #{diffab_forward.12} parent=0 // pred_check_branch
    %301 = sbr.rel (0) target = $region73
  $region72: #{diffab_forward.12} parent=0 // pred_region
    _
  $region73: #{diffab_forward.12} parent=0 // pred_fallthru
    _
  // Predicated region
  $region74: #{diffab_forward.12} parent=0 // pred_check
    _
  $region75: #{diffab_forward.12} parent=0 // pred_check_branch
    %303 = sbr.rel (0) target = $region77
  $region76: #{diffab_forward.12} parent=0 // pred_region
    _
  $region77: #{diffab_forward.12} parent=0 // pred_fallthru
    _
  // Predicated region
  $region78: #{diffab_forward.12} parent=0 // pred_check
    _
  $region79: #{diffab_forward.12} parent=0 // pred_check_branch
    %305 = sbr.rel (0) target = $region81
  $region80: #{diffab_forward.12} parent=0 // pred_region
    _
  $region81: #{diffab_forward.12} parent=0 // pred_fallthru
    _
  // Predicated region
  $region82: #{diffab_forward.12} parent=0 // pred_check
    _
  $region83: #{diffab_forward.12} parent=0 // pred_check_branch
    %307 = sbr.rel (0) target = $region85
  $region84: #{diffab_forward.12} parent=0 // pred_region
    _
  $region85: #{diffab_forward.12} parent=0 // pred_fallthru
    _
  // Predicated region
  $region86: #{diffab_forward.12} parent=0 // pred_check
    _
  $region87: #{diffab_forward.12} parent=0 // pred_check_branch
    %309 = sbr.rel (0) target = $region89
  $region88: #{diffab_forward.12} parent=0 // pred_region
    _
  $region89: #{diffab_forward.12} parent=0 // pred_fallthru
    _
  // Predicated region
  $region90: #{diffab_forward.12} parent=0 // pred_check
    _
  $region91: #{diffab_forward.12} parent=0 // pred_check_branch
    %311 = sbr.rel (0) target = $region93
  $region92: #{diffab_forward.12} parent=0 // pred_region
    _
  $region93: #{diffab_forward.12} parent=0 // pred_fallthru
    _
  // Predicated region
  $region94: #{diffab_forward.12} parent=0 // pred_check
    _
  $region95: #{diffab_forward.12} parent=0 // pred_check_branch
    %313 = sbr.rel (0) target = $region97
  $region96: #{diffab_forward.12} parent=0 // pred_region
    _
  $region97: #{diffab_forward.12} parent=0 // pred_fallthru
    _
  // Predicated region
  $region98: #{diffab_forward.12} parent=0 // pred_check
    _
  $region99: #{diffab_forward.12} parent=0 // pred_check_branch
    %315 = sbr.rel (0) target = $region101
  $region100: #{diffab_forward.12} parent=0 // pred_region
    _
  $region101: #{diffab_forward.12} parent=0 // pred_fallthru
    _

// kernel: diffab_forward.14
$region0: #{diffab_forward.14}
  #allocation0 [shape = 'u32[]', space=smem, size = 0x4, offset = 0x4, fixed_abs, tag = 'smem constant byte address 0x4 - core index']
  #allocation1 [shape = 'u32[72,128]{1,0:T(1,128)}', space=vmem, size = 0x9000, scoped, tag = 'internal scratch']
  %s0 = inlined_call_operand.vmem [shape: bf16[16,304], index: 0, kind: input, shape index: {}]
  %s1 = inlined_call_operand.vmem [shape: bf16[304,32], index: 1, kind: input, shape index: {}]
  %s2 = inlined_call_operand.vmem [shape: f32[1,32], index: 2, kind: input, shape index: {}]
  %s3 = inlined_call_operand.vmem [shape: f32[16,32], index: 3, kind: output, shape index: {}]
  %s4 = sld [smem:[#allocation0]]
  $region22: #{diffab_forward.14} parent=0
    _
  %s6 = ssub.s32 1, %s4
  %s7 = scalar_select 0, %s6, %s4
  // Predicated region
  $region2: #{diffab_forward.14} parent=0 // pred_check
    _
  $region3: #{diffab_forward.14} parent=0 // pred_check_branch
    %9 = sbr.rel (0) target = $region5
  $region4: #{diffab_forward.14} parent=0 // pred_region
    _
  $region5: #{diffab_forward.14} parent=0 // pred_fallthru
    _
  // Predicated region
  $region6: #{diffab_forward.14} parent=0 // pred_check
    _
  $region7: #{diffab_forward.14} parent=0 // pred_check_branch
    %11 = sbr.rel (0) target = $region9
  $region8: #{diffab_forward.14} parent=0 // pred_region
    _
  $region9: #{diffab_forward.14} parent=0 // pred_fallthru
    _
  // Predicated region
  $region10: #{diffab_forward.14} parent=0 // pred_check
    _
  $region11: #{diffab_forward.14} parent=0 // pred_check_branch
    %13 = sbr.rel (0) target = $region13
  $region12: #{diffab_forward.14} parent=0 // pred_region
    _
  $region13: #{diffab_forward.14} parent=0 // pred_fallthru
    _
  %v15 = vld [vmem:[%s0] sm:$0xff]
  %v16 = vld [vmem:[%s0 + $0x8] sm:$0xf]
  %v17 = vld [vmem:[%s0 + $0xc] sm:$0xff]
  %v18 = vld [vmem:[%s0 + $0x14] sm:$0xf]
  %v19 = vld [vmem:[%s1] sm:$0xf]
  %v20 = vld [vmem:[%s1 + $0x4] sm:$0xf]
  %v21 = vld [vmem:[%s1 + $0x8] sm:$0xf]
  %v22 = vld [vmem:[%s1 + $0xc] sm:$0xf]
  %v23 = vld [vmem:[%s1 + $0x10] sm:$0xf]
  %v24 = vld [vmem:[%s1 + $0x14] sm:$0xf]
  %v25 = vld [vmem:[%s1 + $0x18] sm:$0xf]
  %v26 = vld [vmem:[%s1 + $0x1c] sm:$0xf]
  %v27 = vld [vmem:[%s1 + $0x20] sm:$0xf]
  %v28 = vld [vmem:[%s1 + $0x24] sm:$0xf]
  %v29 = vld [vmem:[%s1 + $0x28] sm:$0xf]
  %v30 = vld [vmem:[%s1 + $0x2c] sm:$0xf]
  %v31 = vld [vmem:[%s1 + $0x30] sm:$0xf]
  %v32 = vld [vmem:[%s1 + $0x34] sm:$0xf]
  %v33 = vld [vmem:[%s1 + $0x38] sm:$0xf]
  %v34 = vld [vmem:[%s1 + $0x3c] sm:$0xf]
  %v35 = vld [vmem:[%s1 + $0x40] sm:$0xf]
  %v36 = vld [vmem:[%s1 + $0x44] sm:$0xf]
  %v37 = vld [vmem:[%s1 + $0x48] sm:$0xf]
  %v38 = vld [vmem:[%s1 + $0x4c] sm:$0xf]
  %v39 = vld [vmem:[%s1 + $0x50] sm:$0xf]
  %v40 = vld [vmem:[%s1 + $0x54] sm:$0xf]
  %v41 = vld [vmem:[%s1 + $0x58] sm:$0xf]
  %v42 = vld [vmem:[%s1 + $0x5c] sm:$0xf]
  %v43 = vld [vmem:[%s1 + $0x60] sm:$0xf]
  %v44 = vld [vmem:[%s1 + $0x64] sm:$0xf]
  %v45 = vld [vmem:[%s1 + $0x68] sm:$0xf]
  %v46 = vld [vmem:[%s1 + $0x6c] sm:$0xf]
  %v47 = vld [vmem:[%s1 + $0x70] sm:$0xf]
  %v48 = vld [vmem:[%s1 + $0x74] sm:$0xf]
  %v49 = vld [vmem:[%s1 + $0x78] sm:$0xf]
  %v50 = vld [vmem:[%s1 + $0x7c] sm:$0xf]
  %v51 = vld [vmem:[%s1 + $0x80] sm:$0xf]
  %v52 = vld [vmem:[%s1 + $0x84] sm:$0xf]
  %v53 = vld [vmem:[%s1 + $0x88] sm:$0xf]
  %v54 = vld [vmem:[%s1 + $0x8c] sm:$0xf]
  %v55 = vld [vmem:[%s1 + $0x90] sm:$0xf]
  %v56 = vld [vmem:[%s1 + $0x94] sm:$0xf]
  %v57 = vld [vmem:[%s2] sm:$0x1]
  %v59 = vperm.slane %v57, 0
  %v65 = vunpack.c.l.b16 %v15
  %v66 = vunpack.c.h.b16 %v15
  %v67 = vunpack.c.l.b16 %v16
  %v68 = vunpack.c.l.b16 %v17
  %v69 = vunpack.c.h.b16 %v17
  %v70 = vunpack.c.l.b16 %v18
  %v71 = vpack.c.b16 %v68, %v65
  %v72 = vpack.c.b16 %v69, %v66
  %v73 = vpack.c.b16 %v70, %v67
  %v114 = vunpack.c.l.b16 %v19
  %v115 = vunpack.c.l.b16 %v20
  %v116 = vunpack.c.l.b16 %v21
  %v117 = vunpack.c.l.b16 %v22
  %v118 = vunpack.c.l.b16 %v23
  %v119 = vunpack.c.l.b16 %v24
  %v120 = vunpack.c.l.b16 %v25
  %v121 = vunpack.c.l.b16 %v26
  %v122 = vunpack.c.l.b16 %v27
  %v123 = vunpack.c.l.b16 %v28
  %v124 = vunpack.c.l.b16 %v29
  %v125 = vunpack.c.l.b16 %v30
  %v126 = vunpack.c.l.b16 %v31
  %v127 = vunpack.c.l.b16 %v32
  %v128 = vunpack.c.l.b16 %v33
  %v129 = vunpack.c.l.b16 %v34
  %v130 = vunpack.c.l.b16 %v35
  %v131 = vunpack.c.l.b16 %v36
  %v132 = vunpack.c.l.b16 %v37
  %v133 = vunpack.c.l.b16 %v38
  %v134 = vunpack.c.l.b16 %v39
  %v135 = vunpack.c.l.b16 %v40
  %v136 = vunpack.c.l.b16 %v41
  %v137 = vunpack.c.l.b16 %v42
  %v138 = vunpack.c.l.b16 %v43
  %v139 = vunpack.c.l.b16 %v44
  %v140 = vunpack.c.l.b16 %v45
  %v141 = vunpack.c.l.b16 %v46
  %v142 = vunpack.c.l.b16 %v47
  %v143 = vunpack.c.l.b16 %v48
  %v144 = vunpack.c.l.b16 %v49
  %v145 = vunpack.c.l.b16 %v50
  %v146 = vunpack.c.l.b16 %v51
  %v147 = vunpack.c.l.b16 %v52
  %v148 = vunpack.c.l.b16 %v53
  %v149 = vunpack.c.l.b16 %v54
  %v150 = vunpack.c.l.b16 %v55
  %v151 = vunpack.c.l.b16 %v56
  %v152 = vpack.c.b16 %v115, %v114
  %v153 = vpack.c.b16 %v117, %v116
  %v154 = vpack.c.b16 %v119, %v118
  %v155 = vpack.c.b16 %v121, %v120
  %v156 = vpack.c.b16 %v123, %v122
  %v157 = vpack.c.b16 %v125, %v124
  %v158 = vpack.c.b16 %v127, %v126
  %v159 = vpack.c.b16 %v129, %v128
  %v160 = vpack.c.b16 %v131, %v130
  %v161 = vpack.c.b16 %v133, %v132
  %v162 = vpack.c.b16 %v135, %v134
  %v163 = vpack.c.b16 %v137, %v136
  %v164 = vpack.c.b16 %v139, %v138
  %v165 = vpack.c.b16 %v141, %v140
  %v166 = vpack.c.b16 %v143, %v142
  %v167 = vpack.c.b16 %v145, %v144
  %v168 = vpack.c.b16 %v147, %v146
  %v169 = vpack.c.b16 %v149, %v148
  %v170 = vpack.c.b16 %v151, %v150
  %vm190 = vcmask 392192
  %v192 = vsel %vm190, %v73, 0
  %194 = vmatpush.bf16.msra.mxu0 %v159
  %195 = vmatpush.bf16.msra.mxu0 %v158
  %196 = vmatpush.bf16.msra.mxu0 %v157
  %197 = vmatpush.bf16.msra.mxu0 %v156
  %198 = vmatpush.bf16.msra.mxu0 %v155
  %199 = vmatpush.bf16.msra.mxu0 %v154
  %200 = vmatpush.bf16.msra.mxu0 %v153
  %201 = vmatpush.bf16.msra.mxu0 %v152
  %202 = vmatmul.bf16.gmra.mxu0 %v71
  %v203 = vpop.f32.mrf.mxu0
  %v204 = vadd.f32 %v59, %v203
  %v205 = vpop.f32.mrf.mxu0
  %v206 = vadd.f32 %v59, %v205
  %207 = vdwg.mxu0
  %208 = vmatpush.bf16.msra.mxu0 %v167
  %209 = vmatpush.bf16.msra.mxu0 %v166
  %210 = vmatpush.bf16.msra.mxu0 %v165
  %211 = vmatpush.bf16.msra.mxu0 %v164
  %212 = vmatpush.bf16.msra.mxu0 %v163
  %213 = vmatpush.bf16.msra.mxu0 %v162
  %214 = vmatpush.bf16.msra.mxu0 %v161
  %215 = vmatpush.bf16.msra.mxu0 %v160
  %216 = vmatmul.bf16.gmra.mxu0 %v72
  %v217 = vpop.f32.mrf.mxu0
  %v218 = vadd.f32 %v204, %v217
  %v219 = vpop.f32.mrf.mxu0
  %v220 = vadd.f32 %v206, %v219
  %221 = vdwg.mxu0
  %222 = vmatpush.bf16.msra.mxu0 0
  %223 = vmatpush.bf16.msra.mxu0 0
  %224 = vmatpush.bf16.msra.mxu0 0
  %225 = vmatpush.bf16.msra.mxu0 0
  %226 = vmatpush.bf16.msra.mxu0 0
  %227 = vmatpush.bf16.msra.mxu0 %v170
  %228 = vmatpush.bf16.msra.mxu0 %v169
  %229 = vmatpush.bf16.msra.mxu0 %v168
  %230 = vmatmul.bf16.gmra.mxu0 %v192
  %v231 = vpop.f32.mrf.mxu0
  %v232 = vadd.f32 %v218, %v231
  %v233 = vpop.f32.mrf.mxu0
  %v234 = vadd.f32 %v220, %v233
  %235 = vdwg.mxu0
  %vm236 = vcmask 261120
  %237 = vst.msk [vmem:[%s3] sm:$0xff] %vm236, %v232
  %238 = vst.msk [vmem:[%s3 + $0x8] sm:$0xff] %vm236, %v234
  // Predicated region
  $region14: #{diffab_forward.14} parent=0 // pred_check
    _
  $region15: #{diffab_forward.14} parent=0 // pred_check_branch
    %240 = sbr.rel (0) target = $region17
  $region16: #{diffab_forward.14} parent=0 // pred_region
    _
  $region17: #{diffab_forward.14} parent=0 // pred_fallthru
    _
  // Predicated region
  $region18: #{diffab_forward.14} parent=0 // pred_check
    _
  $region19: #{diffab_forward.14} parent=0 // pred_check_branch
    %242 = sbr.rel (0) target = $region21
  $region20: #{diffab_forward.14} parent=0 // pred_region
    _
  $region21: #{diffab_forward.14} parent=0 // pred_fallthru
    _

// kernel: diffab_forward.15
$region0: #{diffab_forward.15}
  #allocation0 [shape = 'u32[]', space=smem, size = 0x4, offset = 0x4, fixed_abs, tag = 'smem constant byte address 0x4 - core index']
  #allocation1 [shape = 'u32[72,128]{1,0:T(1,128)}', space=vmem, size = 0x9000, scoped, tag = 'internal scratch']
  %s0 = inlined_call_operand.vmem [shape: bf16[16,32], index: 0, kind: input, shape index: {}]
  %s1 = inlined_call_operand.vmem [shape: bf16[32,32], index: 1, kind: input, shape index: {}]
  %s2 = inlined_call_operand.vmem [shape: f32[1,32], index: 2, kind: input, shape index: {}]
  %s3 = inlined_call_operand.vmem [shape: bf16[32,32], index: 3, kind: input, shape index: {}]
  %s4 = inlined_call_operand.vmem [shape: f32[1,32], index: 4, kind: input, shape index: {}]
  %s5 = inlined_call_operand.vmem [shape: bf16[32,32], index: 5, kind: input, shape index: {}]
  %s6 = inlined_call_operand.vmem [shape: f32[1,32], index: 6, kind: input, shape index: {}]
  %s7 = inlined_call_operand.vmem [shape: f32[16,32], index: 7, kind: output, shape index: {}]
  %s8 = sld [smem:[#allocation0]]
  $region38: #{diffab_forward.15} parent=0
    _
  %s10 = ssub.s32 1, %s8
  %s11 = scalar_select 0, %s10, %s8
  // Predicated region
  $region2: #{diffab_forward.15} parent=0 // pred_check
    _
  $region3: #{diffab_forward.15} parent=0 // pred_check_branch
    %13 = sbr.rel (0) target = $region5
  $region4: #{diffab_forward.15} parent=0 // pred_region
    _
  $region5: #{diffab_forward.15} parent=0 // pred_fallthru
    _
  // Predicated region
  $region6: #{diffab_forward.15} parent=0 // pred_check
    _
  $region7: #{diffab_forward.15} parent=0 // pred_check_branch
    %15 = sbr.rel (0) target = $region9
  $region8: #{diffab_forward.15} parent=0 // pred_region
    _
  $region9: #{diffab_forward.15} parent=0 // pred_fallthru
    _
  // Predicated region
  $region10: #{diffab_forward.15} parent=0 // pred_check
    _
  $region11: #{diffab_forward.15} parent=0 // pred_check_branch
    %17 = sbr.rel (0) target = $region13
  $region12: #{diffab_forward.15} parent=0 // pred_region
    _
  $region13: #{diffab_forward.15} parent=0 // pred_fallthru
    _
  // Predicated region
  $region14: #{diffab_forward.15} parent=0 // pred_check
    _
  $region15: #{diffab_forward.15} parent=0 // pred_check_branch
    %19 = sbr.rel (0) target = $region17
  $region16: #{diffab_forward.15} parent=0 // pred_region
    _
  $region17: #{diffab_forward.15} parent=0 // pred_fallthru
    _
  // Predicated region
  $region18: #{diffab_forward.15} parent=0 // pred_check
    _
  $region19: #{diffab_forward.15} parent=0 // pred_check_branch
    %21 = sbr.rel (0) target = $region21
  $region20: #{diffab_forward.15} parent=0 // pred_region
    _
  $region21: #{diffab_forward.15} parent=0 // pred_fallthru
    _
  // Predicated region
  $region22: #{diffab_forward.15} parent=0 // pred_check
    _
  $region23: #{diffab_forward.15} parent=0 // pred_check_branch
    %23 = sbr.rel (0) target = $region25
  $region24: #{diffab_forward.15} parent=0 // pred_region
    _
  $region25: #{diffab_forward.15} parent=0 // pred_fallthru
    _
  // Predicated region
  $region26: #{diffab_forward.15} parent=0 // pred_check
    _
  $region27: #{diffab_forward.15} parent=0 // pred_check_branch
    %25 = sbr.rel (0) target = $region29
  $region28: #{diffab_forward.15} parent=0 // pred_region
    _
  $region29: #{diffab_forward.15} parent=0 // pred_fallthru
    _
  %v27 = vld [vmem:[%s0] sm:$0xf]
  %v28 = vld [vmem:[%s0 + $0x4] sm:$0xf]
  %v29 = vld [vmem:[%s1] sm:$0xf]
  %v30 = vld [vmem:[%s1 + $0x4] sm:$0xf]
  %v31 = vld [vmem:[%s1 + $0x8] sm:$0xf]
  %v32 = vld [vmem:[%s1 + $0xc] sm:$0xf]
  %v33 = vld [vmem:[%s2] sm:$0x1]
  %v35 = vperm.slane %v33, 0
  %v39 = vunpack.c.l.b16 %v27
  %v40 = vunpack.c.l.b16 %v28
  %v41 = vpack.c.b16 %v40, %v39
  %v46 = vunpack.c.l.b16 %v29
  %v47 = vunpack.c.l.b16 %v30
  %v48 = vunpack.c.l.b16 %v31
  %v49 = vunpack.c.l.b16 %v32
  %v50 = vpack.c.b16 %v47, %v46
  %v51 = vpack.c.b16 %v49, %v48
  %vm54 = vcmask 261120
  %v56 = vsel %vm54, %v41, 0
  %58 = vmatpush.bf16.msra.mxu0 0
  %59 = vmatpush.bf16.msra.mxu0 0
  %60 = vmatpush.bf16.msra.mxu0 0
  %61 = vmatpush.bf16.msra.mxu0 0
  %62 = vmatpush.bf16.msra.mxu0 0
  %63 = vmatpush.bf16.msra.mxu0 0
  %64 = vmatpush.bf16.msra.mxu0 %v51
  %65 = vmatpush.bf16.msra.mxu0 %v50
  %66 = vmatmul.bf16.gmra.mxu0 %v56
  %v67 = vpop.f32.mrf.mxu0
  %v68 = vadd.f32 %v35, %v67
  %v69 = vpop.f32.mrf.mxu0
  %v70 = vadd.f32 %v35, %v69
  %71 = vdwg.mxu0
  %v72 = vmax.f32 %v68, 0.0
  %v73 = vmax.f32 %v70, 0.0
  %v74 = vpack.c.bf16 %v73, %v72
  %v75 = vld [vmem:[%s3] sm:$0xf]
  %v76 = vld [vmem:[%s3 + $0x4] sm:$0xf]
  %v77 = vld [vmem:[%s3 + $0x8] sm:$0xf]
  %v78 = vld [vmem:[%s3 + $0xc] sm:$0xf]
  %v79 = vld [vmem:[%s4] sm:$0x1]
  %v81 = vperm.slane %v79, 0
  %v87 = vunpack.c.l.b16 %v75
  %v88 = vunpack.c.l.b16 %v76
  %v89 = vunpack.c.l.b16 %v77
  %v90 = vunpack.c.l.b16 %v78
  %v91 = vpack.c.b16 %v88, %v87
  %v92 = vpack.c.b16 %v90, %v89
  %v96 = vsel %vm54, %v74, 0
  %98 = vmatpush.bf16.msra.mxu0 0
  %99 = vmatpush.bf16.msra.mxu0 0
  %100 = vmatpush.bf16.msra.mxu0 0
  %101 = vmatpush.bf16.msra.mxu0 0
  %102 = vmatpush.bf16.msra.mxu0 0
  %103 = vmatpush.bf16.msra.mxu0 0
  %104 = vmatpush.bf16.msra.mxu0 %v92
  %105 = vmatpush.bf16.msra.mxu0 %v91
  %106 = vmatmul.bf16.gmra.mxu0 %v96
  %v107 = vpop.f32.mrf.mxu0
  %v108 = vadd.f32 %v81, %v107
  %v109 = vpop.f32.mrf.mxu0
  %v110 = vadd.f32 %v81, %v109
  %111 = vdwg.mxu0
  %v112 = vmax.f32 %v108, 0.0
  %v113 = vmax.f32 %v110, 0.0
  %v114 = vpack.c.bf16 %v113, %v112
  %v115 = vld [vmem:[%s5] sm:$0xf]
  %v116 = vld [vmem:[%s5 + $0x4] sm:$0xf]
  %v117 = vld [vmem:[%s5 + $0x8] sm:$0xf]
  %v118 = vld [vmem:[%s5 + $0xc] sm:$0xf]
  %v119 = vld [vmem:[%s6] sm:$0x1]
  %v121 = vperm.slane %v119, 0
  %v127 = vunpack.c.l.b16 %v115
  %v128 = vunpack.c.l.b16 %v116
  %v129 = vunpack.c.l.b16 %v117
  %v130 = vunpack.c.l.b16 %v118
  %v131 = vpack.c.b16 %v128, %v127
  %v132 = vpack.c.b16 %v130, %v129
  %v136 = vsel %vm54, %v114, 0
  %138 = vmatpush.bf16.msra.mxu0 0
  %139 = vmatpush.bf16.msra.mxu0 0
  %140 = vmatpush.bf16.msra.mxu0 0
  %141 = vmatpush.bf16.msra.mxu0 0
  %142 = vmatpush.bf16.msra.mxu0 0
  %143 = vmatpush.bf16.msra.mxu0 0
  %144 = vmatpush.bf16.msra.mxu0 %v132
  %145 = vmatpush.bf16.msra.mxu0 %v131
  %146 = vmatmul.bf16.gmra.mxu0 %v136
  %v147 = vpop.f32.mrf.mxu0
  %v148 = vadd.f32 %v121, %v147
  %v149 = vpop.f32.mrf.mxu0
  %v150 = vadd.f32 %v121, %v149
  %151 = vdwg.mxu0
  %152 = vst.msk [vmem:[%s7] sm:$0xff] %vm54, %v148
  %153 = vst.msk [vmem:[%s7 + $0x8] sm:$0xff] %vm54, %v150
  // Predicated region
  $region30: #{diffab_forward.15} parent=0 // pred_check
    _
  $region31: #{diffab_forward.15} parent=0 // pred_check_branch
    %155 = sbr.rel (0) target = $region33
  $region32: #{diffab_forward.15} parent=0 // pred_region
    _
  $region33: #{diffab_forward.15} parent=0 // pred_fallthru
    _
  // Predicated region
  $region34: #{diffab_forward.15} parent=0 // pred_check
    _
  $region35: #{diffab_forward.15} parent=0 // pred_check_branch
    %157 = sbr.rel (0) target = $region37
  $region36: #{diffab_forward.15} parent=0 // pred_region
    _
  $region37: #{diffab_forward.15} parent=0 // pred_fallthru
    _

// kernel: diffab_forward.19
$region0: #{diffab_forward.19}
  #allocation0 [shape = 'u32[]', space=smem, size = 0x4, offset = 0x4, fixed_abs, tag = 'smem constant byte address 0x4 - core index']
  #allocation1 [shape = 'u32[72,128]{1,0:T(1,128)}', space=vmem, size = 0x9000, scoped, tag = 'internal scratch']
  %s0 = inlined_call_operand.vmem [shape: bf16[16,35], index: 0, kind: input, shape index: {}]
  %s1 = inlined_call_operand.vmem [shape: bf16[35,32], index: 1, kind: input, shape index: {}]
  %s2 = inlined_call_operand.vmem [shape: f32[1,32], index: 2, kind: input, shape index: {}]
  %s3 = inlined_call_operand.vmem [shape: bf16[32,32], index: 3, kind: input, shape index: {}]
  %s4 = inlined_call_operand.vmem [shape: f32[1,32], index: 4, kind: input, shape index: {}]
  %s5 = inlined_call_operand.vmem [shape: bf16[32,3], index: 5, kind: input, shape index: {}]
  %s6 = inlined_call_operand.vmem [shape: f32[1,3], index: 6, kind: input, shape index: {}]
  %s7 = inlined_call_operand.vmem [shape: bf16[35,32], index: 7, kind: input, shape index: {}]
  %s8 = inlined_call_operand.vmem [shape: f32[1,32], index: 8, kind: input, shape index: {}]
  %s9 = inlined_call_operand.vmem [shape: bf16[32,32], index: 9, kind: input, shape index: {}]
  %s10 = inlined_call_operand.vmem [shape: f32[1,32], index: 10, kind: input, shape index: {}]
  %s11 = inlined_call_operand.vmem [shape: bf16[32,3], index: 11, kind: input, shape index: {}]
  %s12 = inlined_call_operand.vmem [shape: f32[1,3], index: 12, kind: input, shape index: {}]
  %s13 = inlined_call_operand.vmem [shape: bf16[35,32], index: 13, kind: input, shape index: {}]
  %s14 = inlined_call_operand.vmem [shape: f32[1,32], index: 14, kind: input, shape index: {}]
  %s15 = inlined_call_operand.vmem [shape: bf16[32,32], index: 15, kind: input, shape index: {}]
  %s16 = inlined_call_operand.vmem [shape: f32[1,32], index: 16, kind: input, shape index: {}]
  %s17 = inlined_call_operand.vmem [shape: bf16[32,20], index: 17, kind: input, shape index: {}]
  %s18 = inlined_call_operand.vmem [shape: f32[1,20], index: 18, kind: input, shape index: {}]
  %s19 = inlined_call_operand.vmem [shape: f32[16,3], index: 19, kind: output, shape index: {0}]
  %s20 = inlined_call_operand.vmem [shape: f32[16,3], index: 20, kind: output, shape index: {1}]
  %s21 = inlined_call_operand.vmem [shape: f32[16,20], index: 21, kind: output, shape index: {2}]
  %22 = xla_tuple %s19, %s20, %s21
  %s23 = sld [smem:[#allocation0]]
  $region102: #{diffab_forward.19} parent=0
    _
  %s25 = ssub.s32 1, %s23
  %s26 = scalar_select 0, %s25, %s23
  // Predicated region
  $region2: #{diffab_forward.19} parent=0 // pred_check
    _
  $region3: #{diffab_forward.19} parent=0 // pred_check_branch
    %28 = sbr.rel (0) target = $region5
  $region4: #{diffab_forward.19} parent=0 // pred_region
    _
  $region5: #{diffab_forward.19} parent=0 // pred_fallthru
    _
  // Predicated region
  $region6: #{diffab_forward.19} parent=0 // pred_check
    _
  $region7: #{diffab_forward.19} parent=0 // pred_check_branch
    %30 = sbr.rel (0) target = $region9
  $region8: #{diffab_forward.19} parent=0 // pred_region
    _
  $region9: #{diffab_forward.19} parent=0 // pred_fallthru
    _
  // Predicated region
  $region10: #{diffab_forward.19} parent=0 // pred_check
    _
  $region11: #{diffab_forward.19} parent=0 // pred_check_branch
    %32 = sbr.rel (0) target = $region13
  $region12: #{diffab_forward.19} parent=0 // pred_region
    _
  $region13: #{diffab_forward.19} parent=0 // pred_fallthru
    _
  // Predicated region
  $region14: #{diffab_forward.19} parent=0 // pred_check
    _
  $region15: #{diffab_forward.19} parent=0 // pred_check_branch
    %34 = sbr.rel (0) target = $region17
  $region16: #{diffab_forward.19} parent=0 // pred_region
    _
  $region17: #{diffab_forward.19} parent=0 // pred_fallthru
    _
  // Predicated region
  $region18: #{diffab_forward.19} parent=0 // pred_check
    _
  $region19: #{diffab_forward.19} parent=0 // pred_check_branch
    %36 = sbr.rel (0) target = $region21
  $region20: #{diffab_forward.19} parent=0 // pred_region
    _
  $region21: #{diffab_forward.19} parent=0 // pred_fallthru
    _
  // Predicated region
  $region22: #{diffab_forward.19} parent=0 // pred_check
    _
  $region23: #{diffab_forward.19} parent=0 // pred_check_branch
    %38 = sbr.rel (0) target = $region25
  $region24: #{diffab_forward.19} parent=0 // pred_region
    _
  $region25: #{diffab_forward.19} parent=0 // pred_fallthru
    _
  // Predicated region
  $region26: #{diffab_forward.19} parent=0 // pred_check
    _
  $region27: #{diffab_forward.19} parent=0 // pred_check_branch
    %40 = sbr.rel (0) target = $region29
  $region28: #{diffab_forward.19} parent=0 // pred_region
    _
  $region29: #{diffab_forward.19} parent=0 // pred_fallthru
    _
  // Predicated region
  $region30: #{diffab_forward.19} parent=0 // pred_check
    _
  $region31: #{diffab_forward.19} parent=0 // pred_check_branch
    %42 = sbr.rel (0) target = $region33
  $region32: #{diffab_forward.19} parent=0 // pred_region
    _
  $region33: #{diffab_forward.19} parent=0 // pred_fallthru
    _
  // Predicated region
  $region34: #{diffab_forward.19} parent=0 // pred_check
    _
  $region35: #{diffab_forward.19} parent=0 // pred_check_branch
    %44 = sbr.rel (0) target = $region37
  $region36: #{diffab_forward.19} parent=0 // pred_region
    _
  $region37: #{diffab_forward.19} parent=0 // pred_fallthru
    _
  // Predicated region
  $region38: #{diffab_forward.19} parent=0 // pred_check
    _
  $region39: #{diffab_forward.19} parent=0 // pred_check_branch
    %46 = sbr.rel (0) target = $region41
  $region40: #{diffab_forward.19} parent=0 // pred_region
    _
  $region41: #{diffab_forward.19} parent=0 // pred_fallthru
    _
  // Predicated region
  $region42: #{diffab_forward.19} parent=0 // pred_check
    _
  $region43: #{diffab_forward.19} parent=0 // pred_check_branch
    %48 = sbr.rel (0) target = $region45
  $region44: #{diffab_forward.19} parent=0 // pred_region
    _
  $region45: #{diffab_forward.19} parent=0 // pred_fallthru
    _
  // Predicated region
  $region46: #{diffab_forward.19} parent=0 // pred_check
    _
  $region47: #{diffab_forward.19} parent=0 // pred_check_branch
    %50 = sbr.rel (0) target = $region49
  $region48: #{diffab_forward.19} parent=0 // pred_region
    _
  $region49: #{diffab_forward.19} parent=0 // pred_fallthru
    _
  // Predicated region
  $region50: #{diffab_forward.19} parent=0 // pred_check
    _
  $region51: #{diffab_forward.19} parent=0 // pred_check_branch
    %52 = sbr.rel (0) target = $region53
  $region52: #{diffab_forward.19} parent=0 // pred_region
    _
  $region53: #{diffab_forward.19} parent=0 // pred_fallthru
    _
  // Predicated region
  $region54: #{diffab_forward.19} parent=0 // pred_check
    _
  $region55: #{diffab_forward.19} parent=0 // pred_check_branch
    %54 = sbr.rel (0) target = $region57
  $region56: #{diffab_forward.19} parent=0 // pred_region
    _
  $region57: #{diffab_forward.19} parent=0 // pred_fallthru
    _
  // Predicated region
  $region58: #{diffab_forward.19} parent=0 // pred_check
    _
  $region59: #{diffab_forward.19} parent=0 // pred_check_branch
    %56 = sbr.rel (0) target = $region61
  $region60: #{diffab_forward.19} parent=0 // pred_region
    _
  $region61: #{diffab_forward.19} parent=0 // pred_fallthru
    _
  // Predicated region
  $region62: #{diffab_forward.19} parent=0 // pred_check
    _
  $region63: #{diffab_forward.19} parent=0 // pred_check_branch
    %58 = sbr.rel (0) target = $region65
  $region64: #{diffab_forward.19} parent=0 // pred_region
    _
  $region65: #{diffab_forward.19} parent=0 // pred_fallthru
    _
  // Predicated region
  $region66: #{diffab_forward.19} parent=0 // pred_check
    _
  $region67: #{diffab_forward.19} parent=0 // pred_check_branch
    %60 = sbr.rel (0) target = $region69
  $region68: #{diffab_forward.19} parent=0 // pred_region
    _
  $region69: #{diffab_forward.19} parent=0 // pred_fallthru
    _
  // Predicated region
  $region70: #{diffab_forward.19} parent=0 // pred_check
    _
  $region71: #{diffab_forward.19} parent=0 // pred_check_branch
    %62 = sbr.rel (0) target = $region73
  $region72: #{diffab_forward.19} parent=0 // pred_region
    _
  $region73: #{diffab_forward.19} parent=0 // pred_fallthru
    _
  // Predicated region
  $region74: #{diffab_forward.19} parent=0 // pred_check
    _
  $region75: #{diffab_forward.19} parent=0 // pred_check_branch
    %64 = sbr.rel (0) target = $region77
  $region76: #{diffab_forward.19} parent=0 // pred_region
    _
  $region77: #{diffab_forward.19} parent=0 // pred_fallthru
    _
  %v66 = vld [vmem:[%s0] sm:$0xf]
  %v67 = vld [vmem:[%s0 + $0x4] sm:$0xf]
  %v68 = vld [vmem:[%s1] sm:$0xf]
  %v69 = vld [vmem:[%s1 + $0x4] sm:$0xf]
  %v70 = vld [vmem:[%s1 + $0x8] sm:$0xf]
  %v71 = vld [vmem:[%s1 + $0xc] sm:$0xf]
  %v72 = vld [vmem:[%s1 + $0x10] sm:$0x3]
  %v73 = vld [vmem:[%s2] sm:$0x1]
  %v75 = vperm.slane %v73, 0
  %v79 = vunpack.c.l.b16 %v66
  %v80 = vunpack.c.l.b16 %v67
  %v81 = vpack.c.b16 %v80, %v79
  %v87 = vunpack.c.l.b16 %v68
  %v88 = vunpack.c.l.b16 %v69
  %v89 = vunpack.c.l.b16 %v70
  %v90 = vunpack.c.l.b16 %v71
  %v91 = vunpack.c.l.b16 %v72
  %v92 = vpack.c.b16 %v88, %v87
  %v93 = vpack.c.b16 %v90, %v89
  %v94 = vpack.c.b16 %v91, %v91
  %vm97 = vcmask 285696
  %v99 = vsel %vm97, %v81, 0
  %vm101 = vcmask 1040384
  %vm102 = vcmask 1041408
  %v103 = vsel %vm101, 4294967295, 65535
  %v104 = vsel %vm102, %v103, 0
  %v106 = vand.u32 %v94, %v104
  %108 = vmatpush.bf16.msra.mxu0 0
  %109 = vmatpush.bf16.msra.mxu0 0
  %110 = vmatpush.bf16.msra.mxu0 0
  %111 = vmatpush.bf16.msra.mxu0 0
  %112 = vmatpush.bf16.msra.mxu0 0
  %113 = vmatpush.bf16.msra.mxu0 %v106
  %114 = vmatpush.bf16.msra.mxu0 %v93
  %115 = vmatpush.bf16.msra.mxu0 %v92
  %116 = vmatmul.bf16.gmra.mxu0 %v99
  %v117 = vpop.f32.mrf.mxu0
  %v118 = vadd.f32 %v75, %v117
  %v119 = vpop.f32.mrf.mxu0
  %v120 = vadd.f32 %v75, %v119
  %121 = vdwg.mxu0
  %v122 = vmax.f32 %v118, 0.0
  %v123 = vmax.f32 %v120, 0.0
  %v124 = vpack.c.bf16 %v123, %v122
  %v125 = vld [vmem:[%s3] sm:$0xf]
  %v126 = vld [vmem:[%s3 + $0x4] sm:$0xf]
  %v127 = vld [vmem:[%s3 + $0x8] sm:$0xf]
  %v128 = vld [vmem:[%s3 + $0xc] sm:$0xf]
  %v129 = vld [vmem:[%s4] sm:$0x1]
  %v131 = vperm.slane %v129, 0
  %v137 = vunpack.c.l.b16 %v125
  %v138 = vunpack.c.l.b16 %v126
  %v139 = vunpack.c.l.b16 %v127
  %v140 = vunpack.c.l.b16 %v128
  %v141 = vpack.c.b16 %v138, %v137
  %v142 = vpack.c.b16 %v140, %v139
  %vm145 = vcmask 261120
  %v147 = vsel %vm145, %v124, 0
  %149 = vmatpush.bf16.msra.mxu0 0
  %150 = vmatpush.bf16.msra.mxu0 0
  %151 = vmatpush.bf16.msra.mxu0 0
  %152 = vmatpush.bf16.msra.mxu0 0
  %153 = vmatpush.bf16.msra.mxu0 0
  %154 = vmatpush.bf16.msra.mxu0 0
  %155 = vmatpush.bf16.msra.mxu0 %v142
  %156 = vmatpush.bf16.msra.mxu0 %v141
  %157 = vmatmul.bf16.gmra.mxu0 %v147
  %v158 = vpop.f32.mrf.mxu0
  %v159 = vadd.f32 %v131, %v158
  %v160 = vpop.f32.mrf.mxu0
  %v161 = vadd.f32 %v131, %v160
  %162 = vdwg.mxu0
  %v163 = vmax.f32 %v159, 0.0
  %v164 = vmax.f32 %v161, 0.0
  %v165 = vpack.c.bf16 %v164, %v163
  %v166 = vld [vmem:[%s5] sm:$0xf]
  %v167 = vld [vmem:[%s5 + $0x4] sm:$0xf]
  %v168 = vld [vmem:[%s5 + $0x8] sm:$0xf]
  %v169 = vld [vmem:[%s5 + $0xc] sm:$0xf]
  %v170 = vld [vmem:[%s6] sm:$0x1]
  %v172 = vperm.slane %v170, 0
  %v178 = vunpack.c.l.b16 %v166
  %v179 = vunpack.c.l.b16 %v167
  %v180 = vunpack.c.l.b16 %v168
  %v181 = vunpack.c.l.b16 %v169
  %v182 = vpack.c.b16 %v179, %v178
  %v183 = vpack.c.b16 %v181, %v180
  %v187 = vsel %vm145, %v165, 0
  %189 = vmatpush.bf16.msra.mxu0 0
  %190 = vmatpush.bf16.msra.mxu0 0
  %191 = vmatpush.bf16.msra.mxu0 0
  %192 = vmatpush.bf16.msra.mxu0 0
  %193 = vmatpush.bf16.msra.mxu0 0
  %194 = vmatpush.bf16.msra.mxu0 0
  %195 = vmatpush.bf16.msra.mxu0 %v183
  %196 = vmatpush.bf16.msra.mxu0 %v182
  %197 = vmatmul.bf16.gmra.mxu0 %v187
  %v198 = vpop.f32.mrf.mxu0
  %v199 = vadd.f32 %v172, %v198
  %v200 = vpop.f32.mrf.mxu0
  %v201 = vadd.f32 %v172, %v200
  %202 = vdwg.mxu0
  %vm203 = vcmask 23552
  %204 = vst.msk [vmem:[%s19] sm:$0xff] %vm203, %v199
  %205 = vst.msk [vmem:[%s19 + $0x8] sm:$0xff] %vm203, %v201
  %v206 = vld [vmem:[%s7] sm:$0xf]
  %v207 = vld [vmem:[%s7 + $0x4] sm:$0xf]
  %v208 = vld [vmem:[%s7 + $0x8] sm:$0xf]
  %v209 = vld [vmem:[%s7 + $0xc] sm:$0xf]
  %v210 = vld [vmem:[%s7 + $0x10] sm:$0x3]
  %v211 = vld [vmem:[%s8] sm:$0x1]
  %v213 = vperm.slane %v211, 0
  %v220 = vunpack.c.l.b16 %v206
  %v221 = vunpack.c.l.b16 %v207
  %v222 = vunpack.c.l.b16 %v208
  %v223 = vunpack.c.l.b16 %v209
  %v224 = vunpack.c.l.b16 %v210
  %v225 = vpack.c.b16 %v221, %v220
  %v226 = vpack.c.b16 %v223, %v222
  %v227 = vpack.c.b16 %v224, %v224
  %v231 = vand.u32 %v227, %v104
  %233 = vmatpush.bf16.msra.mxu0 0
  %234 = vmatpush.bf16.msra.mxu0 0
  %235 = vmatpush.bf16.msra.mxu0 0
  %236 = vmatpush.bf16.msra.mxu0 0
  %237 = vmatpush.bf16.msra.mxu0 0
  %238 = vmatpush.bf16.msra.mxu0 %v231
  %239 = vmatpush.bf16.msra.mxu0 %v226
  %240 = vmatpush.bf16.msra.mxu0 %v225
  %241 = vmatmul.bf16.gmra.mxu0 %v99
  %v242 = vpop.f32.mrf.mxu0
  %v243 = vadd.f32 %v213, %v242
  %v244 = vpop.f32.mrf.mxu0
  %v245 = vadd.f32 %v213, %v244
  %246 = vdwg.mxu0
  %v247 = vmax.f32 %v243, 0.0
  %v248 = vmax.f32 %v245, 0.0
  %v249 = vpack.c.bf16 %v248, %v247
  %v250 = vld [vmem:[%s9] sm:$0xf]
  %v251 = vld [vmem:[%s9 + $0x4] sm:$0xf]
  %v252 = vld [vmem:[%s9 + $0x8] sm:$0xf]
  %v253 = vld [vmem:[%s9 + $0xc] sm:$0xf]
  %v254 = vld [vmem:[%s10] sm:$0x1]
  %v256 = vperm.slane %v254, 0
  %v262 = vunpack.c.l.b16 %v250
  %v263 = vunpack.c.l.b16 %v251
  %v264 = vunpack.c.l.b16 %v252
  %v265 = vunpack.c.l.b16 %v253
  %v266 = vpack.c.b16 %v263, %v262
  %v267 = vpack.c.b16 %v265, %v264
  %v271 = vsel %vm145, %v249, 0
  %273 = vmatpush.bf16.msra.mxu0 0
  %274 = vmatpush.bf16.msra.mxu0 0
  %275 = vmatpush.bf16.msra.mxu0 0
  %276 = vmatpush.bf16.msra.mxu0 0
  %277 = vmatpush.bf16.msra.mxu0 0
  %278 = vmatpush.bf16.msra.mxu0 0
  %279 = vmatpush.bf16.msra.mxu0 %v267
  %280 = vmatpush.bf16.msra.mxu0 %v266
  %281 = vmatmul.bf16.gmra.mxu0 %v271
  %v282 = vpop.f32.mrf.mxu0
  %v283 = vadd.f32 %v256, %v282
  %v284 = vpop.f32.mrf.mxu0
  %v285 = vadd.f32 %v256, %v284
  %286 = vdwg.mxu0
  %v287 = vmax.f32 %v283, 0.0
  %v288 = vmax.f32 %v285, 0.0
  %v289 = vpack.c.bf16 %v288, %v287
  %v290 = vld [vmem:[%s11] sm:$0xf]
  %v291 = vld [vmem:[%s11 + $0x4] sm:$0xf]
  %v292 = vld [vmem:[%s11 + $0x8] sm:$0xf]
  %v293 = vld [vmem:[%s11 + $0xc] sm:$0xf]
  %v294 = vld [vmem:[%s12] sm:$0x1]
  %v296 = vperm.slane %v294, 0
  %v302 = vunpack.c.l.b16 %v290
  %v303 = vunpack.c.l.b16 %v291
  %v304 = vunpack.c.l.b16 %v292
  %v305 = vunpack.c.l.b16 %v293
  %v306 = vpack.c.b16 %v303, %v302
  %v307 = vpack.c.b16 %v305, %v304
  %v311 = vsel %vm145, %v289, 0
  %313 = vmatpush.bf16.msra.mxu0 0
  %314 = vmatpush.bf16.msra.mxu0 0
  %315 = vmatpush.bf16.msra.mxu0 0
  %316 = vmatpush.bf16.msra.mxu0 0
  %317 = vmatpush.bf16.msra.mxu0 0
  %318 = vmatpush.bf16.msra.mxu0 0
  %319 = vmatpush.bf16.msra.mxu0 %v307
  %320 = vmatpush.bf16.msra.mxu0 %v306
  %321 = vmatmul.bf16.gmra.mxu0 %v311
  %v322 = vpop.f32.mrf.mxu0
  %v323 = vadd.f32 %v296, %v322
  %v324 = vpop.f32.mrf.mxu0
  %v325 = vadd.f32 %v296, %v324
  %326 = vdwg.mxu0
  %327 = vst.msk [vmem:[%s20] sm:$0xff] %vm203, %v323
  %328 = vst.msk [vmem:[%s20 + $0x8] sm:$0xff] %vm203, %v325
  %v329 = vld [vmem:[%s13] sm:$0xf]
  %v330 = vld [vmem:[%s13 + $0x4] sm:$0xf]
  %v331 = vld [vmem:[%s13 + $0x8] sm:$0xf]
  %v332 = vld [vmem:[%s13 + $0xc] sm:$0xf]
  %v333 = vld [vmem:[%s13 + $0x10] sm:$0x3]
  %v334 = vld [vmem:[%s14] sm:$0x1]
  %v336 = vperm.slane %v334, 0
  %v343 = vunpack.c.l.b16 %v329
  %v344 = vunpack.c.l.b16 %v330
  %v345 = vunpack.c.l.b16 %v331
  %v346 = vunpack.c.l.b16 %v332
  %v347 = vunpack.c.l.b16 %v333
  %v348 = vpack.c.b16 %v344, %v343
  %v349 = vpack.c.b16 %v346, %v345
  %v350 = vpack.c.b16 %v347, %v347
  %v354 = vand.u32 %v350, %v104
  %356 = vmatpush.bf16.msra.mxu0 0
  %357 = vmatpush.bf16.msra.mxu0 0
  %358 = vmatpush.bf16.msra.mxu0 0
  %359 = vmatpush.bf16.msra.mxu0 0
  %360 = vmatpush.bf16.msra.mxu0 0
  %361 = vmatpush.bf16.msra.mxu0 %v354
  %362 = vmatpush.bf16.msra.mxu0 %v349
  %363 = vmatpush.bf16.msra.mxu0 %v348
  %364 = vmatmul.bf16.gmra.mxu0 %v99
  %v365 = vpop.f32.mrf.mxu0
  %v366 = vadd.f32 %v336, %v365
  %v367 = vpop.f32.mrf.mxu0
  %v368 = vadd.f32 %v336, %v367
  %369 = vdwg.mxu0
  %v370 = vmax.f32 %v366, 0.0
  %v371 = vmax.f32 %v368, 0.0
  %v372 = vpack.c.bf16 %v371, %v370
  %v373 = vld [vmem:[%s15] sm:$0xf]
  %v374 = vld [vmem:[%s15 + $0x4] sm:$0xf]
  %v375 = vld [vmem:[%s15 + $0x8] sm:$0xf]
  %v376 = vld [vmem:[%s15 + $0xc] sm:$0xf]
  %v377 = vld [vmem:[%s16] sm:$0x1]
  %v379 = vperm.slane %v377, 0
  %v385 = vunpack.c.l.b16 %v373
  %v386 = vunpack.c.l.b16 %v374
  %v387 = vunpack.c.l.b16 %v375
  %v388 = vunpack.c.l.b16 %v376
  %v389 = vpack.c.b16 %v386, %v385
  %v390 = vpack.c.b16 %v388, %v387
  %v394 = vsel %vm145, %v372, 0
  %396 = vmatpush.bf16.msra.mxu0 0
  %397 = vmatpush.bf16.msra.mxu0 0
  %398 = vmatpush.bf16.msra.mxu0 0
  %399 = vmatpush.bf16.msra.mxu0 0
  %400 = vmatpush.bf16.msra.mxu0 0
  %401 = vmatpush.bf16.msra.mxu0 0
  %402 = vmatpush.bf16.msra.mxu0 %v390
  %403 = vmatpush.bf16.msra.mxu0 %v389
  %404 = vmatmul.bf16.gmra.mxu0 %v394
  %v405 = vpop.f32.mrf.mxu0
  %v406 = vadd.f32 %v379, %v405
  %v407 = vpop.f32.mrf.mxu0
  %v408 = vadd.f32 %v379, %v407
  %409 = vdwg.mxu0
  %v410 = vmax.f32 %v406, 0.0
  %v411 = vmax.f32 %v408, 0.0
  %v412 = vpack.c.bf16 %v411, %v410
  %v413 = vld [vmem:[%s17] sm:$0xf]
  %v414 = vld [vmem:[%s17 + $0x4] sm:$0xf]
  %v415 = vld [vmem:[%s17 + $0x8] sm:$0xf]
  %v416 = vld [vmem:[%s17 + $0xc] sm:$0xf]
  %v417 = vld [vmem:[%s18] sm:$0x1]
  %v419 = vperm.slane %v417, 0
  %v425 = vunpack.c.l.b16 %v413
  %v426 = vunpack.c.l.b16 %v414
  %v427 = vunpack.c.l.b16 %v415
  %v428 = vunpack.c.l.b16 %v416
  %v429 = vpack.c.b16 %v426, %v425
  %v430 = vpack.c.b16 %v428, %v427
  %v434 = vsel %vm145, %v412, 0
  %436 = vmatpush.bf16.msra.mxu0 0
  %437 = vmatpush.bf16.msra.mxu0 0
  %438 = vmatpush.bf16.msra.mxu0 0
  %439 = vmatpush.bf16.msra.mxu0 0
  %440 = vmatpush.bf16.msra.mxu0 0
  %441 = vmatpush.bf16.msra.mxu0 0
  %442 = vmatpush.bf16.msra.mxu0 %v430
  %443 = vmatpush.bf16.msra.mxu0 %v429
  %444 = vmatmul.bf16.gmra.mxu0 %v434
  %v445 = vpop.f32.mrf.mxu0
  %v446 = vadd.f32 %v419, %v445
  %v447 = vpop.f32.mrf.mxu0
  %v448 = vadd.f32 %v419, %v447
  %449 = vdwg.mxu0
  %vm450 = vcmask 162816
  %451 = vst.msk [vmem:[%s21] sm:$0xff] %vm450, %v446
  %452 = vst.msk [vmem:[%s21 + $0x8] sm:$0xff] %vm450, %v448
  // Predicated region
  $region78: #{diffab_forward.19} parent=0 // pred_check
    _
  $region79: #{diffab_forward.19} parent=0 // pred_check_branch
    %454 = sbr.rel (0) target = $region81
  $region80: #{diffab_forward.19} parent=0 // pred_region
    _
  $region81: #{diffab_forward.19} parent=0 // pred_fallthru
    _
  // Predicated region
  $region82: #{diffab_forward.19} parent=0 // pred_check
    _
  $region83: #{diffab_forward.19} parent=0 // pred_check_branch
    %456 = sbr.rel (0) target = $region85
  $region84: #{diffab_forward.19} parent=0 // pred_region
    _
  $region85: #{diffab_forward.19} parent=0 // pred_fallthru
    _
  // Predicated region
  $region86: #{diffab_forward.19} parent=0 // pred_check
    _
  $region87: #{diffab_forward.19} parent=0 // pred_check_branch
    %458 = sbr.rel (0) target = $region89
  $region88: #{diffab_forward.19} parent=0 // pred_region
    _
  $region89: #{diffab_forward.19} parent=0 // pred_fallthru
    _
  // Predicated region
  $region90: #{diffab_forward.19} parent=0 // pred_check
    _
  $region91: #{diffab_forward.19} parent=0 // pred_check_branch
    %460 = sbr.rel (0) target = $region93
  $region92: #{diffab_forward.19} parent=0 // pred_region
    _
  $region93: #{diffab_forward.19} parent=0 // pred_fallthru
    _
  // Predicated region
  $region94: #{diffab_forward.19} parent=0 // pred_check
    _
  $region95: #{diffab_forward.19} parent=0 // pred_check_branch
    %462 = sbr.rel (0) target = $region97
  $region96: #{diffab_forward.19} parent=0 // pred_region
    _
  $region97: #{diffab_forward.19} parent=0 // pred_fallthru
    _
  // Predicated region
  $region98: #{diffab_forward.19} parent=0 // pred_check
    _
  $region99: #{diffab_forward.19} parent=0 // pred_check_branch
    %464 = sbr.rel (0) target = $region101
  $region100: #{diffab_forward.19} parent=0 // pred_region
    _
  $region101: #{diffab_forward.19} parent=0 // pred_fallthru
    _

</llo_original>
